<compile_context>
chip_gen: v7x
topology: tpu7x:2x2x1
jax: 0.10.0
libtpu: 0.0.40
codegen_flags: <defaults>
</compile_context>

<pallas_src>
import functools

import jax
import jax.numpy as jnp
import numpy as np
from jax import lax
from jax.experimental import pallas as pl
from jax.experimental.pallas import tpu as pltpu


def _round_up(x, m):
    return (x + m - 1) // m * m


def _pick_cout_block(cout):
    """Largest Cout tile <= 128 that divides Cout (keeps output blocks in VMEM)."""
    if cout <= 128:
        return cout
    for blk in (128, 64, 32, 16, 8):
        if cout % blk == 0:
            return blk
    return cout  # fallback: no Cout tiling


def _upsample_conv_kernel(x_ref, w_ref, b_ref, o_ref, *, row_pitch):
    """One (sample, Cout-block) grid step.

    x_ref : (1, Cin, Lp)        zero-padded input, spatial flattened row-major
                                with pitch row_pitch = W+2 (flat axis on lanes)
    w_ref : (16, Cout_blk, Cin) phase-folded 2x2 effective weights,
                                index = ((a*2+b)*2+u)*2+v
    b_ref : (Cout_blk, 1)       bias column
    o_ref : (1, 4, Cout_blk, M) four phase images, flat spatial on lanes
    """
    cout_blk, m = o_ref.shape[2], o_ref.shape[3]
    bias = b_ref[...]                                   # (Cout_blk, 1)
    for pa in range(2):                                 # output row phase
        for pb in range(2):                             # output col phase
            acc = jnp.zeros((cout_blk, m), jnp.float32)
            for u in range(2):                          # 2x2 effective taps
                for v in range(2):
                    off = (pa + u) * row_pitch + (pb + v)
                    xs = x_ref[0, :, pl.ds(off, m)]     # (Cin, M)
                    wt = w_ref[((pa * 2 + pb) * 2 + u) * 2 + v, :, :]
                    acc = acc + jnp.dot(wt, xs,
                                        preferred_element_type=jnp.float32)
            o_ref[0, pa * 2 + pb, :, :] = (acc + bias).astype(o_ref.dtype)


def upsample_forward(x_nchw, weight_oihw=None, bias=None, with_conv=True):
    """Matches torch Upsample.forward: nearest 2x upsample (+ optional 3x3 conv)."""
    n, cin, h, w = x_nchw.shape

    if not with_conv:
        # pure index replication, zero FLOPs — an XLA copy is already optimal
        return jnp.repeat(jnp.repeat(x_nchw, 2, axis=2), 2, axis=3)

    cout = weight_oihw.shape[0]
    row_pitch = w + 2                                  # padded row pitch (W+2)
    hw_valid = h * row_pitch                           # flat positions kept
    m = _round_up(hw_valid, 128)                       # lane-dense matmul N dim
    lp = m + 2 * row_pitch + 2                         # flat padded input length

    # zero-pad spatial dims by 1 and flatten row-major (pitch W+2); stays NCHW,
    # so no input transpose is needed (channels on sublanes, spatial on lanes).
    xp = jnp.pad(x_nchw, ((0, 0), (0, 0), (1, 1), (1, 1)))
    xflat = xp.reshape(n, cin, (h + 2) * row_pitch)
    xflat = jnp.pad(xflat, ((0, 0), (0, 0), (0, lp - (h + 2) * row_pitch)))

    # Fold conv ∘ nearest-2x into 4 phase kernels with 2x2 effective taps:
    # R[a, u, ky] sums the 3x3 rows ky that hit the same original row for
    # output-row phase a (identical matrix for columns / phase b).
    r = jnp.array([[[1., 0., 0.], [0., 1., 1.]],
                   [[1., 1., 0.], [0., 0., 1.]]], dtype=jnp.float32)
    w_eff = jnp.einsum('auy,bvx,oiyx->abuvoi', r, r,
                       weight_oihw.astype(jnp.float32))
    w_eff = w_eff.reshape(16, cout, cin)               # ((a*2+b)*2+u)*2+v major
    bias2d = bias.reshape(cout, 1).astype(jnp.float32)

    cout_blk = _pick_cout_block(cout)
    grid = (n, cout // cout_blk)

    out_k = pl.pallas_call(
        functools.partial(_upsample_conv_kernel, row_pitch=row_pitch),
        out_shape=jax.ShapeDtypeStruct((n, 4, cout, m), x_nchw.dtype),
        grid_spec=pltpu.PrefetchScalarGridSpec(
            num_scalar_prefetch=0,
            grid=grid,
            in_specs=[
                pl.BlockSpec((1, cin, lp), lambda s, c: (s, 0, 0)),
                pl.BlockSpec((16, cout_blk, cin), lambda s, c: (0, c, 0)),
                pl.BlockSpec((cout_blk, 1), lambda s, c: (c, 0)),
            ],
            out_specs=pl.BlockSpec((1, 4, cout_blk, m),
                                   lambda s, c: (s, 0, c, 0)),
        ),
        compiler_params=pltpu.CompilerParams(
            dimension_semantics=("parallel", "parallel"),
            vmem_limit_bytes=48 * 1024 * 1024),
    )(xflat, w_eff, bias2d)

    # Un-flatten: drop the junk columns (flat pitch is W+2) and interleave the
    # 4 phases back into (N, Cout, 2H, 2W).  This transpose is layout plumbing
    # on the output only; the upsampled image itself never touched HBM.
    # TODO(synk): for very large C*H*W add a row-block grid axis (1-row halo)
    # so the per-sample input block also fits v7x's 64 MiB VMEM.
    out = out_k[..., :hw_valid].reshape(n, 2, 2, cout, h, row_pitch)[..., :w]
    out = out.transpose(0, 3, 4, 1, 5, 2).reshape(n, cout, 2 * h, 2 * w)
    return out


if __name__ == "__main__":
    key = jax.random.PRNGKey(0)
    kx, kw, kb = jax.random.split(key, 3)

    # small shapes consistent with the module: batch=2, channels=4, spatial=16
    N, C, H, W = 2, 4, 16, 16
    x = jax.random.normal(kx, (N, C, H, W), jnp.float32)

    # Conv2d(C, C, kernel_size=3, padding=1): weight (C, C, 3, 3), bias (C,)
    fan_in = C * 3 * 3
    bound = 1.0 / np.sqrt(fan_in)
    weight = jax.random.uniform(kw, (C, C, 3, 3), jnp.float32, -bound, bound)
    bias = jax.random.uniform(kb, (C,), jnp.float32, -bound, bound)

    out = upsample_forward(x, weight, bias, with_conv=True)
    out = jax.block_until_ready(out)
    assert out.shape == (N, C, 2 * H, 2 * W)

    # reference: same math with XLA conv on the materialized upsampled image
    x_up = jnp.repeat(jnp.repeat(x, 2, axis=2), 2, axis=3)
    ref = lax.conv_general_dilated(
        x_up, weight, window_strides=(1, 1), padding="SAME",
        dimension_numbers=("NCHW", "OIHW", "NCHW")) + bias[None, :, None, None]
    np.testing.assert_allclose(np.asarray(out), np.asarray(ref), atol=1e-4, rtol=1e-4)

    print("KERNEL_OK")
</pallas_src>

<mosaic_0001>
module attributes {stable_mosaic.version = 11 : i64} {
  func.func @_upsample_conv_kernel(%arg0: i32, %arg1: i32, %arg2: memref<1x4x422xf32, #tpu.memory_space<vmem>>, %arg3: memref<16x4x4xf32, #tpu.memory_space<vmem>>, %arg4: memref<4x1xf32, #tpu.memory_space<vmem>>, %arg5: memref<1x4x4x384xf32, #tpu.memory_space<vmem>>) attributes {dimension_semantics = [#tpu.dimension_semantics<parallel>, #tpu.dimension_semantics<parallel>], iteration_bounds = array<i64: 2, 1>, scalar_prefetch = 0 : i64, scratch_operands = 0 : i64, tpu.core_type = #tpu.core_type<tc>, window_params = [{transform_indices = @transform_0, window_bounds = array<i64: 1, 4, 422>}, {transform_indices = @transform_1, window_bounds = array<i64: 16, 4, 4>}, {transform_indices = @transform_2, window_bounds = array<i64: 4, 1>}, {transform_indices = @transform_3, window_bounds = array<i64: 1, 4, 4, 384>}]} {
    %c0 = arith.constant 0 : index
    %c0_0 = arith.constant 0 : index
    %0 = vector.load %arg4[%c0, %c0_0] : memref<4x1xf32, #tpu.memory_space<vmem>>, vector<4x1xf32>
    %cst = arith.constant 0.000000e+00 : f32
    %1 = vector.broadcast %cst : f32 to vector<4x384xf32>
    %c0_1 = arith.constant 0 : index
    %c0_2 = arith.constant 0 : index
    %c0_3 = arith.constant 0 : index
    %2 = vector.load %arg2[%c0_1, %c0_2, %c0_3] : memref<1x4x422xf32, #tpu.memory_space<vmem>>, vector<1x4x384xf32>
    %3 = vector.shape_cast %2 : vector<1x4x384xf32> to vector<4x384xf32>
    %c0_4 = arith.constant 0 : index
    %c0_5 = arith.constant 0 : index
    %c0_6 = arith.constant 0 : index
    %4 = vector.load %arg3[%c0_4, %c0_5, %c0_6] : memref<16x4x4xf32, #tpu.memory_space<vmem>>, vector<1x4x4xf32>
    %5 = vector.shape_cast %4 : vector<1x4x4xf32> to vector<4x4xf32>
    %cst_7 = arith.constant dense<0.000000e+00> : vector<4x384xf32>
    %6 = tpu.matmul %5, %3, %cst_7 {dimension_numbers = #tpu.dot_dimension_numbers<[1], [0], [0], [1], [0, 0, 1, 1], [], []>} : vector<4x4xf32>, vector<4x384xf32>, vector<4x384xf32> -> vector<4x384xf32>
    %7 = arith.addf %1, %6 : vector<4x384xf32>
    %c0_8 = arith.constant 0 : index
    %c0_9 = arith.constant 0 : index
    %c1 = arith.constant 1 : index
    %8 = vector.load %arg2[%c0_8, %c0_9, %c1] : memref<1x4x422xf32, #tpu.memory_space<vmem>>, vector<1x4x384xf32>
    %9 = vector.shape_cast %8 : vector<1x4x384xf32> to vector<4x384xf32>
    %c1_10 = arith.constant 1 : index
    %c0_11 = arith.constant 0 : index
    %c0_12 = arith.constant 0 : index
    %10 = vector.load %arg3[%c1_10, %c0_11, %c0_12] : memref<16x4x4xf32, #tpu.memory_space<vmem>>, vector<1x4x4xf32>
    %11 = vector.shape_cast %10 : vector<1x4x4xf32> to vector<4x4xf32>
    %cst_13 = arith.constant dense<0.000000e+00> : vector<4x384xf32>
    %12 = tpu.matmul %11, %9, %cst_13 {dimension_numbers = #tpu.dot_dimension_numbers<[1], [0], [0], [1], [0, 0, 1, 1], [], []>} : vector<4x4xf32>, vector<4x384xf32>, vector<4x384xf32> -> vector<4x384xf32>
    %13 = arith.addf %7, %12 : vector<4x384xf32>
    %c0_14 = arith.constant 0 : index
    %c0_15 = arith.constant 0 : index
    %c18 = arith.constant 18 : index
    %14 = vector.load %arg2[%c0_14, %c0_15, %c18] : memref<1x4x422xf32, #tpu.memory_space<vmem>>, vector<1x4x384xf32>
    %15 = vector.shape_cast %14 : vector<1x4x384xf32> to vector<4x384xf32>
    %c2 = arith.constant 2 : index
    %c0_16 = arith.constant 0 : index
    %c0_17 = arith.constant 0 : index
    %16 = vector.load %arg3[%c2, %c0_16, %c0_17] : memref<16x4x4xf32, #tpu.memory_space<vmem>>, vector<1x4x4xf32>
    %17 = vector.shape_cast %16 : vector<1x4x4xf32> to vector<4x4xf32>
    %cst_18 = arith.constant dense<0.000000e+00> : vector<4x384xf32>
    %18 = tpu.matmul %17, %15, %cst_18 {dimension_numbers = #tpu.dot_dimension_numbers<[1], [0], [0], [1], [0, 0, 1, 1], [], []>} : vector<4x4xf32>, vector<4x384xf32>, vector<4x384xf32> -> vector<4x384xf32>
    %19 = arith.addf %13, %18 : vector<4x384xf32>
    %c0_19 = arith.constant 0 : index
    %c0_20 = arith.constant 0 : index
    %c19 = arith.constant 19 : index
    %20 = vector.load %arg2[%c0_19, %c0_20, %c19] : memref<1x4x422xf32, #tpu.memory_space<vmem>>, vector<1x4x384xf32>
    %21 = vector.shape_cast %20 : vector<1x4x384xf32> to vector<4x384xf32>
    %c3 = arith.constant 3 : index
    %c0_21 = arith.constant 0 : index
    %c0_22 = arith.constant 0 : index
    %22 = vector.load %arg3[%c3, %c0_21, %c0_22] : memref<16x4x4xf32, #tpu.memory_space<vmem>>, vector<1x4x4xf32>
    %23 = vector.shape_cast %22 : vector<1x4x4xf32> to vector<4x4xf32>
    %cst_23 = arith.constant dense<0.000000e+00> : vector<4x384xf32>
    %24 = tpu.matmul %23, %21, %cst_23 {dimension_numbers = #tpu.dot_dimension_numbers<[1], [0], [0], [1], [0, 0, 1, 1], [], []>} : vector<4x4xf32>, vector<4x384xf32>, vector<4x384xf32> -> vector<4x384xf32>
    %25 = arith.addf %19, %24 : vector<4x384xf32>
    %26 = vector.broadcast %0 : vector<4x1xf32> to vector<4x384xf32>
    %27 = arith.addf %25, %26 : vector<4x384xf32>
    %c0_24 = arith.constant 0 : index
    %c0_25 = arith.constant 0 : index
    %c0_26 = arith.constant 0 : index
    %c0_27 = arith.constant 0 : index
    %28 = vector.load %arg5[%c0_24, %c0_25, %c0_26, %c0_27] : memref<1x4x4x384xf32, #tpu.memory_space<vmem>>, vector<1x1x4x384xf32>
    %29 = vector.shape_cast %28 : vector<1x1x4x384xf32> to vector<4x384xf32>
    %30 = vector.shape_cast %27 : vector<4x384xf32> to vector<1x1x4x384xf32>
    tpu.vector_store %arg5[%c0_24, %c0_25, %c0_26, %c0_27], %30 {strides = array<i32>} : memref<1x4x4x384xf32, #tpu.memory_space<vmem>>, vector<1x1x4x384xf32>,
    %cst_28 = arith.constant 0.000000e+00 : f32
    %31 = vector.broadcast %cst_28 : f32 to vector<4x384xf32>
    %c0_29 = arith.constant 0 : index
    %c0_30 = arith.constant 0 : index
    %c1_31 = arith.constant 1 : index
    %32 = vector.load %arg2[%c0_29, %c0_30, %c1_31] : memref<1x4x422xf32, #tpu.memory_space<vmem>>, vector<1x4x384xf32>
    %33 = vector.shape_cast %32 : vector<1x4x384xf32> to vector<4x384xf32>
    %c4 = arith.constant 4 : index
    %c0_32 = arith.constant 0 : index
    %c0_33 = arith.constant 0 : index
    %34 = vector.load %arg3[%c4, %c0_32, %c0_33] : memref<16x4x4xf32, #tpu.memory_space<vmem>>, vector<1x4x4xf32>
    %35 = vector.shape_cast %34 : vector<1x4x4xf32> to vector<4x4xf32>
    %cst_34 = arith.constant dense<0.000000e+00> : vector<4x384xf32>
    %36 = tpu.matmul %35, %33, %cst_34 {dimension_numbers = #tpu.dot_dimension_numbers<[1], [0], [0], [1], [0, 0, 1, 1], [], []>} : vector<4x4xf32>, vector<4x384xf32>, vector<4x384xf32> -> vector<4x384xf32>
    %37 = arith.addf %31, %36 : vector<4x384xf32>
    %c0_35 = arith.constant 0 : index
    %c0_36 = arith.constant 0 : index
    %c2_37 = arith.constant 2 : index
    %38 = vector.load %arg2[%c0_35, %c0_36, %c2_37] : memref<1x4x422xf32, #tpu.memory_space<vmem>>, vector<1x4x384xf32>
    %39 = vector.shape_cast %38 : vector<1x4x384xf32> to vector<4x384xf32>
    %c5 = arith.constant 5 : index
    %c0_38 = arith.constant 0 : index
    %c0_39 = arith.constant 0 : index
    %40 = vector.load %arg3[%c5, %c0_38, %c0_39] : memref<16x4x4xf32, #tpu.memory_space<vmem>>, vector<1x4x4xf32>
    %41 = vector.shape_cast %40 : vector<1x4x4xf32> to vector<4x4xf32>
    %cst_40 = arith.constant dense<0.000000e+00> : vector<4x384xf32>
    %42 = tpu.matmul %41, %39, %cst_40 {dimension_numbers = #tpu.dot_dimension_numbers<[1], [0], [0], [1], [0, 0, 1, 1], [], []>} : vector<4x4xf32>, vector<4x384xf32>, vector<4x384xf32> -> vector<4x384xf32>
    %43 = arith.addf %37, %42 : vector<4x384xf32>
    %c0_41 = arith.constant 0 : index
    %c0_42 = arith.constant 0 : index
    %c19_43 = arith.constant 19 : index
    %44 = vector.load %arg2[%c0_41, %c0_42, %c19_43] : memref<1x4x422xf32, #tpu.memory_space<vmem>>, vector<1x4x384xf32>
    %45 = vector.shape_cast %44 : vector<1x4x384xf32> to vector<4x384xf32>
    %c6 = arith.constant 6 : index
    %c0_44 = arith.constant 0 : index
    %c0_45 = arith.constant 0 : index
    %46 = vector.load %arg3[%c6, %c0_44, %c0_45] : memref<16x4x4xf32, #tpu.memory_space<vmem>>, vector<1x4x4xf32>
    %47 = vector.shape_cast %46 : vector<1x4x4xf32> to vector<4x4xf32>
    %cst_46 = arith.constant dense<0.000000e+00> : vector<4x384xf32>
    %48 = tpu.matmul %47, %45, %cst_46 {dimension_numbers = #tpu.dot_dimension_numbers<[1], [0], [0], [1], [0, 0, 1, 1], [], []>} : vector<4x4xf32>, vector<4x384xf32>, vector<4x384xf32> -> vector<4x384xf32>
    %49 = arith.addf %43, %48 : vector<4x384xf32>
    %c0_47 = arith.constant 0 : index
    %c0_48 = arith.constant 0 : index
    %c20 = arith.constant 20 : index
    %50 = vector.load %arg2[%c0_47, %c0_48, %c20] : memref<1x4x422xf32, #tpu.memory_space<vmem>>, vector<1x4x384xf32>
    %51 = vector.shape_cast %50 : vector<1x4x384xf32> to vector<4x384xf32>
    %c7 = arith.constant 7 : index
    %c0_49 = arith.constant 0 : index
    %c0_50 = arith.constant 0 : index
    %52 = vector.load %arg3[%c7, %c0_49, %c0_50] : memref<16x4x4xf32, #tpu.memory_space<vmem>>, vector<1x4x4xf32>
    %53 = vector.shape_cast %52 : vector<1x4x4xf32> to vector<4x4xf32>
    %cst_51 = arith.constant dense<0.000000e+00> : vector<4x384xf32>
    %54 = tpu.matmul %53, %51, %cst_51 {dimension_numbers = #tpu.dot_dimension_numbers<[1], [0], [0], [1], [0, 0, 1, 1], [], []>} : vector<4x4xf32>, vector<4x384xf32>, vector<4x384xf32> -> vector<4x384xf32>
    %55 = arith.addf %49, %54 : vector<4x384xf32>
    %56 = vector.broadcast %0 : vector<4x1xf32> to vector<4x384xf32>
    %57 = arith.addf %55, %56 : vector<4x384xf32>
    %c0_52 = arith.constant 0 : index
    %c1_53 = arith.constant 1 : index
    %c0_54 = arith.constant 0 : index
    %c0_55 = arith.constant 0 : index
    %58 = vector.load %arg5[%c0_52, %c1_53, %c0_54, %c0_55] : memref<1x4x4x384xf32, #tpu.memory_space<vmem>>, vector<1x1x4x384xf32>
    %59 = vector.shape_cast %58 : vector<1x1x4x384xf32> to vector<4x384xf32>
    %60 = vector.shape_cast %57 : vector<4x384xf32> to vector<1x1x4x384xf32>
    tpu.vector_store %arg5[%c0_52, %c1_53, %c0_54, %c0_55], %60 {strides = array<i32>} : memref<1x4x4x384xf32, #tpu.memory_space<vmem>>, vector<1x1x4x384xf32>,
    %cst_56 = arith.constant 0.000000e+00 : f32
    %61 = vector.broadcast %cst_56 : f32 to vector<4x384xf32>
    %c0_57 = arith.constant 0 : index
    %c0_58 = arith.constant 0 : index
    %c18_59 = arith.constant 18 : index
    %62 = vector.load %arg2[%c0_57, %c0_58, %c18_59] : memref<1x4x422xf32, #tpu.memory_space<vmem>>, vector<1x4x384xf32>
    %63 = vector.shape_cast %62 : vector<1x4x384xf32> to vector<4x384xf32>
    %c8 = arith.constant 8 : index
    %c0_60 = arith.constant 0 : index
    %c0_61 = arith.constant 0 : index
    %64 = vector.load %arg3[%c8, %c0_60, %c0_61] : memref<16x4x4xf32, #tpu.memory_space<vmem>>, vector<1x4x4xf32>
    %65 = vector.shape_cast %64 : vector<1x4x4xf32> to vector<4x4xf32>
    %cst_62 = arith.constant dense<0.000000e+00> : vector<4x384xf32>
    %66 = tpu.matmul %65, %63, %cst_62 {dimension_numbers = #tpu.dot_dimension_numbers<[1], [0], [0], [1], [0, 0, 1, 1], [], []>} : vector<4x4xf32>, vector<4x384xf32>, vector<4x384xf32> -> vector<4x384xf32>
    %67 = arith.addf %61, %66 : vector<4x384xf32>
    %c0_63 = arith.constant 0 : index
    %c0_64 = arith.constant 0 : index
    %c19_65 = arith.constant 19 : index
    %68 = vector.load %arg2[%c0_63, %c0_64, %c19_65] : memref<1x4x422xf32, #tpu.memory_space<vmem>>, vector<1x4x384xf32>
    %69 = vector.shape_cast %68 : vector<1x4x384xf32> to vector<4x384xf32>
    %c9 = arith.constant 9 : index
    %c0_66 = arith.constant 0 : index
    %c0_67 = arith.constant 0 : index
    %70 = vector.load %arg3[%c9, %c0_66, %c0_67] : memref<16x4x4xf32, #tpu.memory_space<vmem>>, vector<1x4x4xf32>
    %71 = vector.shape_cast %70 : vector<1x4x4xf32> to vector<4x4xf32>
    %cst_68 = arith.constant dense<0.000000e+00> : vector<4x384xf32>
    %72 = tpu.matmul %71, %69, %cst_68 {dimension_numbers = #tpu.dot_dimension_numbers<[1], [0], [0], [1], [0, 0, 1, 1], [], []>} : vector<4x4xf32>, vector<4x384xf32>, vector<4x384xf32> -> vector<4x384xf32>
    %73 = arith.addf %67, %72 : vector<4x384xf32>
    %c0_69 = arith.constant 0 : index
    %c0_70 = arith.constant 0 : index
    %c36 = arith.constant 36 : index
    %74 = vector.load %arg2[%c0_69, %c0_70, %c36] : memref<1x4x422xf32, #tpu.memory_space<vmem>>, vector<1x4x384xf32>
    %75 = vector.shape_cast %74 : vector<1x4x384xf32> to vector<4x384xf32>
    %c10 = arith.constant 10 : index
    %c0_71 = arith.constant 0 : index
    %c0_72 = arith.constant 0 : index
    %76 = vector.load %arg3[%c10, %c0_71, %c0_72] : memref<16x4x4xf32, #tpu.memory_space<vmem>>, vector<1x4x4xf32>
    %77 = vector.shape_cast %76 : vector<1x4x4xf32> to vector<4x4xf32>
    %cst_73 = arith.constant dense<0.000000e+00> : vector<4x384xf32>
    %78 = tpu.matmul %77, %75, %cst_73 {dimension_numbers = #tpu.dot_dimension_numbers<[1], [0], [0], [1], [0, 0, 1, 1], [], []>} : vector<4x4xf32>, vector<4x384xf32>, vector<4x384xf32> -> vector<4x384xf32>
    %79 = arith.addf %73, %78 : vector<4x384xf32>
    %c0_74 = arith.constant 0 : index
    %c0_75 = arith.constant 0 : index
    %c37 = arith.constant 37 : index
    %80 = vector.load %arg2[%c0_74, %c0_75, %c37] : memref<1x4x422xf32, #tpu.memory_space<vmem>>, vector<1x4x384xf32>
    %81 = vector.shape_cast %80 : vector<1x4x384xf32> to vector<4x384xf32>
    %c11 = arith.constant 11 : index
    %c0_76 = arith.constant 0 : index
    %c0_77 = arith.constant 0 : index
    %82 = vector.load %arg3[%c11, %c0_76, %c0_77] : memref<16x4x4xf32, #tpu.memory_space<vmem>>, vector<1x4x4xf32>
    %83 = vector.shape_cast %82 : vector<1x4x4xf32> to vector<4x4xf32>
    %cst_78 = arith.constant dense<0.000000e+00> : vector<4x384xf32>
    %84 = tpu.matmul %83, %81, %cst_78 {dimension_numbers = #tpu.dot_dimension_numbers<[1], [0], [0], [1], [0, 0, 1, 1], [], []>} : vector<4x4xf32>, vector<4x384xf32>, vector<4x384xf32> -> vector<4x384xf32>
    %85 = arith.addf %79, %84 : vector<4x384xf32>
    %86 = vector.broadcast %0 : vector<4x1xf32> to vector<4x384xf32>
    %87 = arith.addf %85, %86 : vector<4x384xf32>
    %c0_79 = arith.constant 0 : index
    %c2_80 = arith.constant 2 : index
    %c0_81 = arith.constant 0 : index
    %c0_82 = arith.constant 0 : index
    %88 = vector.load %arg5[%c0_79, %c2_80, %c0_81, %c0_82] : memref<1x4x4x384xf32, #tpu.memory_space<vmem>>, vector<1x1x4x384xf32>
    %89 = vector.shape_cast %88 : vector<1x1x4x384xf32> to vector<4x384xf32>
    %90 = vector.shape_cast %87 : vector<4x384xf32> to vector<1x1x4x384xf32>
    tpu.vector_store %arg5[%c0_79, %c2_80, %c0_81, %c0_82], %90 {strides = array<i32>} : memref<1x4x4x384xf32, #tpu.memory_space<vmem>>, vector<1x1x4x384xf32>,
    %cst_83 = arith.constant 0.000000e+00 : f32
    %91 = vector.broadcast %cst_83 : f32 to vector<4x384xf32>
    %c0_84 = arith.constant 0 : index
    %c0_85 = arith.constant 0 : index
    %c19_86 = arith.constant 19 : index
    %92 = vector.load %arg2[%c0_84, %c0_85, %c19_86] : memref<1x4x422xf32, #tpu.memory_space<vmem>>, vector<1x4x384xf32>
    %93 = vector.shape_cast %92 : vector<1x4x384xf32> to vector<4x384xf32>
    %c12 = arith.constant 12 : index
    %c0_87 = arith.constant 0 : index
    %c0_88 = arith.constant 0 : index
    %94 = vector.load %arg3[%c12, %c0_87, %c0_88] : memref<16x4x4xf32, #tpu.memory_space<vmem>>, vector<1x4x4xf32>
    %95 = vector.shape_cast %94 : vector<1x4x4xf32> to vector<4x4xf32>
    %cst_89 = arith.constant dense<0.000000e+00> : vector<4x384xf32>
    %96 = tpu.matmul %95, %93, %cst_89 {dimension_numbers = #tpu.dot_dimension_numbers<[1], [0], [0], [1], [0, 0, 1, 1], [], []>} : vector<4x4xf32>, vector<4x384xf32>, vector<4x384xf32> -> vector<4x384xf32>
    %97 = arith.addf %91, %96 : vector<4x384xf32>
    %c0_90 = arith.constant 0 : index
    %c0_91 = arith.constant 0 : index
    %c20_92 = arith.constant 20 : index
    %98 = vector.load %arg2[%c0_90, %c0_91, %c20_92] : memref<1x4x422xf32, #tpu.memory_space<vmem>>, vector<1x4x384xf32>
    %99 = vector.shape_cast %98 : vector<1x4x384xf32> to vector<4x384xf32>
    %c13 = arith.constant 13 : index
    %c0_93 = arith.constant 0 : index
    %c0_94 = arith.constant 0 : index
    %100 = vector.load %arg3[%c13, %c0_93, %c0_94] : memref<16x4x4xf32, #tpu.memory_space<vmem>>, vector<1x4x4xf32>
    %101 = vector.shape_cast %100 : vector<1x4x4xf32> to vector<4x4xf32>
    %cst_95 = arith.constant dense<0.000000e+00> : vector<4x384xf32>
    %102 = tpu.matmul %101, %99, %cst_95 {dimension_numbers = #tpu.dot_dimension_numbers<[1], [0], [0], [1], [0, 0, 1, 1], [], []>} : vector<4x4xf32>, vector<4x384xf32>, vector<4x384xf32> -> vector<4x384xf32>
    %103 = arith.addf %97, %102 : vector<4x384xf32>
    %c0_96 = arith.constant 0 : index
    %c0_97 = arith.constant 0 : index
    %c37_98 = arith.constant 37 : index
    %104 = vector.load %arg2[%c0_96, %c0_97, %c37_98] : memref<1x4x422xf32, #tpu.memory_space<vmem>>, vector<1x4x384xf32>
    %105 = vector.shape_cast %104 : vector<1x4x384xf32> to vector<4x384xf32>
    %c14 = arith.constant 14 : index
    %c0_99 = arith.constant 0 : index
    %c0_100 = arith.constant 0 : index
    %106 = vector.load %arg3[%c14, %c0_99, %c0_100] : memref<16x4x4xf32, #tpu.memory_space<vmem>>, vector<1x4x4xf32>
    %107 = vector.shape_cast %106 : vector<1x4x4xf32> to vector<4x4xf32>
    %cst_101 = arith.constant dense<0.000000e+00> : vector<4x384xf32>
    %108 = tpu.matmul %107, %105, %cst_101 {dimension_numbers = #tpu.dot_dimension_numbers<[1], [0], [0], [1], [0, 0, 1, 1], [], []>} : vector<4x4xf32>, vector<4x384xf32>, vector<4x384xf32> -> vector<4x384xf32>
    %109 = arith.addf %103, %108 : vector<4x384xf32>
    %c0_102 = arith.constant 0 : index
    %c0_103 = arith.constant 0 : index
    %c38 = arith.constant 38 : index
    %110 = vector.load %arg2[%c0_102, %c0_103, %c38] : memref<1x4x422xf32, #tpu.memory_space<vmem>>, vector<1x4x384xf32>
    %111 = vector.shape_cast %110 : vector<1x4x384xf32> to vector<4x384xf32>
    %c15 = arith.constant 15 : index
    %c0_104 = arith.constant 0 : index
    %c0_105 = arith.constant 0 : index
    %112 = vector.load %arg3[%c15, %c0_104, %c0_105] : memref<16x4x4xf32, #tpu.memory_space<vmem>>, vector<1x4x4xf32>
    %113 = vector.shape_cast %112 : vector<1x4x4xf32> to vector<4x4xf32>
    %cst_106 = arith.constant dense<0.000000e+00> : vector<4x384xf32>
    %114 = tpu.matmul %113, %111, %cst_106 {dimension_numbers = #tpu.dot_dimension_numbers<[1], [0], [0], [1], [0, 0, 1, 1], [], []>} : vector<4x4xf32>, vector<4x384xf32>, vector<4x384xf32> -> vector<4x384xf32>
    %115 = arith.addf %109, %114 : vector<4x384xf32>
    %116 = vector.broadcast %0 : vector<4x1xf32> to vector<4x384xf32>
    %117 = arith.addf %115, %116 : vector<4x384xf32>
    %c0_107 = arith.constant 0 : index
    %c3_108 = arith.constant 3 : index
    %c0_109 = arith.constant 0 : index
    %c0_110 = arith.constant 0 : index
    %118 = vector.load %arg5[%c0_107, %c3_108, %c0_109, %c0_110] : memref<1x4x4x384xf32, #tpu.memory_space<vmem>>, vector<1x1x4x384xf32>
    %119 = vector.shape_cast %118 : vector<1x1x4x384xf32> to vector<4x384xf32>
    %120 = vector.shape_cast %117 : vector<4x384xf32> to vector<1x1x4x384xf32>
    tpu.vector_store %arg5[%c0_107, %c3_108, %c0_109, %c0_110], %120 {strides = array<i32>} : memref<1x4x4x384xf32, #tpu.memory_space<vmem>>, vector<1x1x4x384xf32>,
    return
  }
  func.func @transform_0(%arg0: i32, %arg1: i32) -> (i32, i32, i32) {
    %c0_i32 = arith.constant 0 : i32
    %c0_i32_0 = arith.constant 0 : i32
    %c0_i32_1 = arith.constant 0 : i32
    return %arg0, %c0_i32, %c0_i32_0 : i32, i32, i32
  }
  func.func @transform_1(%arg0: i32, %arg1: i32) -> (i32, i32, i32) {
    %c0_i32 = arith.constant 0 : i32
    %c0_i32_0 = arith.constant 0 : i32
    %c0_i32_1 = arith.constant 0 : i32
    return %c0_i32, %arg1, %c0_i32_0 : i32, i32, i32
  }
  func.func @transform_2(%arg0: i32, %arg1: i32) -> (i32, i32) {
    %c0_i32 = arith.constant 0 : i32
    %c0_i32_0 = arith.constant 0 : i32
    return %arg1, %c0_i32 : i32, i32
  }
  func.func @transform_3(%arg0: i32, %arg1: i32) -> (i32, i32, i32, i32) {
    %c0_i32 = arith.constant 0 : i32
    %c0_i32_0 = arith.constant 0 : i32
    %c0_i32_1 = arith.constant 0 : i32
    return %arg0, %c0_i32, %arg1, %c0_i32_0 : i32, i32, i32, i32
  }
}

</mosaic_0001>

<llo_original>
// kernel: tpu_custom_call.1
$region0: #{tpu_custom_call.1}
  #allocation0 [shape = 'u32[]', space=smem, size = 0x4, offset = 0x4, fixed_abs, tag = 'smem constant byte address 0x4 - core index']
  #allocation1 [shape = 'u32[144,128]{1,0:T(1,128)}', space=vmem, size = 0x12000, scoped, tag = 'internal scratch']
  %s0 = inlined_call_operand.vmem [shape: f32[2,4,422], index: 0, kind: input, shape index: {}]
  %s1 = inlined_call_operand.vmem [shape: f32[16,4,4], index: 1, kind: input, shape index: {}]
  %s2 = inlined_call_operand.vmem [shape: f32[4,1], index: 2, kind: input, shape index: {}]
  %s3 = inlined_call_operand.hbm [shape: f32[2,4,4,384], index: 3, kind: output, shape index: {}]
  %s4 = sld [smem:[#allocation0]]
  $region45: #{tpu_custom_call.1} parent=0
    _
  %s6 = ssub.s32 1, %s4
  %s7 = scalar_select 0, %s6, %s4
  $region1: #{tpu_custom_call.1} parent=0
    #allocation2 [shape = 'u8[49152]{0}', space=vmem, size = 0xc000, scoped, tag = 'output window, operand 0']
    #allocation3 [shape = 's32[2]{0}', space=sflag, size = 0x8, scoped, tag = 'scoped memory for tpu_custom_call.1']
    %8 = vsyncpa [#allocation3], 0
    %s9 = scalar_lea.sflag [#allocation3], 1
    %10 = vsyncpa %s9, 0
    loop: start=0, step=1, limit=4
    $region2: #{tpu_custom_call.1} parent=1 // loop_pre_header
      _
    $region3: #{tpu_custom_call.1} parent=1 // loop_header
      %s12 = sphi 0, %s16
      %p13 = scmp.ge.s32.totalorder %s12, 4
      %s19 = sphi 0, %s31
      %s20 = sphi 0, %s27
      %s21 = sphi 0, %s19
      %s22 = sphi 0, %s20
      %s23 = sphi 0, %s21
      %s24 = sphi 0, %s22
      %s34 = sphi 0, %s36
      %s37 = sphi 0, %s34
      %s38 = sphi 0, %s37
      %s54 = sphi 0, %s38
      %s60 = sphi 0, %s62
      %s63 = sphi 0, %s60
      %s64 = sphi 0, %s63
      %s80 = sphi 0, %s64
      %s86 = sphi 0, %s88
      %s89 = sphi 0, %s86
      %s90 = sphi 0, %s89
      %s106 = sphi 0, %s90
      %s114 = sphi 0, %s116
      %s117 = sphi 0, %s114
      %s118 = sphi 0, %s117
      %s134 = sphi 0, %s118
    $region4: #{tpu_custom_call.1} parent=1 // loop_header_branch
      %15 = sbr.rel (%p13) target = $region8
    $region5: #{tpu_custom_call.1} parent=1 // loop_body
      %s17 = ssub.s32 %s12, 1
      %s18 = ssub.s32 %s12, 2
      %s25 = sadd.s32 1, %s20
      %p26 = scmp.ge.s32.totalorder %s25, 1
      %s27 = scalar_select %p26, 0, %s25
      %s28 = sadd.s32 1, %s19
      %s29 = scalar_select %p26, %s28, %s19
      %p30 = scmp.ge.s32.totalorder %s29, 2
      %s31 = scalar_select %p30, 0, %s29
      %s32 = ssub.s32 %s19, %s31
      %p33 = scmp.eq.s32.totalorder %s32, 0
      %s35 = sadd.s32 %s34, 1
      %s36 = scalar_select %p33, %s34, %s35
      %p39 = pneg %p33
      %p40 = scmp.eq.s32.totalorder %s12, 1
      %p41 = por %p39, %p40
      %p42 = scmp.ne.s32.totalorder %s34, %s37
      %p43 = scmp.eq.s32.totalorder %s12, 0
      %p44 = por %p42, %p43
      %p45 = scmp.ne.s32.totalorder %s34, %s37
      %p46 = scmp.eq.s32.totalorder %s17, 1
      %p47 = por %p45, %p46
      %p48 = scmp.ne.s32.totalorder %s37, %s38
      %p49 = scmp.eq.s32.totalorder %s17, 0
      %p50 = por %p48, %p49
      %p51 = scmp.ne.s32.totalorder %s37, %s38
      %p52 = scmp.eq.s32.totalorder %s18, 1
      %p53 = por %p51, %p52
      %p55 = scmp.ne.s32.totalorder %s38, %s54
      %p56 = scmp.eq.s32.totalorder %s18, 0
      %p57 = por %p55, %p56
      %s58 = ssub.s32 %s20, %s27
      %p59 = scmp.eq.s32.totalorder %s58, 0
      %s61 = sadd.s32 %s60, 1
      %s62 = scalar_select %p59, %s60, %s61
      %p65 = pneg %p59
      %p66 = scmp.eq.s32.totalorder %s12, 1
      %p67 = por %p65, %p66
      %p68 = scmp.ne.s32.totalorder %s60, %s63
      %p69 = scmp.eq.s32.totalorder %s12, 0
      %p70 = por %p68, %p69
      %p71 = scmp.ne.s32.totalorder %s60, %s63
      %p72 = scmp.eq.s32.totalorder %s17, 1
      %p73 = por %p71, %p72
      %p74 = scmp.ne.s32.totalorder %s63, %s64
      %p75 = scmp.eq.s32.totalorder %s17, 0
      %p76 = por %p74, %p75
      %p77 = scmp.ne.s32.totalorder %s63, %s64
      %p78 = scmp.eq.s32.totalorder %s18, 1
      %p79 = por %p77, %p78
      %p81 = scmp.ne.s32.totalorder %s64, %s80
      %p82 = scmp.eq.s32.totalorder %s18, 0
      %p83 = por %p81, %p82
      %s84 = ssub.s32 %s20, %s27
      %p85 = scmp.eq.s32.totalorder %s84, 0
      %s87 = sadd.s32 %s86, 1
      %s88 = scalar_select %p85, %s86, %s87
      %p91 = pneg %p85
      %p92 = scmp.eq.s32.totalorder %s12, 1
      %p93 = por %p91, %p92
      %p94 = scmp.ne.s32.totalorder %s86, %s89
      %p95 = scmp.eq.s32.totalorder %s12, 0
      %p96 = por %p94, %p95
      %p97 = scmp.ne.s32.totalorder %s86, %s89
      %p98 = scmp.eq.s32.totalorder %s17, 1
      %p99 = por %p97, %p98
      %p100 = scmp.ne.s32.totalorder %s89, %s90
      %p101 = scmp.eq.s32.totalorder %s17, 0
      %p102 = por %p100, %p101
      %p103 = scmp.ne.s32.totalorder %s89, %s90
      %p104 = scmp.eq.s32.totalorder %s18, 1
      %p105 = por %p103, %p104
      %p107 = scmp.ne.s32.totalorder %s90, %s106
      %p108 = scmp.eq.s32.totalorder %s18, 0
      %p109 = por %p107, %p108
      %s110 = ssub.s32 %s19, %s31
      %s111 = ssub.s32 %s20, %s27
      %s112 = sor.u32 %s110, %s111
      %p113 = scmp.eq.s32.totalorder %s112, 0
      %s115 = sadd.s32 %s114, 1
      %s116 = scalar_select %p113, %s114, %s115
      %p119 = pneg %p113
      %p120 = scmp.eq.s32.totalorder %s12, 1
      %p121 = por %p119, %p120
      %p122 = scmp.ne.s32.totalorder %s114, %s117
      %p123 = scmp.eq.s32.totalorder %s12, 0
      %p124 = por %p122, %p123
      %p125 = scmp.ne.s32.totalorder %s114, %s117
      %p126 = scmp.eq.s32.totalorder %s17, 1
      %p127 = por %p125, %p126
      %p128 = scmp.ne.s32.totalorder %s117, %s118
      %p129 = scmp.eq.s32.totalorder %s17, 0
      %p130 = por %p128, %p129
      %p131 = scmp.ne.s32.totalorder %s117, %s118
      %p132 = scmp.eq.s32.totalorder %s18, 1
      %p133 = por %p131, %p132
      %p135 = scmp.ne.s32.totalorder %s118, %s134
      %p136 = scmp.eq.s32.totalorder %s18, 0
      %p137 = por %p135, %p136
      %p138 = scmp.le.s32.totalorder 1, %s12
      %p139 = scmp.lt.s32.totalorder %s12, 3
      %p140 = pnand %p138, %p139
      %p141 = pneg %p140
      // Predicated region
      $region9: #{tpu_custom_call.1} parent=5 // pred_check
        _
      $region10: #{tpu_custom_call.1} parent=5 // pred_check_branch
        %143 = sbr.rel (%p140) target = $region12
      $region11: #{tpu_custom_call.1} parent=5 // pred_region
        %s144 = ssub.s32 %s12, 1
        // Predicated region
        $region13: #{tpu_custom_call.1} parent=11 // pred_check
          %p145 = pneg %p76
        $region14: #{tpu_custom_call.1} parent=11 // pred_check_branch
          %147 = sbr.rel (%p145) target = $region16
        $region15: #{tpu_custom_call.1} parent=11 // pred_region
          %p148 = scmp.lt.s32.totalorder %s22, 0
          %s149 = scalar_select %p148, %s22, 0
          %s150 = smul.addr %s149, 4
          %s151 = scalar_lea.vmem %s1, %s150
        $region16: #{tpu_custom_call.1} parent=11 // pred_fallthru
          _
        // Predicated region
        $region17: #{tpu_custom_call.1} parent=11 // pred_check
          %p152 = pneg %p102
        $region18: #{tpu_custom_call.1} parent=11 // pred_check_branch
          %154 = sbr.rel (%p152) target = $region20
        $region19: #{tpu_custom_call.1} parent=11 // pred_region
          %p155 = scmp.lt.s32.totalorder %s22, 0
          %s156 = scalar_select %p155, %s22, 0
          %s157 = smul.addr %s156, 4
          %s158 = scalar_lea.vmem %s2, %s157
        $region20: #{tpu_custom_call.1} parent=11 // pred_fallthru
          _
      $region12: #{tpu_custom_call.1} parent=5 // pred_fallthru
        _
      %p159 = scmp.lt.s32.totalorder %s12, 2
      // Predicated region
      $region21: #{tpu_custom_call.1} parent=5 // pred_check
        %p160 = pneg %p159
      $region22: #{tpu_custom_call.1} parent=5 // pred_check_branch
        %162 = sbr.rel (%p160) target = $region24
      $region23: #{tpu_custom_call.1} parent=5 // pred_region
        // Predicated region
        $region25: #{tpu_custom_call.1} parent=23 // pred_check
          %p163 = pneg %p44
        $region26: #{tpu_custom_call.1} parent=23 // pred_check_branch
          %165 = sbr.rel (%p163) target = $region28
        $region27: #{tpu_custom_call.1} parent=23 // pred_region
          %p166 = scmp.lt.s32.totalorder %s19, 1
          %s167 = scalar_select %p166, %s19, 1
          %s168 = smul.addr %s167, 4
          %s169 = smul.addr %s168, 4
          %s170 = scalar_lea.vmem %s0, %s169
        $region28: #{tpu_custom_call.1} parent=23 // pred_fallthru
          _
      $region24: #{tpu_custom_call.1} parent=5 // pred_fallthru
        _
      %p171 = scmp.le.s32.totalorder 1, %s12
      %p172 = scmp.lt.s32.totalorder %s12, 3
      %p173 = pnand %p171, %p172
      %p174 = pneg %p173
      // Predicated region
      $region29: #{tpu_custom_call.1} parent=5 // pred_check
        _
      $region30: #{tpu_custom_call.1} parent=5 // pred_check_branch
        %176 = sbr.rel (%p173) target = $region32
      $region31: #{tpu_custom_call.1} parent=5 // pred_region
        %s177 = ssub.s32 %s12, 1
        %p178 = scmp.lt.s32.totalorder %s21, 1
        %s179 = scalar_select %p178, %s21, 1
        %s180 = smul.addr %s179, 4
        %s181 = smul.addr %s180, 4
        %s182 = scalar_lea.vmem %s0, %s181
        %p183 = pneg %p50
        %p184 = pneg %p47
        %p185 = scmp.lt.s32.totalorder %s22, 0
        %s186 = scalar_select %p185, %s22, 0
        %s187 = smul.addr %s186, 4
        %s188 = scalar_lea.vmem %s1, %s187
        %p189 = pneg %p76
        %p190 = pneg %p73
        %p191 = scmp.lt.s32.totalorder %s22, 0
        %s192 = scalar_select %p191, %s22, 0
        %s193 = smul.addr %s192, 4
        %s194 = scalar_lea.vmem %s2, %s193
        %p195 = pneg %p102
        %p196 = pneg %p99
        %p197 = pneg %p130
        %p198 = pneg %p127
        %s199 = sand.u32 %s117, 1
        %s200 = scalar_lea.sflag [#allocation3], %s199
        %s201 = sand.u32 %s117, 1
        %s202 = smul.addr %s201, 48
        %s203 = scalar_lea.vmem [#allocation2], %s202
        %p204 = scmp.lt.s32.totalorder %s21, 1
        %s205 = scalar_select %p204, %s21, 1
        %s206 = smul.addr %s205, 4
        %s207 = smul.addr %s206, 4
        %s208 = scalar_lea.vmem %s0, %s207
        %p209 = scmp.lt.s32.totalorder %s22, 0
        %s210 = scalar_select %p209, %s22, 0
        %s211 = smul.addr %s210, 4
        %s212 = scalar_lea.vmem %s1, %s211
        %p213 = scmp.lt.s32.totalorder %s22, 0
        %s214 = scalar_select %p213, %s22, 0
        %s215 = smul.addr %s214, 4
        %s216 = scalar_lea.vmem %s2, %s215
        %v217 = vld [vmem:[%s216] sm:$0xf]
        %v218 = vld [vmem:[%s208] sm:$0xff]
        %v219 = vld [vmem:[%s208 + $0x8] sm:$0xf]
        %v220 = vld [vmem:[%s212] sm:$0xf]
        %v221 = vld [vmem:[%s208 + $0x8] sm:$0xff]
        %s222 = scalar_lea.vmem %s212, 4
        %v223 = vld [vmem:[%s222] sm:$0xf]
        %v226 = vcombine.high %v218, %v218
        %v227 = vcombine.high %v221, %v221
        %228 = vrot.lane.b32.xlu0 %v218, 127
        %v229 = vpop.permute.xlu0 %228
        %230 = vrot.lane.b32.xlu0 %v226, 127
        %v231 = vpop.permute.xlu0 %230
        %232 = vrot.lane.b32.xlu0 %v221, 127
        %v233 = vpop.permute.xlu0 %232
        %234 = vrot.lane.b32.xlu0 %v227, 127
        %v235 = vpop.permute.xlu0 %234
        %vm236 = vcmask 1039360
        %v237 = vsel %vm236, %v229, %v231
        %v238 = vsel %vm236, %v231, %v233
        %v239 = vsel %vm236, %v233, %v235
        %vm240 = vcmask 31744
        %v242 = vsel %vm240, %v223, 0
        %vm244 = vcmask 1043456
        %v245 = vsel %vm244, %v237, 0
        %v247 = vsel %vm244, %v238, 0
        %v249 = vsel %vm244, %v239, 0
        %251 = vmatprep.subr.mxu0 %v247
        %252 = vmatpush1.msra.mxu0 %v245
        %253 = vmatprep.subr.mxu0 0.0
        %254 = vmatpush1.msra.mxu0 0.0
        %255 = vmatprep.subr.mxu0 0.0
        %256 = vmatpush1.msra.mxu0 0.0
        %257 = vmatprep.subr.mxu0 0.0
        %258 = vmatpush1.msra.mxu0 0.0
        %259 = vmatprep.subr.mxu0 0.0
        %260 = vmatpush1.msra.mxu0 0.0
        %261 = vmatprep.subr.mxu0 0.0
        %262 = vmatpush1.msra.mxu0 0.0
        %263 = vmatprep.subr.mxu0 0.0
        %264 = vmatpush1.msra.mxu0 0.0
        %265 = vmatprep.subr.mxu0 0.0
        %266 = vmatpush1.msra.mxu0 0.0
        %267 = vmatprep.subr.mxu0 0.0
        %268 = vmatpush1.msra.mxu0 0.0
        %269 = vmatprep.subr.mxu0 0.0
        %270 = vmatpush1.msra.mxu0 0.0
        %271 = vmatprep.subr.mxu0 0.0
        %272 = vmatpush1.msra.mxu0 0.0
        %273 = vmatprep.subr.mxu0 0.0
        %274 = vmatpush1.msra.mxu0 0.0
        %275 = vmatprep.subr.mxu0 0.0
        %276 = vmatpush1.msra.mxu0 0.0
        %277 = vmatprep.subr.mxu0 0.0
        %278 = vmatpush1.msra.mxu0 0.0
        %279 = vmatprep.subr.mxu0 0.0
        %280 = vmatpush1.msra.mxu0 0.0
        %281 = vmatprep.subr.mxu0 0.0
        %282 = vmatpush1.msra.mxu0 0.0
        %283 = vmatprep.subr.mxu0 0.0
        %284 = vmatpush1.msra.mxu0 0.0
        %285 = vmatprep.subr.mxu0 0.0
        %286 = vmatpush1.msra.mxu0 0.0
        %287 = vmatprep.subr.mxu0 0.0
        %288 = vmatpush1.msra.mxu0 0.0
        %289 = vmatprep.subr.mxu0 0.0
        %290 = vmatpush1.msra.mxu0 0.0
        %291 = vmatprep.subr.mxu0 0.0
        %292 = vmatpush1.msra.mxu0 0.0
        %293 = vmatprep.subr.mxu0 0.0
        %294 = vmatpush1.msra.mxu0 0.0
        %295 = vmatprep.subr.mxu0 0.0
        %296 = vmatpush1.msra.mxu0 0.0
        %297 = vmatprep.subr.mxu0 0.0
        %298 = vmatpush1.msra.mxu0 0.0
        %299 = vmatprep.subr.mxu0 0.0
        %300 = vmatpush1.msra.mxu0 0.0
        %301 = vmatprep.subr.mxu0 0.0
        %302 = vmatpush1.msra.mxu0 0.0
        %303 = vmatprep.subr.mxu0 0.0
        %304 = vmatpush1.msra.mxu0 0.0
        %305 = vmatprep.subr.mxu0 0.0
        %306 = vmatpush1.msra.mxu0 0.0
        %307 = vmatprep.subr.mxu0 0.0
        %308 = vmatpush1.msra.mxu0 0.0
        %309 = vmatprep.subr.mxu0 0.0
        %310 = vmatpush1.msra.mxu0 0.0
        %311 = vmatprep.subr.mxu0 0.0
        %312 = vmatpush1.msra.mxu0 0.0
        %313 = vmatprep.subr.mxu0 0.0
        %314 = vmatpush1.msra.mxu0 0.0
        %315 = vmatprep.mubr.f32.mxu0 0.0
        %316 = vmatmul.mubr.f32.gmra.mrb[0].mxu0 %v242
        %v317 = vpop.f32.mrb[0].mxu0
        %v318 = vadd.f32 0.0, %v317
        %v319 = vpop.f32.mrb[0].mxu0
        %v320 = vadd.f32 0.0, %v319
        %321 = vdwg.mxu0
        %322 = vmatprep.subr.mxu0 0.0
        %323 = vmatpush1.msra.mxu0 %v249
        %324 = vmatprep.subr.mxu0 0.0
        %325 = vmatpush1.msra.mxu0 0.0
        %326 = vmatprep.subr.mxu0 0.0
        %327 = vmatpush1.msra.mxu0 0.0
        %328 = vmatprep.subr.mxu0 0.0
        %329 = vmatpush1.msra.mxu0 0.0
        %330 = vmatprep.subr.mxu0 0.0
        %331 = vmatpush1.msra.mxu0 0.0
        %332 = vmatprep.subr.mxu0 0.0
        %333 = vmatpush1.msra.mxu0 0.0
        %334 = vmatprep.subr.mxu0 0.0
        %335 = vmatpush1.msra.mxu0 0.0
        %336 = vmatprep.subr.mxu0 0.0
        %337 = vmatpush1.msra.mxu0 0.0
        %338 = vmatprep.subr.mxu0 0.0
        %339 = vmatpush1.msra.mxu0 0.0
        %340 = vmatprep.subr.mxu0 0.0
        %341 = vmatpush1.msra.mxu0 0.0
        %342 = vmatprep.subr.mxu0 0.0
        %343 = vmatpush1.msra.mxu0 0.0
        %344 = vmatprep.subr.mxu0 0.0
        %345 = vmatpush1.msra.mxu0 0.0
        %346 = vmatprep.subr.mxu0 0.0
        %347 = vmatpush1.msra.mxu0 0.0
        %348 = vmatprep.subr.mxu0 0.0
        %349 = vmatpush1.msra.mxu0 0.0
        %350 = vmatprep.subr.mxu0 0.0
        %351 = vmatpush1.msra.mxu0 0.0
        %352 = vmatprep.subr.mxu0 0.0
        %353 = vmatpush1.msra.mxu0 0.0
        %354 = vmatprep.subr.mxu0 0.0
        %355 = vmatpush1.msra.mxu0 0.0
        %356 = vmatprep.subr.mxu0 0.0
        %357 = vmatpush1.msra.mxu0 0.0
        %358 = vmatprep.subr.mxu0 0.0
        %359 = vmatpush1.msra.mxu0 0.0
        %360 = vmatprep.subr.mxu0 0.0
        %361 = vmatpush1.msra.mxu0 0.0
        %362 = vmatprep.subr.mxu0 0.0
        %363 = vmatpush1.msra.mxu0 0.0
        %364 = vmatprep.subr.mxu0 0.0
        %365 = vmatpush1.msra.mxu0 0.0
        %366 = vmatprep.subr.mxu0 0.0
        %367 = vmatpush1.msra.mxu0 0.0
        %368 = vmatprep.subr.mxu0 0.0
        %369 = vmatpush1.msra.mxu0 0.0
        %370 = vmatprep.subr.mxu0 0.0
        %371 = vmatpush1.msra.mxu0 0.0
        %372 = vmatprep.subr.mxu0 0.0
        %373 = vmatpush1.msra.mxu0 0.0
        %374 = vmatprep.subr.mxu0 0.0
        %375 = vmatpush1.msra.mxu0 0.0
        %376 = vmatprep.subr.mxu0 0.0
        %377 = vmatpush1.msra.mxu0 0.0
        %378 = vmatprep.subr.mxu0 0.0
        %379 = vmatpush1.msra.mxu0 0.0
        %380 = vmatprep.subr.mxu0 0.0
        %381 = vmatpush1.msra.mxu0 0.0
        %382 = vmatprep.subr.mxu0 0.0
        %383 = vmatpush1.msra.mxu0 0.0
        %384 = vmatprep.subr.mxu0 0.0
        %385 = vmatpush1.msra.mxu0 0.0
        %386 = vmatprep.mubr.f32.mxu0 0.0
        %387 = vmatmul.mubr.f32.gmra.mrb[0].mxu0 %v242
        %v388 = vpop.f32.mrb[0].mxu0
        %v389 = vadd.f32 0.0, %v388
        %v390 = vpop.f32.mrb[0].mxu0
        %391 = vdwg.mxu0
        %v394 = vsel %vm240, %v220, 0
        %v396 = vsel %vm244, %v218, 0
        %v398 = vsel %vm244, %v226, 0
        %v400 = vsel %vm244, %v219, 0
        %402 = vmatprep.subr.mxu0 %v398
        %403 = vmatpush1.msra.mxu0 %v396
        %404 = vmatprep.subr.mxu0 0.0
        %405 = vmatpush1.msra.mxu0 0.0
        %406 = vmatprep.subr.mxu0 0.0
        %407 = vmatpush1.msra.mxu0 0.0
        %408 = vmatprep.subr.mxu0 0.0
        %409 = vmatpush1.msra.mxu0 0.0
        %410 = vmatprep.subr.mxu0 0.0
        %411 = vmatpush1.msra.mxu0 0.0
        %412 = vmatprep.subr.mxu0 0.0
        %413 = vmatpush1.msra.mxu0 0.0
        %414 = vmatprep.subr.mxu0 0.0
        %415 = vmatpush1.msra.mxu0 0.0
        %416 = vmatprep.subr.mxu0 0.0
        %417 = vmatpush1.msra.mxu0 0.0
        %418 = vmatprep.subr.mxu0 0.0
        %419 = vmatpush1.msra.mxu0 0.0
        %420 = vmatprep.subr.mxu0 0.0
        %421 = vmatpush1.msra.mxu0 0.0
        %422 = vmatprep.subr.mxu0 0.0
        %423 = vmatpush1.msra.mxu0 0.0
        %424 = vmatprep.subr.mxu0 0.0
        %425 = vmatpush1.msra.mxu0 0.0
        %426 = vmatprep.subr.mxu0 0.0
        %427 = vmatpush1.msra.mxu0 0.0
        %428 = vmatprep.subr.mxu0 0.0
        %429 = vmatpush1.msra.mxu0 0.0
        %430 = vmatprep.subr.mxu0 0.0
        %431 = vmatpush1.msra.mxu0 0.0
        %432 = vmatprep.subr.mxu0 0.0
        %433 = vmatpush1.msra.mxu0 0.0
        %434 = vmatprep.subr.mxu0 0.0
        %435 = vmatpush1.msra.mxu0 0.0
        %436 = vmatprep.subr.mxu0 0.0
        %437 = vmatpush1.msra.mxu0 0.0
        %438 = vmatprep.subr.mxu0 0.0
        %439 = vmatpush1.msra.mxu0 0.0
        %440 = vmatprep.subr.mxu0 0.0
        %441 = vmatpush1.msra.mxu0 0.0
        %442 = vmatprep.subr.mxu0 0.0
        %443 = vmatpush1.msra.mxu0 0.0
        %444 = vmatprep.subr.mxu0 0.0
        %445 = vmatpush1.msra.mxu0 0.0
        %446 = vmatprep.subr.mxu0 0.0
        %447 = vmatpush1.msra.mxu0 0.0
        %448 = vmatprep.subr.mxu0 0.0
        %449 = vmatpush1.msra.mxu0 0.0
        %450 = vmatprep.subr.mxu0 0.0
        %451 = vmatpush1.msra.mxu0 0.0
        %452 = vmatprep.subr.mxu0 0.0
        %453 = vmatpush1.msra.mxu0 0.0
        %454 = vmatprep.subr.mxu0 0.0
        %455 = vmatpush1.msra.mxu0 0.0
        %456 = vmatprep.subr.mxu0 0.0
        %457 = vmatpush1.msra.mxu0 0.0
        %458 = vmatprep.subr.mxu0 0.0
        %459 = vmatpush1.msra.mxu0 0.0
        %460 = vmatprep.subr.mxu0 0.0
        %461 = vmatpush1.msra.mxu0 0.0
        %462 = vmatprep.subr.mxu0 0.0
        %463 = vmatpush1.msra.mxu0 0.0
        %464 = vmatprep.subr.mxu0 0.0
        %465 = vmatpush1.msra.mxu0 0.0
        %466 = vmatprep.mubr.f32.mxu0 0.0
        %467 = vmatmul.mubr.f32.gmra.mrb[0].mxu0 %v394
        %v468 = vpop.f32.mrb[0].mxu0
        %v469 = vadd.f32 %v318, %v468
        %v470 = vpop.f32.mrb[0].mxu0
        %v471 = vadd.f32 %v320, %v470
        %472 = vdwg.mxu0
        %473 = vmatprep.subr.mxu0 0.0
        %474 = vmatpush1.msra.mxu0 %v400
        %475 = vmatprep.subr.mxu0 0.0
        %476 = vmatpush1.msra.mxu0 0.0
        %477 = vmatprep.subr.mxu0 0.0
        %478 = vmatpush1.msra.mxu0 0.0
        %479 = vmatprep.subr.mxu0 0.0
        %480 = vmatpush1.msra.mxu0 0.0
        %481 = vmatprep.subr.mxu0 0.0
        %482 = vmatpush1.msra.mxu0 0.0
        %483 = vmatprep.subr.mxu0 0.0
        %484 = vmatpush1.msra.mxu0 0.0
        %485 = vmatprep.subr.mxu0 0.0
        %486 = vmatpush1.msra.mxu0 0.0
        %487 = vmatprep.subr.mxu0 0.0
        %488 = vmatpush1.msra.mxu0 0.0
        %489 = vmatprep.subr.mxu0 0.0
        %490 = vmatpush1.msra.mxu0 0.0
        %491 = vmatprep.subr.mxu0 0.0
        %492 = vmatpush1.msra.mxu0 0.0
        %493 = vmatprep.subr.mxu0 0.0
        %494 = vmatpush1.msra.mxu0 0.0
        %495 = vmatprep.subr.mxu0 0.0
        %496 = vmatpush1.msra.mxu0 0.0
        %497 = vmatprep.subr.mxu0 0.0
        %498 = vmatpush1.msra.mxu0 0.0
        %499 = vmatprep.subr.mxu0 0.0
        %500 = vmatpush1.msra.mxu0 0.0
        %501 = vmatprep.subr.mxu0 0.0
        %502 = vmatpush1.msra.mxu0 0.0
        %503 = vmatprep.subr.mxu0 0.0
        %504 = vmatpush1.msra.mxu0 0.0
        %505 = vmatprep.subr.mxu0 0.0
        %506 = vmatpush1.msra.mxu0 0.0
        %507 = vmatprep.subr.mxu0 0.0
        %508 = vmatpush1.msra.mxu0 0.0
        %509 = vmatprep.subr.mxu0 0.0
        %510 = vmatpush1.msra.mxu0 0.0
        %511 = vmatprep.subr.mxu0 0.0
        %512 = vmatpush1.msra.mxu0 0.0
        %513 = vmatprep.subr.mxu0 0.0
        %514 = vmatpush1.msra.mxu0 0.0
        %515 = vmatprep.subr.mxu0 0.0
        %516 = vmatpush1.msra.mxu0 0.0
        %517 = vmatprep.subr.mxu0 0.0
        %518 = vmatpush1.msra.mxu0 0.0
        %519 = vmatprep.subr.mxu0 0.0
        %520 = vmatpush1.msra.mxu0 0.0
        %521 = vmatprep.subr.mxu0 0.0
        %522 = vmatpush1.msra.mxu0 0.0
        %523 = vmatprep.subr.mxu0 0.0
        %524 = vmatpush1.msra.mxu0 0.0
        %525 = vmatprep.subr.mxu0 0.0
        %526 = vmatpush1.msra.mxu0 0.0
        %527 = vmatprep.subr.mxu0 0.0
        %528 = vmatpush1.msra.mxu0 0.0
        %529 = vmatprep.subr.mxu0 0.0
        %530 = vmatpush1.msra.mxu0 0.0
        %531 = vmatprep.subr.mxu0 0.0
        %532 = vmatpush1.msra.mxu0 0.0
        %533 = vmatprep.subr.mxu0 0.0
        %534 = vmatpush1.msra.mxu0 0.0
        %535 = vmatprep.subr.mxu0 0.0
        %536 = vmatpush1.msra.mxu0 0.0
        %537 = vmatprep.mubr.f32.mxu0 0.0
        %538 = vmatmul.mubr.f32.gmra.mrb[0].mxu0 %v394
        %v539 = vpop.f32.mrb[0].mxu0
        %v540 = vadd.f32 %v389, %v539
        %v541 = vpop.f32.mrb[0].mxu0
        %542 = vdwg.mxu0
        %v543 = vld [vmem:[%s208] sm:$0xff]
        %v544 = vld [vmem:[%s208 + $0x8] sm:$0xff]
        %s545 = scalar_lea.vmem %s212, 8
        %v546 = vld [vmem:[%s545] sm:$0xf]
        %v549 = vcombine.high %v543, %v543
        %v550 = vcombine.high %v544, %v544
        %551 = vrot.lane.b32.xlu0 %v543, 110
        %v552 = vpop.permute.xlu0 %551
        %553 = vrot.lane.b32.xlu0 %v549, 110
        %v554 = vpop.permute.xlu0 %553
        %555 = vrot.lane.b32.xlu0 %v544, 110
        %v556 = vpop.permute.xlu0 %555
        %557 = vrot.lane.b32.xlu0 %v550, 110
        %v558 = vpop.permute.xlu0 %557
        %vm559 = vcmask 900096
        %v560 = vsel %vm559, %v552, %v554
        %v561 = vsel %vm559, %v554, %v556
        %v562 = vsel %vm559, %v556, %v558
        %v564 = vsel %vm240, %v546, 0
        %v566 = vsel %vm244, %v560, 0
        %v568 = vsel %vm244, %v561, 0
        %v570 = vsel %vm244, %v562, 0
        %572 = vmatprep.subr.mxu0 %v568
        %573 = vmatpush1.msra.mxu0 %v566
        %574 = vmatprep.subr.mxu0 0.0
        %575 = vmatpush1.msra.mxu0 0.0
        %576 = vmatprep.subr.mxu0 0.0
        %577 = vmatpush1.msra.mxu0 0.0
        %578 = vmatprep.subr.mxu0 0.0
        %579 = vmatpush1.msra.mxu0 0.0
        %580 = vmatprep.subr.mxu0 0.0
        %581 = vmatpush1.msra.mxu0 0.0
        %582 = vmatprep.subr.mxu0 0.0
        %583 = vmatpush1.msra.mxu0 0.0
        %584 = vmatprep.subr.mxu0 0.0
        %585 = vmatpush1.msra.mxu0 0.0
        %586 = vmatprep.subr.mxu0 0.0
        %587 = vmatpush1.msra.mxu0 0.0
        %588 = vmatprep.subr.mxu0 0.0
        %589 = vmatpush1.msra.mxu0 0.0
        %590 = vmatprep.subr.mxu0 0.0
        %591 = vmatpush1.msra.mxu0 0.0
        %592 = vmatprep.subr.mxu0 0.0
        %593 = vmatpush1.msra.mxu0 0.0
        %594 = vmatprep.subr.mxu0 0.0
        %595 = vmatpush1.msra.mxu0 0.0
        %596 = vmatprep.subr.mxu0 0.0
        %597 = vmatpush1.msra.mxu0 0.0
        %598 = vmatprep.subr.mxu0 0.0
        %599 = vmatpush1.msra.mxu0 0.0
        %600 = vmatprep.subr.mxu0 0.0
        %601 = vmatpush1.msra.mxu0 0.0
        %602 = vmatprep.subr.mxu0 0.0
        %603 = vmatpush1.msra.mxu0 0.0
        %604 = vmatprep.subr.mxu0 0.0
        %605 = vmatpush1.msra.mxu0 0.0
        %606 = vmatprep.subr.mxu0 0.0
        %607 = vmatpush1.msra.mxu0 0.0
        %608 = vmatprep.subr.mxu0 0.0
        %609 = vmatpush1.msra.mxu0 0.0
        %610 = vmatprep.subr.mxu0 0.0
        %611 = vmatpush1.msra.mxu0 0.0
        %612 = vmatprep.subr.mxu0 0.0
        %613 = vmatpush1.msra.mxu0 0.0
        %614 = vmatprep.subr.mxu0 0.0
        %615 = vmatpush1.msra.mxu0 0.0
        %616 = vmatprep.subr.mxu0 0.0
        %617 = vmatpush1.msra.mxu0 0.0
        %618 = vmatprep.subr.mxu0 0.0
        %619 = vmatpush1.msra.mxu0 0.0
        %620 = vmatprep.subr.mxu0 0.0
        %621 = vmatpush1.msra.mxu0 0.0
        %622 = vmatprep.subr.mxu0 0.0
        %623 = vmatpush1.msra.mxu0 0.0
        %624 = vmatprep.subr.mxu0 0.0
        %625 = vmatpush1.msra.mxu0 0.0
        %626 = vmatprep.subr.mxu0 0.0
        %627 = vmatpush1.msra.mxu0 0.0
        %628 = vmatprep.subr.mxu0 0.0
        %629 = vmatpush1.msra.mxu0 0.0
        %630 = vmatprep.subr.mxu0 0.0
        %631 = vmatpush1.msra.mxu0 0.0
        %632 = vmatprep.subr.mxu0 0.0
        %633 = vmatpush1.msra.mxu0 0.0
        %634 = vmatprep.subr.mxu0 0.0
        %635 = vmatpush1.msra.mxu0 0.0
        %636 = vmatprep.mubr.f32.mxu0 0.0
        %637 = vmatmul.mubr.f32.gmra.mrb[0].mxu0 %v564
        %v638 = vpop.f32.mrb[0].mxu0
        %v639 = vadd.f32 0.0, %v638
        %v640 = vpop.f32.mrb[0].mxu0
        %v641 = vadd.f32 0.0, %v640
        %642 = vdwg.mxu0
        %643 = vmatprep.subr.mxu0 0.0
        %644 = vmatpush1.msra.mxu0 %v570
        %645 = vmatprep.subr.mxu0 0.0
        %646 = vmatpush1.msra.mxu0 0.0
        %647 = vmatprep.subr.mxu0 0.0
        %648 = vmatpush1.msra.mxu0 0.0
        %649 = vmatprep.subr.mxu0 0.0
        %650 = vmatpush1.msra.mxu0 0.0
        %651 = vmatprep.subr.mxu0 0.0
        %652 = vmatpush1.msra.mxu0 0.0
        %653 = vmatprep.subr.mxu0 0.0
        %654 = vmatpush1.msra.mxu0 0.0
        %655 = vmatprep.subr.mxu0 0.0
        %656 = vmatpush1.msra.mxu0 0.0
        %657 = vmatprep.subr.mxu0 0.0
        %658 = vmatpush1.msra.mxu0 0.0
        %659 = vmatprep.subr.mxu0 0.0
        %660 = vmatpush1.msra.mxu0 0.0
        %661 = vmatprep.subr.mxu0 0.0
        %662 = vmatpush1.msra.mxu0 0.0
        %663 = vmatprep.subr.mxu0 0.0
        %664 = vmatpush1.msra.mxu0 0.0
        %665 = vmatprep.subr.mxu0 0.0
        %666 = vmatpush1.msra.mxu0 0.0
        %667 = vmatprep.subr.mxu0 0.0
        %668 = vmatpush1.msra.mxu0 0.0
        %669 = vmatprep.subr.mxu0 0.0
        %670 = vmatpush1.msra.mxu0 0.0
        %671 = vmatprep.subr.mxu0 0.0
        %672 = vmatpush1.msra.mxu0 0.0
        %673 = vmatprep.subr.mxu0 0.0
        %674 = vmatpush1.msra.mxu0 0.0
        %675 = vmatprep.subr.mxu0 0.0
        %676 = vmatpush1.msra.mxu0 0.0
        %677 = vmatprep.subr.mxu0 0.0
        %678 = vmatpush1.msra.mxu0 0.0
        %679 = vmatprep.subr.mxu0 0.0
        %680 = vmatpush1.msra.mxu0 0.0
        %681 = vmatprep.subr.mxu0 0.0
        %682 = vmatpush1.msra.mxu0 0.0
        %683 = vmatprep.subr.mxu0 0.0
        %684 = vmatpush1.msra.mxu0 0.0
        %685 = vmatprep.subr.mxu0 0.0
        %686 = vmatpush1.msra.mxu0 0.0
        %687 = vmatprep.subr.mxu0 0.0
        %688 = vmatpush1.msra.mxu0 0.0
        %689 = vmatprep.subr.mxu0 0.0
        %690 = vmatpush1.msra.mxu0 0.0
        %691 = vmatprep.subr.mxu0 0.0
        %692 = vmatpush1.msra.mxu0 0.0
        %693 = vmatprep.subr.mxu0 0.0
        %694 = vmatpush1.msra.mxu0 0.0
        %695 = vmatprep.subr.mxu0 0.0
        %696 = vmatpush1.msra.mxu0 0.0
        %697 = vmatprep.subr.mxu0 0.0
        %698 = vmatpush1.msra.mxu0 0.0
        %699 = vmatprep.subr.mxu0 0.0
        %700 = vmatpush1.msra.mxu0 0.0
        %701 = vmatprep.subr.mxu0 0.0
        %702 = vmatpush1.msra.mxu0 0.0
        %703 = vmatprep.subr.mxu0 0.0
        %704 = vmatpush1.msra.mxu0 0.0
        %705 = vmatprep.subr.mxu0 0.0
        %706 = vmatpush1.msra.mxu0 0.0
        %707 = vmatprep.mubr.f32.mxu0 0.0
        %708 = vmatmul.mubr.f32.gmra.mrb[0].mxu0 %v564
        %v709 = vpop.f32.mrb[0].mxu0
        %v710 = vadd.f32 0.0, %v709
        %v711 = vpop.f32.mrb[0].mxu0
        %712 = vdwg.mxu0
        %v713 = vadd.f32 %v469, %v639
        %v714 = vadd.f32 %v471, %v641
        %v715 = vadd.f32 %v540, %v710
        %v716 = vld [vmem:[%s208] sm:$0xff]
        %v717 = vld [vmem:[%s208 + $0x8] sm:$0xff]
        %s718 = scalar_lea.vmem %s212, 12
        %v719 = vld [vmem:[%s718] sm:$0xf]
        %v722 = vcombine.high %v716, %v716
        %v723 = vcombine.high %v717, %v717
        %724 = vrot.lane.b32.xlu0 %v716, 109
        %v725 = vpop.permute.xlu0 %724
        %726 = vrot.lane.b32.xlu0 %v722, 109
        %v727 = vpop.permute.xlu0 %726
        %728 = vrot.lane.b32.xlu0 %v717, 109
        %v729 = vpop.permute.xlu0 %728
        %730 = vrot.lane.b32.xlu0 %v723, 109
        %v731 = vpop.permute.xlu0 %730
        %vm732 = vcmask 891904
        %v733 = vsel %vm732, %v725, %v727
        %v734 = vsel %vm732, %v727, %v729
        %v735 = vsel %vm732, %v729, %v731
        %v737 = vsel %vm240, %v719, 0
        %v739 = vsel %vm244, %v733, 0
        %v741 = vsel %vm244, %v734, 0
        %v743 = vsel %vm244, %v735, 0
        %745 = vmatprep.subr.mxu0 %v741
        %746 = vmatpush1.msra.mxu0 %v739
        %747 = vmatprep.subr.mxu0 0.0
        %748 = vmatpush1.msra.mxu0 0.0
        %749 = vmatprep.subr.mxu0 0.0
        %750 = vmatpush1.msra.mxu0 0.0
        %751 = vmatprep.subr.mxu0 0.0
        %752 = vmatpush1.msra.mxu0 0.0
        %753 = vmatprep.subr.mxu0 0.0
        %754 = vmatpush1.msra.mxu0 0.0
        %755 = vmatprep.subr.mxu0 0.0
        %756 = vmatpush1.msra.mxu0 0.0
        %757 = vmatprep.subr.mxu0 0.0
        %758 = vmatpush1.msra.mxu0 0.0
        %759 = vmatprep.subr.mxu0 0.0
        %760 = vmatpush1.msra.mxu0 0.0
        %761 = vmatprep.subr.mxu0 0.0
        %762 = vmatpush1.msra.mxu0 0.0
        %763 = vmatprep.subr.mxu0 0.0
        %764 = vmatpush1.msra.mxu0 0.0
        %765 = vmatprep.subr.mxu0 0.0
        %766 = vmatpush1.msra.mxu0 0.0
        %767 = vmatprep.subr.mxu0 0.0
        %768 = vmatpush1.msra.mxu0 0.0
        %769 = vmatprep.subr.mxu0 0.0
        %770 = vmatpush1.msra.mxu0 0.0
        %771 = vmatprep.subr.mxu0 0.0
        %772 = vmatpush1.msra.mxu0 0.0
        %773 = vmatprep.subr.mxu0 0.0
        %774 = vmatpush1.msra.mxu0 0.0
        %775 = vmatprep.subr.mxu0 0.0
        %776 = vmatpush1.msra.mxu0 0.0
        %777 = vmatprep.subr.mxu0 0.0
        %778 = vmatpush1.msra.mxu0 0.0
        %779 = vmatprep.subr.mxu0 0.0
        %780 = vmatpush1.msra.mxu0 0.0
        %781 = vmatprep.subr.mxu0 0.0
        %782 = vmatpush1.msra.mxu0 0.0
        %783 = vmatprep.subr.mxu0 0.0
        %784 = vmatpush1.msra.mxu0 0.0
        %785 = vmatprep.subr.mxu0 0.0
        %786 = vmatpush1.msra.mxu0 0.0
        %787 = vmatprep.subr.mxu0 0.0
        %788 = vmatpush1.msra.mxu0 0.0
        %789 = vmatprep.subr.mxu0 0.0
        %790 = vmatpush1.msra.mxu0 0.0
        %791 = vmatprep.subr.mxu0 0.0
        %792 = vmatpush1.msra.mxu0 0.0
        %793 = vmatprep.subr.mxu0 0.0
        %794 = vmatpush1.msra.mxu0 0.0
        %795 = vmatprep.subr.mxu0 0.0
        %796 = vmatpush1.msra.mxu0 0.0
        %797 = vmatprep.subr.mxu0 0.0
        %798 = vmatpush1.msra.mxu0 0.0
        %799 = vmatprep.subr.mxu0 0.0
        %800 = vmatpush1.msra.mxu0 0.0
        %801 = vmatprep.subr.mxu0 0.0
        %802 = vmatpush1.msra.mxu0 0.0
        %803 = vmatprep.subr.mxu0 0.0
        %804 = vmatpush1.msra.mxu0 0.0
        %805 = vmatprep.subr.mxu0 0.0
        %806 = vmatpush1.msra.mxu0 0.0
        %807 = vmatprep.subr.mxu0 0.0
        %808 = vmatpush1.msra.mxu0 0.0
        %809 = vmatprep.mubr.f32.mxu0 0.0
        %810 = vmatmul.mubr.f32.gmra.mrb[0].mxu0 %v737
        %v811 = vpop.f32.mrb[0].mxu0
        %v812 = vadd.f32 0.0, %v811
        %v813 = vpop.f32.mrb[0].mxu0
        %v814 = vadd.f32 0.0, %v813
        %815 = vdwg.mxu0
        %816 = vmatprep.subr.mxu0 0.0
        %817 = vmatpush1.msra.mxu0 %v743
        %818 = vmatprep.subr.mxu0 0.0
        %819 = vmatpush1.msra.mxu0 0.0
        %820 = vmatprep.subr.mxu0 0.0
        %821 = vmatpush1.msra.mxu0 0.0
        %822 = vmatprep.subr.mxu0 0.0
        %823 = vmatpush1.msra.mxu0 0.0
        %824 = vmatprep.subr.mxu0 0.0
        %825 = vmatpush1.msra.mxu0 0.0
        %826 = vmatprep.subr.mxu0 0.0
        %827 = vmatpush1.msra.mxu0 0.0
        %828 = vmatprep.subr.mxu0 0.0
        %829 = vmatpush1.msra.mxu0 0.0
        %830 = vmatprep.subr.mxu0 0.0
        %831 = vmatpush1.msra.mxu0 0.0
        %832 = vmatprep.subr.mxu0 0.0
        %833 = vmatpush1.msra.mxu0 0.0
        %834 = vmatprep.subr.mxu0 0.0
        %835 = vmatpush1.msra.mxu0 0.0
        %836 = vmatprep.subr.mxu0 0.0
        %837 = vmatpush1.msra.mxu0 0.0
        %838 = vmatprep.subr.mxu0 0.0
        %839 = vmatpush1.msra.mxu0 0.0
        %840 = vmatprep.subr.mxu0 0.0
        %841 = vmatpush1.msra.mxu0 0.0
        %842 = vmatprep.subr.mxu0 0.0
        %843 = vmatpush1.msra.mxu0 0.0
        %844 = vmatprep.subr.mxu0 0.0
        %845 = vmatpush1.msra.mxu0 0.0
        %846 = vmatprep.subr.mxu0 0.0
        %847 = vmatpush1.msra.mxu0 0.0
        %848 = vmatprep.subr.mxu0 0.0
        %849 = vmatpush1.msra.mxu0 0.0
        %850 = vmatprep.subr.mxu0 0.0
        %851 = vmatpush1.msra.mxu0 0.0
        %852 = vmatprep.subr.mxu0 0.0
        %853 = vmatpush1.msra.mxu0 0.0
        %854 = vmatprep.subr.mxu0 0.0
        %855 = vmatpush1.msra.mxu0 0.0
        %856 = vmatprep.subr.mxu0 0.0
        %857 = vmatpush1.msra.mxu0 0.0
        %858 = vmatprep.subr.mxu0 0.0
        %859 = vmatpush1.msra.mxu0 0.0
        %860 = vmatprep.subr.mxu0 0.0
        %861 = vmatpush1.msra.mxu0 0.0
        %862 = vmatprep.subr.mxu0 0.0
        %863 = vmatpush1.msra.mxu0 0.0
        %864 = vmatprep.subr.mxu0 0.0
        %865 = vmatpush1.msra.mxu0 0.0
        %866 = vmatprep.subr.mxu0 0.0
        %867 = vmatpush1.msra.mxu0 0.0
        %868 = vmatprep.subr.mxu0 0.0
        %869 = vmatpush1.msra.mxu0 0.0
        %870 = vmatprep.subr.mxu0 0.0
        %871 = vmatpush1.msra.mxu0 0.0
        %872 = vmatprep.subr.mxu0 0.0
        %873 = vmatpush1.msra.mxu0 0.0
        %874 = vmatprep.subr.mxu0 0.0
        %875 = vmatpush1.msra.mxu0 0.0
        %876 = vmatprep.subr.mxu0 0.0
        %877 = vmatpush1.msra.mxu0 0.0
        %878 = vmatprep.subr.mxu0 0.0
        %879 = vmatpush1.msra.mxu0 0.0
        %880 = vmatprep.mubr.f32.mxu0 0.0
        %881 = vmatmul.mubr.f32.gmra.mrb[0].mxu0 %v737
        %v882 = vpop.f32.mrb[0].mxu0
        %v883 = vadd.f32 0.0, %v882
        %v884 = vpop.f32.mrb[0].mxu0
        %885 = vdwg.mxu0
        %v886 = vadd.f32 %v713, %v812
        %v887 = vadd.f32 %v714, %v814
        %v888 = vadd.f32 %v715, %v883
        %890 = vset.pattern.permute.xlu0 0
        %891 = vperm.xlu0 %890, %v217
        %v892 = vpop.permute.xlu0 %891
        %v894 = vadd.f32 %v886, %v892
        %v895 = vadd.f32 %v887, %v892
        %v896 = vadd.f32 %v888, %v892
        %v899 = vcombine.low %v894, %v895
        %901 = vst [vmem:[%s203] sm:$0xff] %v899
        %902 = vst [vmem:[%s203 + $0x8] sm:$0xf] %v896
        %v903 = vld [vmem:[%s208] sm:$0xff]
        %v904 = vld [vmem:[%s208 + $0x8] sm:$0xff]
        %s905 = scalar_lea.vmem %s212, 16
        %v906 = vld [vmem:[%s905] sm:$0xf]
        %s907 = scalar_lea.vmem %s212, 20
        %v908 = vld [vmem:[%s907] sm:$0xf]
        %v911 = vcombine.high %v903, %v903
        %v912 = vcombine.high %v904, %v904
        %913 = vrot.lane.b32.xlu0 %v903, 126
        %v914 = vpop.permute.xlu0 %913
        %915 = vrot.lane.b32.xlu0 %v911, 126
        %v916 = vpop.permute.xlu0 %915
        %917 = vrot.lane.b32.xlu0 %v904, 126
        %v918 = vpop.permute.xlu0 %917
        %919 = vrot.lane.b32.xlu0 %v912, 126
        %v920 = vpop.permute.xlu0 %919
        %vm921 = vcmask 1031168
        %v922 = vsel %vm921, %v914, %v916
        %v923 = vsel %vm921, %v916, %v918
        %v924 = vsel %vm921, %v918, %v920
        %v926 = vsel %vm240, %v908, 0
        %v928 = vsel %vm244, %v922, 0
        %v930 = vsel %vm244, %v923, 0
        %v932 = vsel %vm244, %v924, 0
        %934 = vmatprep.subr.mxu0 %v930
        %935 = vmatpush1.msra.mxu0 %v928
        %936 = vmatprep.subr.mxu0 0.0
        %937 = vmatpush1.msra.mxu0 0.0
        %938 = vmatprep.subr.mxu0 0.0
        %939 = vmatpush1.msra.mxu0 0.0
        %940 = vmatprep.subr.mxu0 0.0
        %941 = vmatpush1.msra.mxu0 0.0
        %942 = vmatprep.subr.mxu0 0.0
        %943 = vmatpush1.msra.mxu0 0.0
        %944 = vmatprep.subr.mxu0 0.0
        %945 = vmatpush1.msra.mxu0 0.0
        %946 = vmatprep.subr.mxu0 0.0
        %947 = vmatpush1.msra.mxu0 0.0
        %948 = vmatprep.subr.mxu0 0.0
        %949 = vmatpush1.msra.mxu0 0.0
        %950 = vmatprep.subr.mxu0 0.0
        %951 = vmatpush1.msra.mxu0 0.0
        %952 = vmatprep.subr.mxu0 0.0
        %953 = vmatpush1.msra.mxu0 0.0
        %954 = vmatprep.subr.mxu0 0.0
        %955 = vmatpush1.msra.mxu0 0.0
        %956 = vmatprep.subr.mxu0 0.0
        %957 = vmatpush1.msra.mxu0 0.0
        %958 = vmatprep.subr.mxu0 0.0
        %959 = vmatpush1.msra.mxu0 0.0
        %960 = vmatprep.subr.mxu0 0.0
        %961 = vmatpush1.msra.mxu0 0.0
        %962 = vmatprep.subr.mxu0 0.0
        %963 = vmatpush1.msra.mxu0 0.0
        %964 = vmatprep.subr.mxu0 0.0
        %965 = vmatpush1.msra.mxu0 0.0
        %966 = vmatprep.subr.mxu0 0.0
        %967 = vmatpush1.msra.mxu0 0.0
        %968 = vmatprep.subr.mxu0 0.0
        %969 = vmatpush1.msra.mxu0 0.0
        %970 = vmatprep.subr.mxu0 0.0
        %971 = vmatpush1.msra.mxu0 0.0
        %972 = vmatprep.subr.mxu0 0.0
        %973 = vmatpush1.msra.mxu0 0.0
        %974 = vmatprep.subr.mxu0 0.0
        %975 = vmatpush1.msra.mxu0 0.0
        %976 = vmatprep.subr.mxu0 0.0
        %977 = vmatpush1.msra.mxu0 0.0
        %978 = vmatprep.subr.mxu0 0.0
        %979 = vmatpush1.msra.mxu0 0.0
        %980 = vmatprep.subr.mxu0 0.0
        %981 = vmatpush1.msra.mxu0 0.0
        %982 = vmatprep.subr.mxu0 0.0
        %983 = vmatpush1.msra.mxu0 0.0
        %984 = vmatprep.subr.mxu0 0.0
        %985 = vmatpush1.msra.mxu0 0.0
        %986 = vmatprep.subr.mxu0 0.0
        %987 = vmatpush1.msra.mxu0 0.0
        %988 = vmatprep.subr.mxu0 0.0
        %989 = vmatpush1.msra.mxu0 0.0
        %990 = vmatprep.subr.mxu0 0.0
        %991 = vmatpush1.msra.mxu0 0.0
        %992 = vmatprep.subr.mxu0 0.0
        %993 = vmatpush1.msra.mxu0 0.0
        %994 = vmatprep.subr.mxu0 0.0
        %995 = vmatpush1.msra.mxu0 0.0
        %996 = vmatprep.subr.mxu0 0.0
        %997 = vmatpush1.msra.mxu0 0.0
        %998 = vmatprep.mubr.f32.mxu0 0.0
        %999 = vmatmul.mubr.f32.gmra.mrb[0].mxu0 %v926
        %v1000 = vpop.f32.mrb[0].mxu0
        %v1001 = vadd.f32 0.0, %v1000
        %v1002 = vpop.f32.mrb[0].mxu0
        %v1003 = vadd.f32 0.0, %v1002
        %1004 = vdwg.mxu0
        %1005 = vmatprep.subr.mxu0 0.0
        %1006 = vmatpush1.msra.mxu0 %v932
        %1007 = vmatprep.subr.mxu0 0.0
        %1008 = vmatpush1.msra.mxu0 0.0
        %1009 = vmatprep.subr.mxu0 0.0
        %1010 = vmatpush1.msra.mxu0 0.0
        %1011 = vmatprep.subr.mxu0 0.0
        %1012 = vmatpush1.msra.mxu0 0.0
        %1013 = vmatprep.subr.mxu0 0.0
        %1014 = vmatpush1.msra.mxu0 0.0
        %1015 = vmatprep.subr.mxu0 0.0
        %1016 = vmatpush1.msra.mxu0 0.0
        %1017 = vmatprep.subr.mxu0 0.0
        %1018 = vmatpush1.msra.mxu0 0.0
        %1019 = vmatprep.subr.mxu0 0.0
        %1020 = vmatpush1.msra.mxu0 0.0
        %1021 = vmatprep.subr.mxu0 0.0
        %1022 = vmatpush1.msra.mxu0 0.0
        %1023 = vmatprep.subr.mxu0 0.0
        %1024 = vmatpush1.msra.mxu0 0.0
        %1025 = vmatprep.subr.mxu0 0.0
        %1026 = vmatpush1.msra.mxu0 0.0
        %1027 = vmatprep.subr.mxu0 0.0
        %1028 = vmatpush1.msra.mxu0 0.0
        %1029 = vmatprep.subr.mxu0 0.0
        %1030 = vmatpush1.msra.mxu0 0.0
        %1031 = vmatprep.subr.mxu0 0.0
        %1032 = vmatpush1.msra.mxu0 0.0
        %1033 = vmatprep.subr.mxu0 0.0
        %1034 = vmatpush1.msra.mxu0 0.0
        %1035 = vmatprep.subr.mxu0 0.0
        %1036 = vmatpush1.msra.mxu0 0.0
        %1037 = vmatprep.subr.mxu0 0.0
        %1038 = vmatpush1.msra.mxu0 0.0
        %1039 = vmatprep.subr.mxu0 0.0
        %1040 = vmatpush1.msra.mxu0 0.0
        %1041 = vmatprep.subr.mxu0 0.0
        %1042 = vmatpush1.msra.mxu0 0.0
        %1043 = vmatprep.subr.mxu0 0.0
        %1044 = vmatpush1.msra.mxu0 0.0
        %1045 = vmatprep.subr.mxu0 0.0
        %1046 = vmatpush1.msra.mxu0 0.0
        %1047 = vmatprep.subr.mxu0 0.0
        %1048 = vmatpush1.msra.mxu0 0.0
        %1049 = vmatprep.subr.mxu0 0.0
        %1050 = vmatpush1.msra.mxu0 0.0
        %1051 = vmatprep.subr.mxu0 0.0
        %1052 = vmatpush1.msra.mxu0 0.0
        %1053 = vmatprep.subr.mxu0 0.0
        %1054 = vmatpush1.msra.mxu0 0.0
        %1055 = vmatprep.subr.mxu0 0.0
        %1056 = vmatpush1.msra.mxu0 0.0
        %1057 = vmatprep.subr.mxu0 0.0
        %1058 = vmatpush1.msra.mxu0 0.0
        %1059 = vmatprep.subr.mxu0 0.0
        %1060 = vmatpush1.msra.mxu0 0.0
        %1061 = vmatprep.subr.mxu0 0.0
        %1062 = vmatpush1.msra.mxu0 0.0
        %1063 = vmatprep.subr.mxu0 0.0
        %1064 = vmatpush1.msra.mxu0 0.0
        %1065 = vmatprep.subr.mxu0 0.0
        %1066 = vmatpush1.msra.mxu0 0.0
        %1067 = vmatprep.subr.mxu0 0.0
        %1068 = vmatpush1.msra.mxu0 0.0
        %1069 = vmatprep.mubr.f32.mxu0 0.0
        %1070 = vmatmul.mubr.f32.gmra.mrb[0].mxu0 %v926
        %v1071 = vpop.f32.mrb[0].mxu0
        %v1072 = vadd.f32 0.0, %v1071
        %v1073 = vpop.f32.mrb[0].mxu0
        %1074 = vdwg.mxu0
        %1075 = vrot.lane.b32.xlu0 %v903, 127
        %v1076 = vpop.permute.xlu0 %1075
        %1077 = vrot.lane.b32.xlu0 %v911, 127
        %v1078 = vpop.permute.xlu0 %1077
        %1079 = vrot.lane.b32.xlu0 %v904, 127
        %v1080 = vpop.permute.xlu0 %1079
        %1081 = vrot.lane.b32.xlu0 %v912, 127
        %v1082 = vpop.permute.xlu0 %1081
        %v1083 = vsel %vm236, %v1076, %v1078
        %v1084 = vsel %vm236, %v1078, %v1080
        %v1085 = vsel %vm236, %v1080, %v1082
        %v1087 = vsel %vm240, %v906, 0
        %v1089 = vsel %vm244, %v1083, 0
        %v1091 = vsel %vm244, %v1084, 0
        %v1093 = vsel %vm244, %v1085, 0
        %1095 = vmatprep.subr.mxu0 %v1091
        %1096 = vmatpush1.msra.mxu0 %v1089
        %1097 = vmatprep.subr.mxu0 0.0
        %1098 = vmatpush1.msra.mxu0 0.0
        %1099 = vmatprep.subr.mxu0 0.0
        %1100 = vmatpush1.msra.mxu0 0.0
        %1101 = vmatprep.subr.mxu0 0.0
        %1102 = vmatpush1.msra.mxu0 0.0
        %1103 = vmatprep.subr.mxu0 0.0
        %1104 = vmatpush1.msra.mxu0 0.0
        %1105 = vmatprep.subr.mxu0 0.0
        %1106 = vmatpush1.msra.mxu0 0.0
        %1107 = vmatprep.subr.mxu0 0.0
        %1108 = vmatpush1.msra.mxu0 0.0
        %1109 = vmatprep.subr.mxu0 0.0
        %1110 = vmatpush1.msra.mxu0 0.0
        %1111 = vmatprep.subr.mxu0 0.0
        %1112 = vmatpush1.msra.mxu0 0.0
        %1113 = vmatprep.subr.mxu0 0.0
        %1114 = vmatpush1.msra.mxu0 0.0
        %1115 = vmatprep.subr.mxu0 0.0
        %1116 = vmatpush1.msra.mxu0 0.0
        %1117 = vmatprep.subr.mxu0 0.0
        %1118 = vmatpush1.msra.mxu0 0.0
        %1119 = vmatprep.subr.mxu0 0.0
        %1120 = vmatpush1.msra.mxu0 0.0
        %1121 = vmatprep.subr.mxu0 0.0
        %1122 = vmatpush1.msra.mxu0 0.0
        %1123 = vmatprep.subr.mxu0 0.0
        %1124 = vmatpush1.msra.mxu0 0.0
        %1125 = vmatprep.subr.mxu0 0.0
        %1126 = vmatpush1.msra.mxu0 0.0
        %1127 = vmatprep.subr.mxu0 0.0
        %1128 = vmatpush1.msra.mxu0 0.0
        %1129 = vmatprep.subr.mxu0 0.0
        %1130 = vmatpush1.msra.mxu0 0.0
        %1131 = vmatprep.subr.mxu0 0.0
        %1132 = vmatpush1.msra.mxu0 0.0
        %1133 = vmatprep.subr.mxu0 0.0
        %1134 = vmatpush1.msra.mxu0 0.0
        %1135 = vmatprep.subr.mxu0 0.0
        %1136 = vmatpush1.msra.mxu0 0.0
        %1137 = vmatprep.subr.mxu0 0.0
        %1138 = vmatpush1.msra.mxu0 0.0
        %1139 = vmatprep.subr.mxu0 0.0
        %1140 = vmatpush1.msra.mxu0 0.0
        %1141 = vmatprep.subr.mxu0 0.0
        %1142 = vmatpush1.msra.mxu0 0.0
        %1143 = vmatprep.subr.mxu0 0.0
        %1144 = vmatpush1.msra.mxu0 0.0
        %1145 = vmatprep.subr.mxu0 0.0
        %1146 = vmatpush1.msra.mxu0 0.0
        %1147 = vmatprep.subr.mxu0 0.0
        %1148 = vmatpush1.msra.mxu0 0.0
        %1149 = vmatprep.subr.mxu0 0.0
        %1150 = vmatpush1.msra.mxu0 0.0
        %1151 = vmatprep.subr.mxu0 0.0
        %1152 = vmatpush1.msra.mxu0 0.0
        %1153 = vmatprep.subr.mxu0 0.0
        %1154 = vmatpush1.msra.mxu0 0.0
        %1155 = vmatprep.subr.mxu0 0.0
        %1156 = vmatpush1.msra.mxu0 0.0
        %1157 = vmatprep.subr.mxu0 0.0
        %1158 = vmatpush1.msra.mxu0 0.0
        %1159 = vmatprep.mubr.f32.mxu0 0.0
        %1160 = vmatmul.mubr.f32.gmra.mrb[0].mxu0 %v1087
        %v1161 = vpop.f32.mrb[0].mxu0
        %v1162 = vadd.f32 %v1001, %v1161
        %v1163 = vpop.f32.mrb[0].mxu0
        %v1164 = vadd.f32 %v1003, %v1163
        %1165 = vdwg.mxu0
        %1166 = vmatprep.subr.mxu0 0.0
        %1167 = vmatpush1.msra.mxu0 %v1093
        %1168 = vmatprep.subr.mxu0 0.0
        %1169 = vmatpush1.msra.mxu0 0.0
        %1170 = vmatprep.subr.mxu0 0.0
        %1171 = vmatpush1.msra.mxu0 0.0
        %1172 = vmatprep.subr.mxu0 0.0
        %1173 = vmatpush1.msra.mxu0 0.0
        %1174 = vmatprep.subr.mxu0 0.0
        %1175 = vmatpush1.msra.mxu0 0.0
        %1176 = vmatprep.subr.mxu0 0.0
        %1177 = vmatpush1.msra.mxu0 0.0
        %1178 = vmatprep.subr.mxu0 0.0
        %1179 = vmatpush1.msra.mxu0 0.0
        %1180 = vmatprep.subr.mxu0 0.0
        %1181 = vmatpush1.msra.mxu0 0.0
        %1182 = vmatprep.subr.mxu0 0.0
        %1183 = vmatpush1.msra.mxu0 0.0
        %1184 = vmatprep.subr.mxu0 0.0
        %1185 = vmatpush1.msra.mxu0 0.0
        %1186 = vmatprep.subr.mxu0 0.0
        %1187 = vmatpush1.msra.mxu0 0.0
        %1188 = vmatprep.subr.mxu0 0.0
        %1189 = vmatpush1.msra.mxu0 0.0
        %1190 = vmatprep.subr.mxu0 0.0
        %1191 = vmatpush1.msra.mxu0 0.0
        %1192 = vmatprep.subr.mxu0 0.0
        %1193 = vmatpush1.msra.mxu0 0.0
        %1194 = vmatprep.subr.mxu0 0.0
        %1195 = vmatpush1.msra.mxu0 0.0
        %1196 = vmatprep.subr.mxu0 0.0
        %1197 = vmatpush1.msra.mxu0 0.0
        %1198 = vmatprep.subr.mxu0 0.0
        %1199 = vmatpush1.msra.mxu0 0.0
        %1200 = vmatprep.subr.mxu0 0.0
        %1201 = vmatpush1.msra.mxu0 0.0
        %1202 = vmatprep.subr.mxu0 0.0
        %1203 = vmatpush1.msra.mxu0 0.0
        %1204 = vmatprep.subr.mxu0 0.0
        %1205 = vmatpush1.msra.mxu0 0.0
        %1206 = vmatprep.subr.mxu0 0.0
        %1207 = vmatpush1.msra.mxu0 0.0
        %1208 = vmatprep.subr.mxu0 0.0
        %1209 = vmatpush1.msra.mxu0 0.0
        %1210 = vmatprep.subr.mxu0 0.0
        %1211 = vmatpush1.msra.mxu0 0.0
        %1212 = vmatprep.subr.mxu0 0.0
        %1213 = vmatpush1.msra.mxu0 0.0
        %1214 = vmatprep.subr.mxu0 0.0
        %1215 = vmatpush1.msra.mxu0 0.0
        %1216 = vmatprep.subr.mxu0 0.0
        %1217 = vmatpush1.msra.mxu0 0.0
        %1218 = vmatprep.subr.mxu0 0.0
        %1219 = vmatpush1.msra.mxu0 0.0
        %1220 = vmatprep.subr.mxu0 0.0
        %1221 = vmatpush1.msra.mxu0 0.0
        %1222 = vmatprep.subr.mxu0 0.0
        %1223 = vmatpush1.msra.mxu0 0.0
        %1224 = vmatprep.subr.mxu0 0.0
        %1225 = vmatpush1.msra.mxu0 0.0
        %1226 = vmatprep.subr.mxu0 0.0
        %1227 = vmatpush1.msra.mxu0 0.0
        %1228 = vmatprep.subr.mxu0 0.0
        %1229 = vmatpush1.msra.mxu0 0.0
        %1230 = vmatprep.mubr.f32.mxu0 0.0
        %1231 = vmatmul.mubr.f32.gmra.mrb[0].mxu0 %v1087
        %v1232 = vpop.f32.mrb[0].mxu0
        %v1233 = vadd.f32 %v1072, %v1232
        %v1234 = vpop.f32.mrb[0].mxu0
        %1235 = vdwg.mxu0
        %v1236 = vld [vmem:[%s208] sm:$0xff]
        %v1237 = vld [vmem:[%s208 + $0x8] sm:$0xff]
        %s1238 = scalar_lea.vmem %s212, 24
        %v1239 = vld [vmem:[%s1238] sm:$0xf]
        %v1242 = vcombine.high %v1236, %v1236
        %v1243 = vcombine.high %v1237, %v1237
        %1244 = vrot.lane.b32.xlu0 %v1236, 109
        %v1245 = vpop.permute.xlu0 %1244
        %1246 = vrot.lane.b32.xlu0 %v1242, 109
        %v1247 = vpop.permute.xlu0 %1246
        %1248 = vrot.lane.b32.xlu0 %v1237, 109
        %v1249 = vpop.permute.xlu0 %1248
        %1250 = vrot.lane.b32.xlu0 %v1243, 109
        %v1251 = vpop.permute.xlu0 %1250
        %v1252 = vsel %vm732, %v1245, %v1247
        %v1253 = vsel %vm732, %v1247, %v1249
        %v1254 = vsel %vm732, %v1249, %v1251
        %v1256 = vsel %vm240, %v1239, 0
        %v1258 = vsel %vm244, %v1252, 0
        %v1260 = vsel %vm244, %v1253, 0
        %v1262 = vsel %vm244, %v1254, 0
        %1264 = vmatprep.subr.mxu0 %v1260
        %1265 = vmatpush1.msra.mxu0 %v1258
        %1266 = vmatprep.subr.mxu0 0.0
        %1267 = vmatpush1.msra.mxu0 0.0
        %1268 = vmatprep.subr.mxu0 0.0
        %1269 = vmatpush1.msra.mxu0 0.0
        %1270 = vmatprep.subr.mxu0 0.0
        %1271 = vmatpush1.msra.mxu0 0.0
        %1272 = vmatprep.subr.mxu0 0.0
        %1273 = vmatpush1.msra.mxu0 0.0
        %1274 = vmatprep.subr.mxu0 0.0
        %1275 = vmatpush1.msra.mxu0 0.0
        %1276 = vmatprep.subr.mxu0 0.0
        %1277 = vmatpush1.msra.mxu0 0.0
        %1278 = vmatprep.subr.mxu0 0.0
        %1279 = vmatpush1.msra.mxu0 0.0
        %1280 = vmatprep.subr.mxu0 0.0
        %1281 = vmatpush1.msra.mxu0 0.0
        %1282 = vmatprep.subr.mxu0 0.0
        %1283 = vmatpush1.msra.mxu0 0.0
        %1284 = vmatprep.subr.mxu0 0.0
        %1285 = vmatpush1.msra.mxu0 0.0
        %1286 = vmatprep.subr.mxu0 0.0
        %1287 = vmatpush1.msra.mxu0 0.0
        %1288 = vmatprep.subr.mxu0 0.0
        %1289 = vmatpush1.msra.mxu0 0.0
        %1290 = vmatprep.subr.mxu0 0.0
        %1291 = vmatpush1.msra.mxu0 0.0
        %1292 = vmatprep.subr.mxu0 0.0
        %1293 = vmatpush1.msra.mxu0 0.0
        %1294 = vmatprep.subr.mxu0 0.0
        %1295 = vmatpush1.msra.mxu0 0.0
        %1296 = vmatprep.subr.mxu0 0.0
        %1297 = vmatpush1.msra.mxu0 0.0
        %1298 = vmatprep.subr.mxu0 0.0
        %1299 = vmatpush1.msra.mxu0 0.0
        %1300 = vmatprep.subr.mxu0 0.0
        %1301 = vmatpush1.msra.mxu0 0.0
        %1302 = vmatprep.subr.mxu0 0.0
        %1303 = vmatpush1.msra.mxu0 0.0
        %1304 = vmatprep.subr.mxu0 0.0
        %1305 = vmatpush1.msra.mxu0 0.0
        %1306 = vmatprep.subr.mxu0 0.0
        %1307 = vmatpush1.msra.mxu0 0.0
        %1308 = vmatprep.subr.mxu0 0.0
        %1309 = vmatpush1.msra.mxu0 0.0
        %1310 = vmatprep.subr.mxu0 0.0
        %1311 = vmatpush1.msra.mxu0 0.0
        %1312 = vmatprep.subr.mxu0 0.0
        %1313 = vmatpush1.msra.mxu0 0.0
        %1314 = vmatprep.subr.mxu0 0.0
        %1315 = vmatpush1.msra.mxu0 0.0
        %1316 = vmatprep.subr.mxu0 0.0
        %1317 = vmatpush1.msra.mxu0 0.0
        %1318 = vmatprep.subr.mxu0 0.0
        %1319 = vmatpush1.msra.mxu0 0.0
        %1320 = vmatprep.subr.mxu0 0.0
        %1321 = vmatpush1.msra.mxu0 0.0
        %1322 = vmatprep.subr.mxu0 0.0
        %1323 = vmatpush1.msra.mxu0 0.0
        %1324 = vmatprep.subr.mxu0 0.0
        %1325 = vmatpush1.msra.mxu0 0.0
        %1326 = vmatprep.subr.mxu0 0.0
        %1327 = vmatpush1.msra.mxu0 0.0
        %1328 = vmatprep.mubr.f32.mxu0 0.0
        %1329 = vmatmul.mubr.f32.gmra.mrb[0].mxu0 %v1256
        %v1330 = vpop.f32.mrb[0].mxu0
        %v1331 = vadd.f32 0.0, %v1330
        %v1332 = vpop.f32.mrb[0].mxu0
        %v1333 = vadd.f32 0.0, %v1332
        %1334 = vdwg.mxu0
        %1335 = vmatprep.subr.mxu0 0.0
        %1336 = vmatpush1.msra.mxu0 %v1262
        %1337 = vmatprep.subr.mxu0 0.0
        %1338 = vmatpush1.msra.mxu0 0.0
        %1339 = vmatprep.subr.mxu0 0.0
        %1340 = vmatpush1.msra.mxu0 0.0
        %1341 = vmatprep.subr.mxu0 0.0
        %1342 = vmatpush1.msra.mxu0 0.0
        %1343 = vmatprep.subr.mxu0 0.0
        %1344 = vmatpush1.msra.mxu0 0.0
        %1345 = vmatprep.subr.mxu0 0.0
        %1346 = vmatpush1.msra.mxu0 0.0
        %1347 = vmatprep.subr.mxu0 0.0
        %1348 = vmatpush1.msra.mxu0 0.0
        %1349 = vmatprep.subr.mxu0 0.0
        %1350 = vmatpush1.msra.mxu0 0.0
        %1351 = vmatprep.subr.mxu0 0.0
        %1352 = vmatpush1.msra.mxu0 0.0
        %1353 = vmatprep.subr.mxu0 0.0
        %1354 = vmatpush1.msra.mxu0 0.0
        %1355 = vmatprep.subr.mxu0 0.0
        %1356 = vmatpush1.msra.mxu0 0.0
        %1357 = vmatprep.subr.mxu0 0.0
        %1358 = vmatpush1.msra.mxu0 0.0
        %1359 = vmatprep.subr.mxu0 0.0
        %1360 = vmatpush1.msra.mxu0 0.0
        %1361 = vmatprep.subr.mxu0 0.0
        %1362 = vmatpush1.msra.mxu0 0.0
        %1363 = vmatprep.subr.mxu0 0.0
        %1364 = vmatpush1.msra.mxu0 0.0
        %1365 = vmatprep.subr.mxu0 0.0
        %1366 = vmatpush1.msra.mxu0 0.0
        %1367 = vmatprep.subr.mxu0 0.0
        %1368 = vmatpush1.msra.mxu0 0.0
        %1369 = vmatprep.subr.mxu0 0.0
        %1370 = vmatpush1.msra.mxu0 0.0
        %1371 = vmatprep.subr.mxu0 0.0
        %1372 = vmatpush1.msra.mxu0 0.0
        %1373 = vmatprep.subr.mxu0 0.0
        %1374 = vmatpush1.msra.mxu0 0.0
        %1375 = vmatprep.subr.mxu0 0.0
        %1376 = vmatpush1.msra.mxu0 0.0
        %1377 = vmatprep.subr.mxu0 0.0
        %1378 = vmatpush1.msra.mxu0 0.0
        %1379 = vmatprep.subr.mxu0 0.0
        %1380 = vmatpush1.msra.mxu0 0.0
        %1381 = vmatprep.subr.mxu0 0.0
        %1382 = vmatpush1.msra.mxu0 0.0
        %1383 = vmatprep.subr.mxu0 0.0
        %1384 = vmatpush1.msra.mxu0 0.0
        %1385 = vmatprep.subr.mxu0 0.0
        %1386 = vmatpush1.msra.mxu0 0.0
        %1387 = vmatprep.subr.mxu0 0.0
        %1388 = vmatpush1.msra.mxu0 0.0
        %1389 = vmatprep.subr.mxu0 0.0
        %1390 = vmatpush1.msra.mxu0 0.0
        %1391 = vmatprep.subr.mxu0 0.0
        %1392 = vmatpush1.msra.mxu0 0.0
        %1393 = vmatprep.subr.mxu0 0.0
        %1394 = vmatpush1.msra.mxu0 0.0
        %1395 = vmatprep.subr.mxu0 0.0
        %1396 = vmatpush1.msra.mxu0 0.0
        %1397 = vmatprep.subr.mxu0 0.0
        %1398 = vmatpush1.msra.mxu0 0.0
        %1399 = vmatprep.mubr.f32.mxu0 0.0
        %1400 = vmatmul.mubr.f32.gmra.mrb[0].mxu0 %v1256
        %v1401 = vpop.f32.mrb[0].mxu0
        %v1402 = vadd.f32 0.0, %v1401
        %v1403 = vpop.f32.mrb[0].mxu0
        %1404 = vdwg.mxu0
        %v1405 = vadd.f32 %v1162, %v1331
        %v1406 = vadd.f32 %v1164, %v1333
        %v1407 = vadd.f32 %v1233, %v1402
        %v1408 = vld [vmem:[%s208] sm:$0xff]
        %v1409 = vld [vmem:[%s208 + $0x8] sm:$0xff]
        %s1410 = scalar_lea.vmem %s212, 28
        %v1411 = vld [vmem:[%s1410] sm:$0xf]
        %v1414 = vcombine.high %v1408, %v1408
        %v1415 = vcombine.high %v1409, %v1409
        %1416 = vrot.lane.b32.xlu0 %v1408, 108
        %v1417 = vpop.permute.xlu0 %1416
        %1418 = vrot.lane.b32.xlu0 %v1414, 108
        %v1419 = vpop.permute.xlu0 %1418
        %1420 = vrot.lane.b32.xlu0 %v1409, 108
        %v1421 = vpop.permute.xlu0 %1420
        %1422 = vrot.lane.b32.xlu0 %v1415, 108
        %v1423 = vpop.permute.xlu0 %1422
        %vm1424 = vcmask 883712
        %v1425 = vsel %vm1424, %v1417, %v1419
        %v1426 = vsel %vm1424, %v1419, %v1421
        %v1427 = vsel %vm1424, %v1421, %v1423
        %v1429 = vsel %vm240, %v1411, 0
        %v1431 = vsel %vm244, %v1425, 0
        %v1433 = vsel %vm244, %v1426, 0
        %v1435 = vsel %vm244, %v1427, 0
        %1437 = vmatprep.subr.mxu0 %v1433
        %1438 = vmatpush1.msra.mxu0 %v1431
        %1439 = vmatprep.subr.mxu0 0.0
        %1440 = vmatpush1.msra.mxu0 0.0
        %1441 = vmatprep.subr.mxu0 0.0
        %1442 = vmatpush1.msra.mxu0 0.0
        %1443 = vmatprep.subr.mxu0 0.0
        %1444 = vmatpush1.msra.mxu0 0.0
        %1445 = vmatprep.subr.mxu0 0.0
        %1446 = vmatpush1.msra.mxu0 0.0
        %1447 = vmatprep.subr.mxu0 0.0
        %1448 = vmatpush1.msra.mxu0 0.0
        %1449 = vmatprep.subr.mxu0 0.0
        %1450 = vmatpush1.msra.mxu0 0.0
        %1451 = vmatprep.subr.mxu0 0.0
        %1452 = vmatpush1.msra.mxu0 0.0
        %1453 = vmatprep.subr.mxu0 0.0
        %1454 = vmatpush1.msra.mxu0 0.0
        %1455 = vmatprep.subr.mxu0 0.0
        %1456 = vmatpush1.msra.mxu0 0.0
        %1457 = vmatprep.subr.mxu0 0.0
        %1458 = vmatpush1.msra.mxu0 0.0
        %1459 = vmatprep.subr.mxu0 0.0
        %1460 = vmatpush1.msra.mxu0 0.0
        %1461 = vmatprep.subr.mxu0 0.0
        %1462 = vmatpush1.msra.mxu0 0.0
        %1463 = vmatprep.subr.mxu0 0.0
        %1464 = vmatpush1.msra.mxu0 0.0
        %1465 = vmatprep.subr.mxu0 0.0
        %1466 = vmatpush1.msra.mxu0 0.0
        %1467 = vmatprep.subr.mxu0 0.0
        %1468 = vmatpush1.msra.mxu0 0.0
        %1469 = vmatprep.subr.mxu0 0.0
        %1470 = vmatpush1.msra.mxu0 0.0
        %1471 = vmatprep.subr.mxu0 0.0
        %1472 = vmatpush1.msra.mxu0 0.0
        %1473 = vmatprep.subr.mxu0 0.0
        %1474 = vmatpush1.msra.mxu0 0.0
        %1475 = vmatprep.subr.mxu0 0.0
        %1476 = vmatpush1.msra.mxu0 0.0
        %1477 = vmatprep.subr.mxu0 0.0
        %1478 = vmatpush1.msra.mxu0 0.0
        %1479 = vmatprep.subr.mxu0 0.0
        %1480 = vmatpush1.msra.mxu0 0.0
        %1481 = vmatprep.subr.mxu0 0.0
        %1482 = vmatpush1.msra.mxu0 0.0
        %1483 = vmatprep.subr.mxu0 0.0
        %1484 = vmatpush1.msra.mxu0 0.0
        %1485 = vmatprep.subr.mxu0 0.0
        %1486 = vmatpush1.msra.mxu0 0.0
        %1487 = vmatprep.subr.mxu0 0.0
        %1488 = vmatpush1.msra.mxu0 0.0
        %1489 = vmatprep.subr.mxu0 0.0
        %1490 = vmatpush1.msra.mxu0 0.0
        %1491 = vmatprep.subr.mxu0 0.0
        %1492 = vmatpush1.msra.mxu0 0.0
        %1493 = vmatprep.subr.mxu0 0.0
        %1494 = vmatpush1.msra.mxu0 0.0
        %1495 = vmatprep.subr.mxu0 0.0
        %1496 = vmatpush1.msra.mxu0 0.0
        %1497 = vmatprep.subr.mxu0 0.0
        %1498 = vmatpush1.msra.mxu0 0.0
        %1499 = vmatprep.subr.mxu0 0.0
        %1500 = vmatpush1.msra.mxu0 0.0
        %1501 = vmatprep.mubr.f32.mxu0 0.0
        %1502 = vmatmul.mubr.f32.gmra.mrb[0].mxu0 %v1429
        %v1503 = vpop.f32.mrb[0].mxu0
        %v1504 = vadd.f32 0.0, %v1503
        %v1505 = vpop.f32.mrb[0].mxu0
        %v1506 = vadd.f32 0.0, %v1505
        %1507 = vdwg.mxu0
        %1508 = vmatprep.subr.mxu0 0.0
        %1509 = vmatpush1.msra.mxu0 %v1435
        %1510 = vmatprep.subr.mxu0 0.0
        %1511 = vmatpush1.msra.mxu0 0.0
        %1512 = vmatprep.subr.mxu0 0.0
        %1513 = vmatpush1.msra.mxu0 0.0
        %1514 = vmatprep.subr.mxu0 0.0
        %1515 = vmatpush1.msra.mxu0 0.0
        %1516 = vmatprep.subr.mxu0 0.0
        %1517 = vmatpush1.msra.mxu0 0.0
        %1518 = vmatprep.subr.mxu0 0.0
        %1519 = vmatpush1.msra.mxu0 0.0
        %1520 = vmatprep.subr.mxu0 0.0
        %1521 = vmatpush1.msra.mxu0 0.0
        %1522 = vmatprep.subr.mxu0 0.0
        %1523 = vmatpush1.msra.mxu0 0.0
        %1524 = vmatprep.subr.mxu0 0.0
        %1525 = vmatpush1.msra.mxu0 0.0
        %1526 = vmatprep.subr.mxu0 0.0
        %1527 = vmatpush1.msra.mxu0 0.0
        %1528 = vmatprep.subr.mxu0 0.0
        %1529 = vmatpush1.msra.mxu0 0.0
        %1530 = vmatprep.subr.mxu0 0.0
        %1531 = vmatpush1.msra.mxu0 0.0
        %1532 = vmatprep.subr.mxu0 0.0
        %1533 = vmatpush1.msra.mxu0 0.0
        %1534 = vmatprep.subr.mxu0 0.0
        %1535 = vmatpush1.msra.mxu0 0.0
        %1536 = vmatprep.subr.mxu0 0.0
        %1537 = vmatpush1.msra.mxu0 0.0
        %1538 = vmatprep.subr.mxu0 0.0
        %1539 = vmatpush1.msra.mxu0 0.0
        %1540 = vmatprep.subr.mxu0 0.0
        %1541 = vmatpush1.msra.mxu0 0.0
        %1542 = vmatprep.subr.mxu0 0.0
        %1543 = vmatpush1.msra.mxu0 0.0
        %1544 = vmatprep.subr.mxu0 0.0
        %1545 = vmatpush1.msra.mxu0 0.0
        %1546 = vmatprep.subr.mxu0 0.0
        %1547 = vmatpush1.msra.mxu0 0.0
        %1548 = vmatprep.subr.mxu0 0.0
        %1549 = vmatpush1.msra.mxu0 0.0
        %1550 = vmatprep.subr.mxu0 0.0
        %1551 = vmatpush1.msra.mxu0 0.0
        %1552 = vmatprep.subr.mxu0 0.0
        %1553 = vmatpush1.msra.mxu0 0.0
        %1554 = vmatprep.subr.mxu0 0.0
        %1555 = vmatpush1.msra.mxu0 0.0
        %1556 = vmatprep.subr.mxu0 0.0
        %1557 = vmatpush1.msra.mxu0 0.0
        %1558 = vmatprep.subr.mxu0 0.0
        %1559 = vmatpush1.msra.mxu0 0.0
        %1560 = vmatprep.subr.mxu0 0.0
        %1561 = vmatpush1.msra.mxu0 0.0
        %1562 = vmatprep.subr.mxu0 0.0
        %1563 = vmatpush1.msra.mxu0 0.0
        %1564 = vmatprep.subr.mxu0 0.0
        %1565 = vmatpush1.msra.mxu0 0.0
        %1566 = vmatprep.subr.mxu0 0.0
        %1567 = vmatpush1.msra.mxu0 0.0
        %1568 = vmatprep.subr.mxu0 0.0
        %1569 = vmatpush1.msra.mxu0 0.0
        %1570 = vmatprep.subr.mxu0 0.0
        %1571 = vmatpush1.msra.mxu0 0.0
        %1572 = vmatprep.mubr.f32.mxu0 0.0
        %1573 = vmatmul.mubr.f32.gmra.mrb[0].mxu0 %v1429
        %v1574 = vpop.f32.mrb[0].mxu0
        %v1575 = vadd.f32 0.0, %v1574
        %v1576 = vpop.f32.mrb[0].mxu0
        %1577 = vdwg.mxu0
        %v1578 = vadd.f32 %v1405, %v1504
        %v1579 = vadd.f32 %v1406, %v1506
        %v1580 = vadd.f32 %v1407, %v1575
        %v1581 = vadd.f32 %v1578, %v892
        %v1582 = vadd.f32 %v1579, %v892
        %v1583 = vadd.f32 %v1580, %v892
        %v1586 = vcombine.low %v1581, %v1582
        %s1588 = scalar_lea.vmem %s203, 12 [#allocation2]
        %1589 = vst [vmem:[%s1588] sm:$0xff] %v1586
        %1590 = vst [vmem:[%s1588 + $0x8] sm:$0xf] %v1583
        %v1591 = vld [vmem:[%s208] sm:$0xff]
        %v1592 = vld [vmem:[%s208 + $0x8] sm:$0xff]
        %s1593 = scalar_lea.vmem %s212, 32
        %v1594 = vld [vmem:[%s1593] sm:$0xf]
        %s1595 = scalar_lea.vmem %s212, 36
        %v1596 = vld [vmem:[%s1595] sm:$0xf]
        %v1599 = vcombine.high %v1591, %v1591
        %v1600 = vcombine.high %v1592, %v1592
        %1601 = vrot.lane.b32.xlu0 %v1591, 109
        %v1602 = vpop.permute.xlu0 %1601
        %1603 = vrot.lane.b32.xlu0 %v1599, 109
        %v1604 = vpop.permute.xlu0 %1603
        %1605 = vrot.lane.b32.xlu0 %v1592, 109
        %v1606 = vpop.permute.xlu0 %1605
        %1607 = vrot.lane.b32.xlu0 %v1600, 109
        %v1608 = vpop.permute.xlu0 %1607
        %v1609 = vsel %vm732, %v1602, %v1604
        %v1610 = vsel %vm732, %v1604, %v1606
        %v1611 = vsel %vm732, %v1606, %v1608
        %v1613 = vsel %vm240, %v1596, 0
        %v1615 = vsel %vm244, %v1609, 0
        %v1617 = vsel %vm244, %v1610, 0
        %v1619 = vsel %vm244, %v1611, 0
        %1621 = vmatprep.subr.mxu0 %v1617
        %1622 = vmatpush1.msra.mxu0 %v1615
        %1623 = vmatprep.subr.mxu0 0.0
        %1624 = vmatpush1.msra.mxu0 0.0
        %1625 = vmatprep.subr.mxu0 0.0
        %1626 = vmatpush1.msra.mxu0 0.0
        %1627 = vmatprep.subr.mxu0 0.0
        %1628 = vmatpush1.msra.mxu0 0.0
        %1629 = vmatprep.subr.mxu0 0.0
        %1630 = vmatpush1.msra.mxu0 0.0
        %1631 = vmatprep.subr.mxu0 0.0
        %1632 = vmatpush1.msra.mxu0 0.0
        %1633 = vmatprep.subr.mxu0 0.0
        %1634 = vmatpush1.msra.mxu0 0.0
        %1635 = vmatprep.subr.mxu0 0.0
        %1636 = vmatpush1.msra.mxu0 0.0
        %1637 = vmatprep.subr.mxu0 0.0
        %1638 = vmatpush1.msra.mxu0 0.0
        %1639 = vmatprep.subr.mxu0 0.0
        %1640 = vmatpush1.msra.mxu0 0.0
        %1641 = vmatprep.subr.mxu0 0.0
        %1642 = vmatpush1.msra.mxu0 0.0
        %1643 = vmatprep.subr.mxu0 0.0
        %1644 = vmatpush1.msra.mxu0 0.0
        %1645 = vmatprep.subr.mxu0 0.0
        %1646 = vmatpush1.msra.mxu0 0.0
        %1647 = vmatprep.subr.mxu0 0.0
        %1648 = vmatpush1.msra.mxu0 0.0
        %1649 = vmatprep.subr.mxu0 0.0
        %1650 = vmatpush1.msra.mxu0 0.0
        %1651 = vmatprep.subr.mxu0 0.0
        %1652 = vmatpush1.msra.mxu0 0.0
        %1653 = vmatprep.subr.mxu0 0.0
        %1654 = vmatpush1.msra.mxu0 0.0
        %1655 = vmatprep.subr.mxu0 0.0
        %1656 = vmatpush1.msra.mxu0 0.0
        %1657 = vmatprep.subr.mxu0 0.0
        %1658 = vmatpush1.msra.mxu0 0.0
        %1659 = vmatprep.subr.mxu0 0.0
        %1660 = vmatpush1.msra.mxu0 0.0
        %1661 = vmatprep.subr.mxu0 0.0
        %1662 = vmatpush1.msra.mxu0 0.0
        %1663 = vmatprep.subr.mxu0 0.0
        %1664 = vmatpush1.msra.mxu0 0.0
        %1665 = vmatprep.subr.mxu0 0.0
        %1666 = vmatpush1.msra.mxu0 0.0
        %1667 = vmatprep.subr.mxu0 0.0
        %1668 = vmatpush1.msra.mxu0 0.0
        %1669 = vmatprep.subr.mxu0 0.0
        %1670 = vmatpush1.msra.mxu0 0.0
        %1671 = vmatprep.subr.mxu0 0.0
        %1672 = vmatpush1.msra.mxu0 0.0
        %1673 = vmatprep.subr.mxu0 0.0
        %1674 = vmatpush1.msra.mxu0 0.0
        %1675 = vmatprep.subr.mxu0 0.0
        %1676 = vmatpush1.msra.mxu0 0.0
        %1677 = vmatprep.subr.mxu0 0.0
        %1678 = vmatpush1.msra.mxu0 0.0
        %1679 = vmatprep.subr.mxu0 0.0
        %1680 = vmatpush1.msra.mxu0 0.0
        %1681 = vmatprep.subr.mxu0 0.0
        %1682 = vmatpush1.msra.mxu0 0.0
        %1683 = vmatprep.subr.mxu0 0.0
        %1684 = vmatpush1.msra.mxu0 0.0
        %1685 = vmatprep.mubr.f32.mxu0 0.0
        %1686 = vmatmul.mubr.f32.gmra.mrb[0].mxu0 %v1613
        %v1687 = vpop.f32.mrb[0].mxu0
        %v1688 = vadd.f32 0.0, %v1687
        %v1689 = vpop.f32.mrb[0].mxu0
        %v1690 = vadd.f32 0.0, %v1689
        %1691 = vdwg.mxu0
        %1692 = vmatprep.subr.mxu0 0.0
        %1693 = vmatpush1.msra.mxu0 %v1619
        %1694 = vmatprep.subr.mxu0 0.0
        %1695 = vmatpush1.msra.mxu0 0.0
        %1696 = vmatprep.subr.mxu0 0.0
        %1697 = vmatpush1.msra.mxu0 0.0
        %1698 = vmatprep.subr.mxu0 0.0
        %1699 = vmatpush1.msra.mxu0 0.0
        %1700 = vmatprep.subr.mxu0 0.0
        %1701 = vmatpush1.msra.mxu0 0.0
        %1702 = vmatprep.subr.mxu0 0.0
        %1703 = vmatpush1.msra.mxu0 0.0
        %1704 = vmatprep.subr.mxu0 0.0
        %1705 = vmatpush1.msra.mxu0 0.0
        %1706 = vmatprep.subr.mxu0 0.0
        %1707 = vmatpush1.msra.mxu0 0.0
        %1708 = vmatprep.subr.mxu0 0.0
        %1709 = vmatpush1.msra.mxu0 0.0
        %1710 = vmatprep.subr.mxu0 0.0
        %1711 = vmatpush1.msra.mxu0 0.0
        %1712 = vmatprep.subr.mxu0 0.0
        %1713 = vmatpush1.msra.mxu0 0.0
        %1714 = vmatprep.subr.mxu0 0.0
        %1715 = vmatpush1.msra.mxu0 0.0
        %1716 = vmatprep.subr.mxu0 0.0
        %1717 = vmatpush1.msra.mxu0 0.0
        %1718 = vmatprep.subr.mxu0 0.0
        %1719 = vmatpush1.msra.mxu0 0.0
        %1720 = vmatprep.subr.mxu0 0.0
        %1721 = vmatpush1.msra.mxu0 0.0
        %1722 = vmatprep.subr.mxu0 0.0
        %1723 = vmatpush1.msra.mxu0 0.0
        %1724 = vmatprep.subr.mxu0 0.0
        %1725 = vmatpush1.msra.mxu0 0.0
        %1726 = vmatprep.subr.mxu0 0.0
        %1727 = vmatpush1.msra.mxu0 0.0
        %1728 = vmatprep.subr.mxu0 0.0
        %1729 = vmatpush1.msra.mxu0 0.0
        %1730 = vmatprep.subr.mxu0 0.0
        %1731 = vmatpush1.msra.mxu0 0.0
        %1732 = vmatprep.subr.mxu0 0.0
        %1733 = vmatpush1.msra.mxu0 0.0
        %1734 = vmatprep.subr.mxu0 0.0
        %1735 = vmatpush1.msra.mxu0 0.0
        %1736 = vmatprep.subr.mxu0 0.0
        %1737 = vmatpush1.msra.mxu0 0.0
        %1738 = vmatprep.subr.mxu0 0.0
        %1739 = vmatpush1.msra.mxu0 0.0
        %1740 = vmatprep.subr.mxu0 0.0
        %1741 = vmatpush1.msra.mxu0 0.0
        %1742 = vmatprep.subr.mxu0 0.0
        %1743 = vmatpush1.msra.mxu0 0.0
        %1744 = vmatprep.subr.mxu0 0.0
        %1745 = vmatpush1.msra.mxu0 0.0
        %1746 = vmatprep.subr.mxu0 0.0
        %1747 = vmatpush1.msra.mxu0 0.0
        %1748 = vmatprep.subr.mxu0 0.0
        %1749 = vmatpush1.msra.mxu0 0.0
        %1750 = vmatprep.subr.mxu0 0.0
        %1751 = vmatpush1.msra.mxu0 0.0
        %1752 = vmatprep.subr.mxu0 0.0
        %1753 = vmatpush1.msra.mxu0 0.0
        %1754 = vmatprep.subr.mxu0 0.0
        %1755 = vmatpush1.msra.mxu0 0.0
        %1756 = vmatprep.mubr.f32.mxu0 0.0
        %1757 = vmatmul.mubr.f32.gmra.mrb[0].mxu0 %v1613
        %v1758 = vpop.f32.mrb[0].mxu0
        %v1759 = vadd.f32 0.0, %v1758
        %v1760 = vpop.f32.mrb[0].mxu0
        %1761 = vdwg.mxu0
        %1762 = vrot.lane.b32.xlu0 %v1591, 110
        %v1763 = vpop.permute.xlu0 %1762
        %1764 = vrot.lane.b32.xlu0 %v1599, 110
        %v1765 = vpop.permute.xlu0 %1764
        %1766 = vrot.lane.b32.xlu0 %v1592, 110
        %v1767 = vpop.permute.xlu0 %1766
        %1768 = vrot.lane.b32.xlu0 %v1600, 110
        %v1769 = vpop.permute.xlu0 %1768
        %v1770 = vsel %vm559, %v1763, %v1765
        %v1771 = vsel %vm559, %v1765, %v1767
        %v1772 = vsel %vm559, %v1767, %v1769
        %v1774 = vsel %vm240, %v1594, 0
        %v1776 = vsel %vm244, %v1770, 0
        %v1778 = vsel %vm244, %v1771, 0
        %v1780 = vsel %vm244, %v1772, 0
        %1782 = vmatprep.subr.mxu0 %v1778
        %1783 = vmatpush1.msra.mxu0 %v1776
        %1784 = vmatprep.subr.mxu0 0.0
        %1785 = vmatpush1.msra.mxu0 0.0
        %1786 = vmatprep.subr.mxu0 0.0
        %1787 = vmatpush1.msra.mxu0 0.0
        %1788 = vmatprep.subr.mxu0 0.0
        %1789 = vmatpush1.msra.mxu0 0.0
        %1790 = vmatprep.subr.mxu0 0.0
        %1791 = vmatpush1.msra.mxu0 0.0
        %1792 = vmatprep.subr.mxu0 0.0
        %1793 = vmatpush1.msra.mxu0 0.0
        %1794 = vmatprep.subr.mxu0 0.0
        %1795 = vmatpush1.msra.mxu0 0.0
        %1796 = vmatprep.subr.mxu0 0.0
        %1797 = vmatpush1.msra.mxu0 0.0
        %1798 = vmatprep.subr.mxu0 0.0
        %1799 = vmatpush1.msra.mxu0 0.0
        %1800 = vmatprep.subr.mxu0 0.0
        %1801 = vmatpush1.msra.mxu0 0.0
        %1802 = vmatprep.subr.mxu0 0.0
        %1803 = vmatpush1.msra.mxu0 0.0
        %1804 = vmatprep.subr.mxu0 0.0
        %1805 = vmatpush1.msra.mxu0 0.0
        %1806 = vmatprep.subr.mxu0 0.0
        %1807 = vmatpush1.msra.mxu0 0.0
        %1808 = vmatprep.subr.mxu0 0.0
        %1809 = vmatpush1.msra.mxu0 0.0
        %1810 = vmatprep.subr.mxu0 0.0
        %1811 = vmatpush1.msra.mxu0 0.0
        %1812 = vmatprep.subr.mxu0 0.0
        %1813 = vmatpush1.msra.mxu0 0.0
        %1814 = vmatprep.subr.mxu0 0.0
        %1815 = vmatpush1.msra.mxu0 0.0
        %1816 = vmatprep.subr.mxu0 0.0
        %1817 = vmatpush1.msra.mxu0 0.0
        %1818 = vmatprep.subr.mxu0 0.0
        %1819 = vmatpush1.msra.mxu0 0.0
        %1820 = vmatprep.subr.mxu0 0.0
        %1821 = vmatpush1.msra.mxu0 0.0
        %1822 = vmatprep.subr.mxu0 0.0
        %1823 = vmatpush1.msra.mxu0 0.0
        %1824 = vmatprep.subr.mxu0 0.0
        %1825 = vmatpush1.msra.mxu0 0.0
        %1826 = vmatprep.subr.mxu0 0.0
        %1827 = vmatpush1.msra.mxu0 0.0
        %1828 = vmatprep.subr.mxu0 0.0
        %1829 = vmatpush1.msra.mxu0 0.0
        %1830 = vmatprep.subr.mxu0 0.0
        %1831 = vmatpush1.msra.mxu0 0.0
        %1832 = vmatprep.subr.mxu0 0.0
        %1833 = vmatpush1.msra.mxu0 0.0
        %1834 = vmatprep.subr.mxu0 0.0
        %1835 = vmatpush1.msra.mxu0 0.0
        %1836 = vmatprep.subr.mxu0 0.0
        %1837 = vmatpush1.msra.mxu0 0.0
        %1838 = vmatprep.subr.mxu0 0.0
        %1839 = vmatpush1.msra.mxu0 0.0
        %1840 = vmatprep.subr.mxu0 0.0
        %1841 = vmatpush1.msra.mxu0 0.0
        %1842 = vmatprep.subr.mxu0 0.0
        %1843 = vmatpush1.msra.mxu0 0.0
        %1844 = vmatprep.subr.mxu0 0.0
        %1845 = vmatpush1.msra.mxu0 0.0
        %1846 = vmatprep.mubr.f32.mxu0 0.0
        %1847 = vmatmul.mubr.f32.gmra.mrb[0].mxu0 %v1774
        %v1848 = vpop.f32.mrb[0].mxu0
        %v1849 = vadd.f32 %v1688, %v1848
        %v1850 = vpop.f32.mrb[0].mxu0
        %v1851 = vadd.f32 %v1690, %v1850
        %1852 = vdwg.mxu0
        %1853 = vmatprep.subr.mxu0 0.0
        %1854 = vmatpush1.msra.mxu0 %v1780
        %1855 = vmatprep.subr.mxu0 0.0
        %1856 = vmatpush1.msra.mxu0 0.0
        %1857 = vmatprep.subr.mxu0 0.0
        %1858 = vmatpush1.msra.mxu0 0.0
        %1859 = vmatprep.subr.mxu0 0.0
        %1860 = vmatpush1.msra.mxu0 0.0
        %1861 = vmatprep.subr.mxu0 0.0
        %1862 = vmatpush1.msra.mxu0 0.0
        %1863 = vmatprep.subr.mxu0 0.0
        %1864 = vmatpush1.msra.mxu0 0.0
        %1865 = vmatprep.subr.mxu0 0.0
        %1866 = vmatpush1.msra.mxu0 0.0
        %1867 = vmatprep.subr.mxu0 0.0
        %1868 = vmatpush1.msra.mxu0 0.0
        %1869 = vmatprep.subr.mxu0 0.0
        %1870 = vmatpush1.msra.mxu0 0.0
        %1871 = vmatprep.subr.mxu0 0.0
        %1872 = vmatpush1.msra.mxu0 0.0
        %1873 = vmatprep.subr.mxu0 0.0
        %1874 = vmatpush1.msra.mxu0 0.0
        %1875 = vmatprep.subr.mxu0 0.0
        %1876 = vmatpush1.msra.mxu0 0.0
        %1877 = vmatprep.subr.mxu0 0.0
        %1878 = vmatpush1.msra.mxu0 0.0
        %1879 = vmatprep.subr.mxu0 0.0
        %1880 = vmatpush1.msra.mxu0 0.0
        %1881 = vmatprep.subr.mxu0 0.0
        %1882 = vmatpush1.msra.mxu0 0.0
        %1883 = vmatprep.subr.mxu0 0.0
        %1884 = vmatpush1.msra.mxu0 0.0
        %1885 = vmatprep.subr.mxu0 0.0
        %1886 = vmatpush1.msra.mxu0 0.0
        %1887 = vmatprep.subr.mxu0 0.0
        %1888 = vmatpush1.msra.mxu0 0.0
        %1889 = vmatprep.subr.mxu0 0.0
        %1890 = vmatpush1.msra.mxu0 0.0
        %1891 = vmatprep.subr.mxu0 0.0
        %1892 = vmatpush1.msra.mxu0 0.0
        %1893 = vmatprep.subr.mxu0 0.0
        %1894 = vmatpush1.msra.mxu0 0.0
        %1895 = vmatprep.subr.mxu0 0.0
        %1896 = vmatpush1.msra.mxu0 0.0
        %1897 = vmatprep.subr.mxu0 0.0
        %1898 = vmatpush1.msra.mxu0 0.0
        %1899 = vmatprep.subr.mxu0 0.0
        %1900 = vmatpush1.msra.mxu0 0.0
        %1901 = vmatprep.subr.mxu0 0.0
        %1902 = vmatpush1.msra.mxu0 0.0
        %1903 = vmatprep.subr.mxu0 0.0
        %1904 = vmatpush1.msra.mxu0 0.0
        %1905 = vmatprep.subr.mxu0 0.0
        %1906 = vmatpush1.msra.mxu0 0.0
        %1907 = vmatprep.subr.mxu0 0.0
        %1908 = vmatpush1.msra.mxu0 0.0
        %1909 = vmatprep.subr.mxu0 0.0
        %1910 = vmatpush1.msra.mxu0 0.0
        %1911 = vmatprep.subr.mxu0 0.0
        %1912 = vmatpush1.msra.mxu0 0.0
        %1913 = vmatprep.subr.mxu0 0.0
        %1914 = vmatpush1.msra.mxu0 0.0
        %1915 = vmatprep.subr.mxu0 0.0
        %1916 = vmatpush1.msra.mxu0 0.0
        %1917 = vmatprep.mubr.f32.mxu0 0.0
        %1918 = vmatmul.mubr.f32.gmra.mrb[0].mxu0 %v1774
        %v1919 = vpop.f32.mrb[0].mxu0
        %v1920 = vadd.f32 %v1759, %v1919
        %v1921 = vpop.f32.mrb[0].mxu0
        %1922 = vdwg.mxu0
        %v1923 = vld [vmem:[%s208] sm:$0xff]
        %v1924 = vld [vmem:[%s208 + $0x8] sm:$0xff]
        %s1925 = scalar_lea.vmem %s212, 40
        %v1926 = vld [vmem:[%s1925] sm:$0xf]
        %v1929 = vcombine.high %v1923, %v1923
        %v1930 = vcombine.high %v1924, %v1924
        %1931 = vrot.lane.b32.xlu0 %v1923, 92
        %v1932 = vpop.permute.xlu0 %1931
        %1933 = vrot.lane.b32.xlu0 %v1929, 92
        %v1934 = vpop.permute.xlu0 %1933
        %1935 = vrot.lane.b32.xlu0 %v1924, 92
        %v1936 = vpop.permute.xlu0 %1935
        %1937 = vrot.lane.b32.xlu0 %v1930, 92
        %v1938 = vpop.permute.xlu0 %1937
        %vm1939 = vcmask 752640
        %v1940 = vsel %vm1939, %v1932, %v1934
        %v1941 = vsel %vm1939, %v1934, %v1936
        %v1942 = vsel %vm1939, %v1936, %v1938
        %v1944 = vsel %vm240, %v1926, 0
        %v1946 = vsel %vm244, %v1940, 0
        %v1948 = vsel %vm244, %v1941, 0
        %v1950 = vsel %vm244, %v1942, 0
        %1952 = vmatprep.subr.mxu0 %v1948
        %1953 = vmatpush1.msra.mxu0 %v1946
        %1954 = vmatprep.subr.mxu0 0.0
        %1955 = vmatpush1.msra.mxu0 0.0
        %1956 = vmatprep.subr.mxu0 0.0
        %1957 = vmatpush1.msra.mxu0 0.0
        %1958 = vmatprep.subr.mxu0 0.0
        %1959 = vmatpush1.msra.mxu0 0.0
        %1960 = vmatprep.subr.mxu0 0.0
        %1961 = vmatpush1.msra.mxu0 0.0
        %1962 = vmatprep.subr.mxu0 0.0
        %1963 = vmatpush1.msra.mxu0 0.0
        %1964 = vmatprep.subr.mxu0 0.0
        %1965 = vmatpush1.msra.mxu0 0.0
        %1966 = vmatprep.subr.mxu0 0.0
        %1967 = vmatpush1.msra.mxu0 0.0
        %1968 = vmatprep.subr.mxu0 0.0
        %1969 = vmatpush1.msra.mxu0 0.0
        %1970 = vmatprep.subr.mxu0 0.0
        %1971 = vmatpush1.msra.mxu0 0.0
        %1972 = vmatprep.subr.mxu0 0.0
        %1973 = vmatpush1.msra.mxu0 0.0
        %1974 = vmatprep.subr.mxu0 0.0
        %1975 = vmatpush1.msra.mxu0 0.0
        %1976 = vmatprep.subr.mxu0 0.0
        %1977 = vmatpush1.msra.mxu0 0.0
        %1978 = vmatprep.subr.mxu0 0.0
        %1979 = vmatpush1.msra.mxu0 0.0
        %1980 = vmatprep.subr.mxu0 0.0
        %1981 = vmatpush1.msra.mxu0 0.0
        %1982 = vmatprep.subr.mxu0 0.0
        %1983 = vmatpush1.msra.mxu0 0.0
        %1984 = vmatprep.subr.mxu0 0.0
        %1985 = vmatpush1.msra.mxu0 0.0
        %1986 = vmatprep.subr.mxu0 0.0
        %1987 = vmatpush1.msra.mxu0 0.0
        %1988 = vmatprep.subr.mxu0 0.0
        %1989 = vmatpush1.msra.mxu0 0.0
        %1990 = vmatprep.subr.mxu0 0.0
        %1991 = vmatpush1.msra.mxu0 0.0
        %1992 = vmatprep.subr.mxu0 0.0
        %1993 = vmatpush1.msra.mxu0 0.0
        %1994 = vmatprep.subr.mxu0 0.0
        %1995 = vmatpush1.msra.mxu0 0.0
        %1996 = vmatprep.subr.mxu0 0.0
        %1997 = vmatpush1.msra.mxu0 0.0
        %1998 = vmatprep.subr.mxu0 0.0
        %1999 = vmatpush1.msra.mxu0 0.0
        %2000 = vmatprep.subr.mxu0 0.0
        %2001 = vmatpush1.msra.mxu0 0.0
        %2002 = vmatprep.subr.mxu0 0.0
        %2003 = vmatpush1.msra.mxu0 0.0
        %2004 = vmatprep.subr.mxu0 0.0
        %2005 = vmatpush1.msra.mxu0 0.0
        %2006 = vmatprep.subr.mxu0 0.0
        %2007 = vmatpush1.msra.mxu0 0.0
        %2008 = vmatprep.subr.mxu0 0.0
        %2009 = vmatpush1.msra.mxu0 0.0
        %2010 = vmatprep.subr.mxu0 0.0
        %2011 = vmatpush1.msra.mxu0 0.0
        %2012 = vmatprep.subr.mxu0 0.0
        %2013 = vmatpush1.msra.mxu0 0.0
        %2014 = vmatprep.subr.mxu0 0.0
        %2015 = vmatpush1.msra.mxu0 0.0
        %2016 = vmatprep.mubr.f32.mxu0 0.0
        %2017 = vmatmul.mubr.f32.gmra.mrb[0].mxu0 %v1944
        %v2018 = vpop.f32.mrb[0].mxu0
        %v2019 = vadd.f32 0.0, %v2018
        %v2020 = vpop.f32.mrb[0].mxu0
        %v2021 = vadd.f32 0.0, %v2020
        %2022 = vdwg.mxu0
        %2023 = vmatprep.subr.mxu0 0.0
        %2024 = vmatpush1.msra.mxu0 %v1950
        %2025 = vmatprep.subr.mxu0 0.0
        %2026 = vmatpush1.msra.mxu0 0.0
        %2027 = vmatprep.subr.mxu0 0.0
        %2028 = vmatpush1.msra.mxu0 0.0
        %2029 = vmatprep.subr.mxu0 0.0
        %2030 = vmatpush1.msra.mxu0 0.0
        %2031 = vmatprep.subr.mxu0 0.0
        %2032 = vmatpush1.msra.mxu0 0.0
        %2033 = vmatprep.subr.mxu0 0.0
        %2034 = vmatpush1.msra.mxu0 0.0
        %2035 = vmatprep.subr.mxu0 0.0
        %2036 = vmatpush1.msra.mxu0 0.0
        %2037 = vmatprep.subr.mxu0 0.0
        %2038 = vmatpush1.msra.mxu0 0.0
        %2039 = vmatprep.subr.mxu0 0.0
        %2040 = vmatpush1.msra.mxu0 0.0
        %2041 = vmatprep.subr.mxu0 0.0
        %2042 = vmatpush1.msra.mxu0 0.0
        %2043 = vmatprep.subr.mxu0 0.0
        %2044 = vmatpush1.msra.mxu0 0.0
        %2045 = vmatprep.subr.mxu0 0.0
        %2046 = vmatpush1.msra.mxu0 0.0
        %2047 = vmatprep.subr.mxu0 0.0
        %2048 = vmatpush1.msra.mxu0 0.0
        %2049 = vmatprep.subr.mxu0 0.0
        %2050 = vmatpush1.msra.mxu0 0.0
        %2051 = vmatprep.subr.mxu0 0.0
        %2052 = vmatpush1.msra.mxu0 0.0
        %2053 = vmatprep.subr.mxu0 0.0
        %2054 = vmatpush1.msra.mxu0 0.0
        %2055 = vmatprep.subr.mxu0 0.0
        %2056 = vmatpush1.msra.mxu0 0.0
        %2057 = vmatprep.subr.mxu0 0.0
        %2058 = vmatpush1.msra.mxu0 0.0
        %2059 = vmatprep.subr.mxu0 0.0
        %2060 = vmatpush1.msra.mxu0 0.0
        %2061 = vmatprep.subr.mxu0 0.0
        %2062 = vmatpush1.msra.mxu0 0.0
        %2063 = vmatprep.subr.mxu0 0.0
        %2064 = vmatpush1.msra.mxu0 0.0
        %2065 = vmatprep.subr.mxu0 0.0
        %2066 = vmatpush1.msra.mxu0 0.0
        %2067 = vmatprep.subr.mxu0 0.0
        %2068 = vmatpush1.msra.mxu0 0.0
        %2069 = vmatprep.subr.mxu0 0.0
        %2070 = vmatpush1.msra.mxu0 0.0
        %2071 = vmatprep.subr.mxu0 0.0
        %2072 = vmatpush1.msra.mxu0 0.0
        %2073 = vmatprep.subr.mxu0 0.0
        %2074 = vmatpush1.msra.mxu0 0.0
        %2075 = vmatprep.subr.mxu0 0.0
        %2076 = vmatpush1.msra.mxu0 0.0
        %2077 = vmatprep.subr.mxu0 0.0
        %2078 = vmatpush1.msra.mxu0 0.0
        %2079 = vmatprep.subr.mxu0 0.0
        %2080 = vmatpush1.msra.mxu0 0.0
        %2081 = vmatprep.subr.mxu0 0.0
        %2082 = vmatpush1.msra.mxu0 0.0
        %2083 = vmatprep.subr.mxu0 0.0
        %2084 = vmatpush1.msra.mxu0 0.0
        %2085 = vmatprep.subr.mxu0 0.0
        %2086 = vmatpush1.msra.mxu0 0.0
        %2087 = vmatprep.mubr.f32.mxu0 0.0
        %2088 = vmatmul.mubr.f32.gmra.mrb[0].mxu0 %v1944
        %v2089 = vpop.f32.mrb[0].mxu0
        %v2090 = vadd.f32 0.0, %v2089
        %v2091 = vpop.f32.mrb[0].mxu0
        %2092 = vdwg.mxu0
        %v2093 = vadd.f32 %v1849, %v2019
        %v2094 = vadd.f32 %v1851, %v2021
        %v2095 = vadd.f32 %v1920, %v2090
        %v2096 = vld [vmem:[%s208] sm:$0xff]
        %v2097 = vld [vmem:[%s208 + $0x8] sm:$0xff]
        %s2098 = scalar_lea.vmem %s212, 44
        %v2099 = vld [vmem:[%s2098] sm:$0xf]
        %v2102 = vcombine.high %v2096, %v2096
        %v2103 = vcombine.high %v2097, %v2097
        %2104 = vrot.lane.b32.xlu0 %v2096, 91
        %v2105 = vpop.permute.xlu0 %2104
        %2106 = vrot.lane.b32.xlu0 %v2102, 91
        %v2107 = vpop.permute.xlu0 %2106
        %2108 = vrot.lane.b32.xlu0 %v2097, 91
        %v2109 = vpop.permute.xlu0 %2108
        %2110 = vrot.lane.b32.xlu0 %v2103, 91
        %v2111 = vpop.permute.xlu0 %2110
        %vm2112 = vcmask 744448
        %v2113 = vsel %vm2112, %v2105, %v2107
        %v2114 = vsel %vm2112, %v2107, %v2109
        %v2115 = vsel %vm2112, %v2109, %v2111
        %v2117 = vsel %vm240, %v2099, 0
        %v2119 = vsel %vm244, %v2113, 0
        %v2121 = vsel %vm244, %v2114, 0
        %v2123 = vsel %vm244, %v2115, 0
        %2125 = vmatprep.subr.mxu0 %v2121
        %2126 = vmatpush1.msra.mxu0 %v2119
        %2127 = vmatprep.subr.mxu0 0.0
        %2128 = vmatpush1.msra.mxu0 0.0
        %2129 = vmatprep.subr.mxu0 0.0
        %2130 = vmatpush1.msra.mxu0 0.0
        %2131 = vmatprep.subr.mxu0 0.0
        %2132 = vmatpush1.msra.mxu0 0.0
        %2133 = vmatprep.subr.mxu0 0.0
        %2134 = vmatpush1.msra.mxu0 0.0
        %2135 = vmatprep.subr.mxu0 0.0
        %2136 = vmatpush1.msra.mxu0 0.0
        %2137 = vmatprep.subr.mxu0 0.0
        %2138 = vmatpush1.msra.mxu0 0.0
        %2139 = vmatprep.subr.mxu0 0.0
        %2140 = vmatpush1.msra.mxu0 0.0
        %2141 = vmatprep.subr.mxu0 0.0
        %2142 = vmatpush1.msra.mxu0 0.0
        %2143 = vmatprep.subr.mxu0 0.0
        %2144 = vmatpush1.msra.mxu0 0.0
        %2145 = vmatprep.subr.mxu0 0.0
        %2146 = vmatpush1.msra.mxu0 0.0
        %2147 = vmatprep.subr.mxu0 0.0
        %2148 = vmatpush1.msra.mxu0 0.0
        %2149 = vmatprep.subr.mxu0 0.0
        %2150 = vmatpush1.msra.mxu0 0.0
        %2151 = vmatprep.subr.mxu0 0.0
        %2152 = vmatpush1.msra.mxu0 0.0
        %2153 = vmatprep.subr.mxu0 0.0
        %2154 = vmatpush1.msra.mxu0 0.0
        %2155 = vmatprep.subr.mxu0 0.0
        %2156 = vmatpush1.msra.mxu0 0.0
        %2157 = vmatprep.subr.mxu0 0.0
        %2158 = vmatpush1.msra.mxu0 0.0
        %2159 = vmatprep.subr.mxu0 0.0
        %2160 = vmatpush1.msra.mxu0 0.0
        %2161 = vmatprep.subr.mxu0 0.0
        %2162 = vmatpush1.msra.mxu0 0.0
        %2163 = vmatprep.subr.mxu0 0.0
        %2164 = vmatpush1.msra.mxu0 0.0
        %2165 = vmatprep.subr.mxu0 0.0
        %2166 = vmatpush1.msra.mxu0 0.0
        %2167 = vmatprep.subr.mxu0 0.0
        %2168 = vmatpush1.msra.mxu0 0.0
        %2169 = vmatprep.subr.mxu0 0.0
        %2170 = vmatpush1.msra.mxu0 0.0
        %2171 = vmatprep.subr.mxu0 0.0
        %2172 = vmatpush1.msra.mxu0 0.0
        %2173 = vmatprep.subr.mxu0 0.0
        %2174 = vmatpush1.msra.mxu0 0.0
        %2175 = vmatprep.subr.mxu0 0.0
        %2176 = vmatpush1.msra.mxu0 0.0
        %2177 = vmatprep.subr.mxu0 0.0
        %2178 = vmatpush1.msra.mxu0 0.0
        %2179 = vmatprep.subr.mxu0 0.0
        %2180 = vmatpush1.msra.mxu0 0.0
        %2181 = vmatprep.subr.mxu0 0.0
        %2182 = vmatpush1.msra.mxu0 0.0
        %2183 = vmatprep.subr.mxu0 0.0
        %2184 = vmatpush1.msra.mxu0 0.0
        %2185 = vmatprep.subr.mxu0 0.0
        %2186 = vmatpush1.msra.mxu0 0.0
        %2187 = vmatprep.subr.mxu0 0.0
        %2188 = vmatpush1.msra.mxu0 0.0
        %2189 = vmatprep.mubr.f32.mxu0 0.0
        %2190 = vmatmul.mubr.f32.gmra.mrb[0].mxu0 %v2117
        %v2191 = vpop.f32.mrb[0].mxu0
        %v2192 = vadd.f32 0.0, %v2191
        %v2193 = vpop.f32.mrb[0].mxu0
        %v2194 = vadd.f32 0.0, %v2193
        %2195 = vdwg.mxu0
        %2196 = vmatprep.subr.mxu0 0.0
        %2197 = vmatpush1.msra.mxu0 %v2123
        %2198 = vmatprep.subr.mxu0 0.0
        %2199 = vmatpush1.msra.mxu0 0.0
        %2200 = vmatprep.subr.mxu0 0.0
        %2201 = vmatpush1.msra.mxu0 0.0
        %2202 = vmatprep.subr.mxu0 0.0
        %2203 = vmatpush1.msra.mxu0 0.0
        %2204 = vmatprep.subr.mxu0 0.0
        %2205 = vmatpush1.msra.mxu0 0.0
        %2206 = vmatprep.subr.mxu0 0.0
        %2207 = vmatpush1.msra.mxu0 0.0
        %2208 = vmatprep.subr.mxu0 0.0
        %2209 = vmatpush1.msra.mxu0 0.0
        %2210 = vmatprep.subr.mxu0 0.0
        %2211 = vmatpush1.msra.mxu0 0.0
        %2212 = vmatprep.subr.mxu0 0.0
        %2213 = vmatpush1.msra.mxu0 0.0
        %2214 = vmatprep.subr.mxu0 0.0
        %2215 = vmatpush1.msra.mxu0 0.0
        %2216 = vmatprep.subr.mxu0 0.0
        %2217 = vmatpush1.msra.mxu0 0.0
        %2218 = vmatprep.subr.mxu0 0.0
        %2219 = vmatpush1.msra.mxu0 0.0
        %2220 = vmatprep.subr.mxu0 0.0
        %2221 = vmatpush1.msra.mxu0 0.0
        %2222 = vmatprep.subr.mxu0 0.0
        %2223 = vmatpush1.msra.mxu0 0.0
        %2224 = vmatprep.subr.mxu0 0.0
        %2225 = vmatpush1.msra.mxu0 0.0
        %2226 = vmatprep.subr.mxu0 0.0
        %2227 = vmatpush1.msra.mxu0 0.0
        %2228 = vmatprep.subr.mxu0 0.0
        %2229 = vmatpush1.msra.mxu0 0.0
        %2230 = vmatprep.subr.mxu0 0.0
        %2231 = vmatpush1.msra.mxu0 0.0
        %2232 = vmatprep.subr.mxu0 0.0
        %2233 = vmatpush1.msra.mxu0 0.0
        %2234 = vmatprep.subr.mxu0 0.0
        %2235 = vmatpush1.msra.mxu0 0.0
        %2236 = vmatprep.subr.mxu0 0.0
        %2237 = vmatpush1.msra.mxu0 0.0
        %2238 = vmatprep.subr.mxu0 0.0
        %2239 = vmatpush1.msra.mxu0 0.0
        %2240 = vmatprep.subr.mxu0 0.0
        %2241 = vmatpush1.msra.mxu0 0.0
        %2242 = vmatprep.subr.mxu0 0.0
        %2243 = vmatpush1.msra.mxu0 0.0
        %2244 = vmatprep.subr.mxu0 0.0
        %2245 = vmatpush1.msra.mxu0 0.0
        %2246 = vmatprep.subr.mxu0 0.0
        %2247 = vmatpush1.msra.mxu0 0.0
        %2248 = vmatprep.subr.mxu0 0.0
        %2249 = vmatpush1.msra.mxu0 0.0
        %2250 = vmatprep.subr.mxu0 0.0
        %2251 = vmatpush1.msra.mxu0 0.0
        %2252 = vmatprep.subr.mxu0 0.0
        %2253 = vmatpush1.msra.mxu0 0.0
        %2254 = vmatprep.subr.mxu0 0.0
        %2255 = vmatpush1.msra.mxu0 0.0
        %2256 = vmatprep.subr.mxu0 0.0
        %2257 = vmatpush1.msra.mxu0 0.0
        %2258 = vmatprep.subr.mxu0 0.0
        %2259 = vmatpush1.msra.mxu0 0.0
        %2260 = vmatprep.mubr.f32.mxu0 0.0
        %2261 = vmatmul.mubr.f32.gmra.mrb[0].mxu0 %v2117
        %v2262 = vpop.f32.mrb[0].mxu0
        %v2263 = vadd.f32 0.0, %v2262
        %v2264 = vpop.f32.mrb[0].mxu0
        %2265 = vdwg.mxu0
        %v2266 = vadd.f32 %v2093, %v2192
        %v2267 = vadd.f32 %v2094, %v2194
        %v2268 = vadd.f32 %v2095, %v2263
        %v2269 = vadd.f32 %v2266, %v892
        %v2270 = vadd.f32 %v2267, %v892
        %v2271 = vadd.f32 %v2268, %v892
        %v2274 = vcombine.low %v2269, %v2270
        %s2276 = scalar_lea.vmem %s203, 24 [#allocation2]
        %2277 = vst [vmem:[%s2276] sm:$0xff] %v2274
        %2278 = vst [vmem:[%s2276 + $0x8] sm:$0xf] %v2271
        %v2279 = vld [vmem:[%s208] sm:$0xff]
        %v2280 = vld [vmem:[%s208 + $0x8] sm:$0xff]
        %s2281 = scalar_lea.vmem %s212, 48
        %v2282 = vld [vmem:[%s2281] sm:$0xf]
        %s2283 = scalar_lea.vmem %s212, 52
        %v2284 = vld [vmem:[%s2283] sm:$0xf]
        %v2287 = vcombine.high %v2279, %v2279
        %v2288 = vcombine.high %v2280, %v2280
        %2289 = vrot.lane.b32.xlu0 %v2279, 108
        %v2290 = vpop.permute.xlu0 %2289
        %2291 = vrot.lane.b32.xlu0 %v2287, 108
        %v2292 = vpop.permute.xlu0 %2291
        %2293 = vrot.lane.b32.xlu0 %v2280, 108
        %v2294 = vpop.permute.xlu0 %2293
        %2295 = vrot.lane.b32.xlu0 %v2288, 108
        %v2296 = vpop.permute.xlu0 %2295
        %v2297 = vsel %vm1424, %v2290, %v2292
        %v2298 = vsel %vm1424, %v2292, %v2294
        %v2299 = vsel %vm1424, %v2294, %v2296
        %v2301 = vsel %vm240, %v2284, 0
        %v2303 = vsel %vm244, %v2297, 0
        %v2305 = vsel %vm244, %v2298, 0
        %v2307 = vsel %vm244, %v2299, 0
        %2309 = vmatprep.subr.mxu0 %v2305
        %2310 = vmatpush1.msra.mxu0 %v2303
        %2311 = vmatprep.subr.mxu0 0.0
        %2312 = vmatpush1.msra.mxu0 0.0
        %2313 = vmatprep.subr.mxu0 0.0
        %2314 = vmatpush1.msra.mxu0 0.0
        %2315 = vmatprep.subr.mxu0 0.0
        %2316 = vmatpush1.msra.mxu0 0.0
        %2317 = vmatprep.subr.mxu0 0.0
        %2318 = vmatpush1.msra.mxu0 0.0
        %2319 = vmatprep.subr.mxu0 0.0
        %2320 = vmatpush1.msra.mxu0 0.0
        %2321 = vmatprep.subr.mxu0 0.0
        %2322 = vmatpush1.msra.mxu0 0.0
        %2323 = vmatprep.subr.mxu0 0.0
        %2324 = vmatpush1.msra.mxu0 0.0
        %2325 = vmatprep.subr.mxu0 0.0
        %2326 = vmatpush1.msra.mxu0 0.0
        %2327 = vmatprep.subr.mxu0 0.0
        %2328 = vmatpush1.msra.mxu0 0.0
        %2329 = vmatprep.subr.mxu0 0.0
        %2330 = vmatpush1.msra.mxu0 0.0
        %2331 = vmatprep.subr.mxu0 0.0
        %2332 = vmatpush1.msra.mxu0 0.0
        %2333 = vmatprep.subr.mxu0 0.0
        %2334 = vmatpush1.msra.mxu0 0.0
        %2335 = vmatprep.subr.mxu0 0.0
        %2336 = vmatpush1.msra.mxu0 0.0
        %2337 = vmatprep.subr.mxu0 0.0
        %2338 = vmatpush1.msra.mxu0 0.0
        %2339 = vmatprep.subr.mxu0 0.0
        %2340 = vmatpush1.msra.mxu0 0.0
        %2341 = vmatprep.subr.mxu0 0.0
        %2342 = vmatpush1.msra.mxu0 0.0
        %2343 = vmatprep.subr.mxu0 0.0
        %2344 = vmatpush1.msra.mxu0 0.0
        %2345 = vmatprep.subr.mxu0 0.0
        %2346 = vmatpush1.msra.mxu0 0.0
        %2347 = vmatprep.subr.mxu0 0.0
        %2348 = vmatpush1.msra.mxu0 0.0
        %2349 = vmatprep.subr.mxu0 0.0
        %2350 = vmatpush1.msra.mxu0 0.0
        %2351 = vmatprep.subr.mxu0 0.0
        %2352 = vmatpush1.msra.mxu0 0.0
        %2353 = vmatprep.subr.mxu0 0.0
        %2354 = vmatpush1.msra.mxu0 0.0
        %2355 = vmatprep.subr.mxu0 0.0
        %2356 = vmatpush1.msra.mxu0 0.0
        %2357 = vmatprep.subr.mxu0 0.0
        %2358 = vmatpush1.msra.mxu0 0.0
        %2359 = vmatprep.subr.mxu0 0.0
        %2360 = vmatpush1.msra.mxu0 0.0
        %2361 = vmatprep.subr.mxu0 0.0
        %2362 = vmatpush1.msra.mxu0 0.0
        %2363 = vmatprep.subr.mxu0 0.0
        %2364 = vmatpush1.msra.mxu0 0.0
        %2365 = vmatprep.subr.mxu0 0.0
        %2366 = vmatpush1.msra.mxu0 0.0
        %2367 = vmatprep.subr.mxu0 0.0
        %2368 = vmatpush1.msra.mxu0 0.0
        %2369 = vmatprep.subr.mxu0 0.0
        %2370 = vmatpush1.msra.mxu0 0.0
        %2371 = vmatprep.subr.mxu0 0.0
        %2372 = vmatpush1.msra.mxu0 0.0
        %2373 = vmatprep.mubr.f32.mxu0 0.0
        %2374 = vmatmul.mubr.f32.gmra.mrb[0].mxu0 %v2301
        %v2375 = vpop.f32.mrb[0].mxu0
        %v2376 = vadd.f32 0.0, %v2375
        %v2377 = vpop.f32.mrb[0].mxu0
        %v2378 = vadd.f32 0.0, %v2377
        %2379 = vdwg.mxu0
        %2380 = vmatprep.subr.mxu0 0.0
        %2381 = vmatpush1.msra.mxu0 %v2307
        %2382 = vmatprep.subr.mxu0 0.0
        %2383 = vmatpush1.msra.mxu0 0.0
        %2384 = vmatprep.subr.mxu0 0.0
        %2385 = vmatpush1.msra.mxu0 0.0
        %2386 = vmatprep.subr.mxu0 0.0
        %2387 = vmatpush1.msra.mxu0 0.0
        %2388 = vmatprep.subr.mxu0 0.0
        %2389 = vmatpush1.msra.mxu0 0.0
        %2390 = vmatprep.subr.mxu0 0.0
        %2391 = vmatpush1.msra.mxu0 0.0
        %2392 = vmatprep.subr.mxu0 0.0
        %2393 = vmatpush1.msra.mxu0 0.0
        %2394 = vmatprep.subr.mxu0 0.0
        %2395 = vmatpush1.msra.mxu0 0.0
        %2396 = vmatprep.subr.mxu0 0.0
        %2397 = vmatpush1.msra.mxu0 0.0
        %2398 = vmatprep.subr.mxu0 0.0
        %2399 = vmatpush1.msra.mxu0 0.0
        %2400 = vmatprep.subr.mxu0 0.0
        %2401 = vmatpush1.msra.mxu0 0.0
        %2402 = vmatprep.subr.mxu0 0.0
        %2403 = vmatpush1.msra.mxu0 0.0
        %2404 = vmatprep.subr.mxu0 0.0
        %2405 = vmatpush1.msra.mxu0 0.0
        %2406 = vmatprep.subr.mxu0 0.0
        %2407 = vmatpush1.msra.mxu0 0.0
        %2408 = vmatprep.subr.mxu0 0.0
        %2409 = vmatpush1.msra.mxu0 0.0
        %2410 = vmatprep.subr.mxu0 0.0
        %2411 = vmatpush1.msra.mxu0 0.0
        %2412 = vmatprep.subr.mxu0 0.0
        %2413 = vmatpush1.msra.mxu0 0.0
        %2414 = vmatprep.subr.mxu0 0.0
        %2415 = vmatpush1.msra.mxu0 0.0
        %2416 = vmatprep.subr.mxu0 0.0
        %2417 = vmatpush1.msra.mxu0 0.0
        %2418 = vmatprep.subr.mxu0 0.0
        %2419 = vmatpush1.msra.mxu0 0.0
        %2420 = vmatprep.subr.mxu0 0.0
        %2421 = vmatpush1.msra.mxu0 0.0
        %2422 = vmatprep.subr.mxu0 0.0
        %2423 = vmatpush1.msra.mxu0 0.0
        %2424 = vmatprep.subr.mxu0 0.0
        %2425 = vmatpush1.msra.mxu0 0.0
        %2426 = vmatprep.subr.mxu0 0.0
        %2427 = vmatpush1.msra.mxu0 0.0
        %2428 = vmatprep.subr.mxu0 0.0
        %2429 = vmatpush1.msra.mxu0 0.0
        %2430 = vmatprep.subr.mxu0 0.0
        %2431 = vmatpush1.msra.mxu0 0.0
        %2432 = vmatprep.subr.mxu0 0.0
        %2433 = vmatpush1.msra.mxu0 0.0
        %2434 = vmatprep.subr.mxu0 0.0
        %2435 = vmatpush1.msra.mxu0 0.0
        %2436 = vmatprep.subr.mxu0 0.0
        %2437 = vmatpush1.msra.mxu0 0.0
        %2438 = vmatprep.subr.mxu0 0.0
        %2439 = vmatpush1.msra.mxu0 0.0
        %2440 = vmatprep.subr.mxu0 0.0
        %2441 = vmatpush1.msra.mxu0 0.0
        %2442 = vmatprep.subr.mxu0 0.0
        %2443 = vmatpush1.msra.mxu0 0.0
        %2444 = vmatprep.mubr.f32.mxu0 0.0
        %2445 = vmatmul.mubr.f32.gmra.mrb[0].mxu0 %v2301
        %v2446 = vpop.f32.mrb[0].mxu0
        %v2447 = vadd.f32 0.0, %v2446
        %v2448 = vpop.f32.mrb[0].mxu0
        %2449 = vdwg.mxu0
        %2450 = vrot.lane.b32.xlu0 %v2279, 109
        %v2451 = vpop.permute.xlu0 %2450
        %2452 = vrot.lane.b32.xlu0 %v2287, 109
        %v2453 = vpop.permute.xlu0 %2452
        %2454 = vrot.lane.b32.xlu0 %v2280, 109
        %v2455 = vpop.permute.xlu0 %2454
        %2456 = vrot.lane.b32.xlu0 %v2288, 109
        %v2457 = vpop.permute.xlu0 %2456
        %v2458 = vsel %vm732, %v2451, %v2453
        %v2459 = vsel %vm732, %v2453, %v2455
        %v2460 = vsel %vm732, %v2455, %v2457
        %v2462 = vsel %vm240, %v2282, 0
        %v2464 = vsel %vm244, %v2458, 0
        %v2466 = vsel %vm244, %v2459, 0
        %v2468 = vsel %vm244, %v2460, 0
        %2470 = vmatprep.subr.mxu0 %v2466
        %2471 = vmatpush1.msra.mxu0 %v2464
        %2472 = vmatprep.subr.mxu0 0.0
        %2473 = vmatpush1.msra.mxu0 0.0
        %2474 = vmatprep.subr.mxu0 0.0
        %2475 = vmatpush1.msra.mxu0 0.0
        %2476 = vmatprep.subr.mxu0 0.0
        %2477 = vmatpush1.msra.mxu0 0.0
        %2478 = vmatprep.subr.mxu0 0.0
        %2479 = vmatpush1.msra.mxu0 0.0
        %2480 = vmatprep.subr.mxu0 0.0
        %2481 = vmatpush1.msra.mxu0 0.0
        %2482 = vmatprep.subr.mxu0 0.0
        %2483 = vmatpush1.msra.mxu0 0.0
        %2484 = vmatprep.subr.mxu0 0.0
        %2485 = vmatpush1.msra.mxu0 0.0
        %2486 = vmatprep.subr.mxu0 0.0
        %2487 = vmatpush1.msra.mxu0 0.0
        %2488 = vmatprep.subr.mxu0 0.0
        %2489 = vmatpush1.msra.mxu0 0.0
        %2490 = vmatprep.subr.mxu0 0.0
        %2491 = vmatpush1.msra.mxu0 0.0
        %2492 = vmatprep.subr.mxu0 0.0
        %2493 = vmatpush1.msra.mxu0 0.0
        %2494 = vmatprep.subr.mxu0 0.0
        %2495 = vmatpush1.msra.mxu0 0.0
        %2496 = vmatprep.subr.mxu0 0.0
        %2497 = vmatpush1.msra.mxu0 0.0
        %2498 = vmatprep.subr.mxu0 0.0
        %2499 = vmatpush1.msra.mxu0 0.0
        %2500 = vmatprep.subr.mxu0 0.0
        %2501 = vmatpush1.msra.mxu0 0.0
        %2502 = vmatprep.subr.mxu0 0.0
        %2503 = vmatpush1.msra.mxu0 0.0
        %2504 = vmatprep.subr.mxu0 0.0
        %2505 = vmatpush1.msra.mxu0 0.0
        %2506 = vmatprep.subr.mxu0 0.0
        %2507 = vmatpush1.msra.mxu0 0.0
        %2508 = vmatprep.subr.mxu0 0.0
        %2509 = vmatpush1.msra.mxu0 0.0
        %2510 = vmatprep.subr.mxu0 0.0
        %2511 = vmatpush1.msra.mxu0 0.0
        %2512 = vmatprep.subr.mxu0 0.0
        %2513 = vmatpush1.msra.mxu0 0.0
        %2514 = vmatprep.subr.mxu0 0.0
        %2515 = vmatpush1.msra.mxu0 0.0
        %2516 = vmatprep.subr.mxu0 0.0
        %2517 = vmatpush1.msra.mxu0 0.0
        %2518 = vmatprep.subr.mxu0 0.0
        %2519 = vmatpush1.msra.mxu0 0.0
        %2520 = vmatprep.subr.mxu0 0.0
        %2521 = vmatpush1.msra.mxu0 0.0
        %2522 = vmatprep.subr.mxu0 0.0
        %2523 = vmatpush1.msra.mxu0 0.0
        %2524 = vmatprep.subr.mxu0 0.0
        %2525 = vmatpush1.msra.mxu0 0.0
        %2526 = vmatprep.subr.mxu0 0.0
        %2527 = vmatpush1.msra.mxu0 0.0
        %2528 = vmatprep.subr.mxu0 0.0
        %2529 = vmatpush1.msra.mxu0 0.0
        %2530 = vmatprep.subr.mxu0 0.0
        %2531 = vmatpush1.msra.mxu0 0.0
        %2532 = vmatprep.subr.mxu0 0.0
        %2533 = vmatpush1.msra.mxu0 0.0
        %2534 = vmatprep.mubr.f32.mxu0 0.0
        %2535 = vmatmul.mubr.f32.gmra.mrb[0].mxu0 %v2462
        %v2536 = vpop.f32.mrb[0].mxu0
        %v2537 = vadd.f32 %v2376, %v2536
        %v2538 = vpop.f32.mrb[0].mxu0
        %v2539 = vadd.f32 %v2378, %v2538
        %2540 = vdwg.mxu0
        %2541 = vmatprep.subr.mxu0 0.0
        %2542 = vmatpush1.msra.mxu0 %v2468
        %2543 = vmatprep.subr.mxu0 0.0
        %2544 = vmatpush1.msra.mxu0 0.0
        %2545 = vmatprep.subr.mxu0 0.0
        %2546 = vmatpush1.msra.mxu0 0.0
        %2547 = vmatprep.subr.mxu0 0.0
        %2548 = vmatpush1.msra.mxu0 0.0
        %2549 = vmatprep.subr.mxu0 0.0
        %2550 = vmatpush1.msra.mxu0 0.0
        %2551 = vmatprep.subr.mxu0 0.0
        %2552 = vmatpush1.msra.mxu0 0.0
        %2553 = vmatprep.subr.mxu0 0.0
        %2554 = vmatpush1.msra.mxu0 0.0
        %2555 = vmatprep.subr.mxu0 0.0
        %2556 = vmatpush1.msra.mxu0 0.0
        %2557 = vmatprep.subr.mxu0 0.0
        %2558 = vmatpush1.msra.mxu0 0.0
        %2559 = vmatprep.subr.mxu0 0.0
        %2560 = vmatpush1.msra.mxu0 0.0
        %2561 = vmatprep.subr.mxu0 0.0
        %2562 = vmatpush1.msra.mxu0 0.0
        %2563 = vmatprep.subr.mxu0 0.0
        %2564 = vmatpush1.msra.mxu0 0.0
        %2565 = vmatprep.subr.mxu0 0.0
        %2566 = vmatpush1.msra.mxu0 0.0
        %2567 = vmatprep.subr.mxu0 0.0
        %2568 = vmatpush1.msra.mxu0 0.0
        %2569 = vmatprep.subr.mxu0 0.0
        %2570 = vmatpush1.msra.mxu0 0.0
        %2571 = vmatprep.subr.mxu0 0.0
        %2572 = vmatpush1.msra.mxu0 0.0
        %2573 = vmatprep.subr.mxu0 0.0
        %2574 = vmatpush1.msra.mxu0 0.0
        %2575 = vmatprep.subr.mxu0 0.0
        %2576 = vmatpush1.msra.mxu0 0.0
        %2577 = vmatprep.subr.mxu0 0.0
        %2578 = vmatpush1.msra.mxu0 0.0
        %2579 = vmatprep.subr.mxu0 0.0
        %2580 = vmatpush1.msra.mxu0 0.0
        %2581 = vmatprep.subr.mxu0 0.0
        %2582 = vmatpush1.msra.mxu0 0.0
        %2583 = vmatprep.subr.mxu0 0.0
        %2584 = vmatpush1.msra.mxu0 0.0
        %2585 = vmatprep.subr.mxu0 0.0
        %2586 = vmatpush1.msra.mxu0 0.0
        %2587 = vmatprep.subr.mxu0 0.0
        %2588 = vmatpush1.msra.mxu0 0.0
        %2589 = vmatprep.subr.mxu0 0.0
        %2590 = vmatpush1.msra.mxu0 0.0
        %2591 = vmatprep.subr.mxu0 0.0
        %2592 = vmatpush1.msra.mxu0 0.0
        %2593 = vmatprep.subr.mxu0 0.0
        %2594 = vmatpush1.msra.mxu0 0.0
        %2595 = vmatprep.subr.mxu0 0.0
        %2596 = vmatpush1.msra.mxu0 0.0
        %2597 = vmatprep.subr.mxu0 0.0
        %2598 = vmatpush1.msra.mxu0 0.0
        %2599 = vmatprep.subr.mxu0 0.0
        %2600 = vmatpush1.msra.mxu0 0.0
        %2601 = vmatprep.subr.mxu0 0.0
        %2602 = vmatpush1.msra.mxu0 0.0
        %2603 = vmatprep.subr.mxu0 0.0
        %2604 = vmatpush1.msra.mxu0 0.0
        %2605 = vmatprep.mubr.f32.mxu0 0.0
        %2606 = vmatmul.mubr.f32.gmra.mrb[0].mxu0 %v2462
        %v2607 = vpop.f32.mrb[0].mxu0
        %v2608 = vadd.f32 %v2447, %v2607
        %v2609 = vpop.f32.mrb[0].mxu0
        %2610 = vdwg.mxu0
        %v2611 = vld [vmem:[%s208] sm:$0xff]
        %v2612 = vld [vmem:[%s208 + $0x8] sm:$0xff]
        %s2613 = scalar_lea.vmem %s212, 56
        %v2614 = vld [vmem:[%s2613] sm:$0xf]
        %v2617 = vcombine.high %v2611, %v2611
        %v2618 = vcombine.high %v2612, %v2612
        %2619 = vrot.lane.b32.xlu0 %v2611, 91
        %v2620 = vpop.permute.xlu0 %2619
        %2621 = vrot.lane.b32.xlu0 %v2617, 91
        %v2622 = vpop.permute.xlu0 %2621
        %2623 = vrot.lane.b32.xlu0 %v2612, 91
        %v2624 = vpop.permute.xlu0 %2623
        %2625 = vrot.lane.b32.xlu0 %v2618, 91
        %v2626 = vpop.permute.xlu0 %2625
        %v2627 = vsel %vm2112, %v2620, %v2622
        %v2628 = vsel %vm2112, %v2622, %v2624
        %v2629 = vsel %vm2112, %v2624, %v2626
        %v2631 = vsel %vm240, %v2614, 0
        %v2633 = vsel %vm244, %v2627, 0
        %v2635 = vsel %vm244, %v2628, 0
        %v2637 = vsel %vm244, %v2629, 0
        %2639 = vmatprep.subr.mxu0 %v2635
        %2640 = vmatpush1.msra.mxu0 %v2633
        %2641 = vmatprep.subr.mxu0 0.0
        %2642 = vmatpush1.msra.mxu0 0.0
        %2643 = vmatprep.subr.mxu0 0.0
        %2644 = vmatpush1.msra.mxu0 0.0
        %2645 = vmatprep.subr.mxu0 0.0
        %2646 = vmatpush1.msra.mxu0 0.0
        %2647 = vmatprep.subr.mxu0 0.0
        %2648 = vmatpush1.msra.mxu0 0.0
        %2649 = vmatprep.subr.mxu0 0.0
        %2650 = vmatpush1.msra.mxu0 0.0
        %2651 = vmatprep.subr.mxu0 0.0
        %2652 = vmatpush1.msra.mxu0 0.0
        %2653 = vmatprep.subr.mxu0 0.0
        %2654 = vmatpush1.msra.mxu0 0.0
        %2655 = vmatprep.subr.mxu0 0.0
        %2656 = vmatpush1.msra.mxu0 0.0
        %2657 = vmatprep.subr.mxu0 0.0
        %2658 = vmatpush1.msra.mxu0 0.0
        %2659 = vmatprep.subr.mxu0 0.0
        %2660 = vmatpush1.msra.mxu0 0.0
        %2661 = vmatprep.subr.mxu0 0.0
        %2662 = vmatpush1.msra.mxu0 0.0
        %2663 = vmatprep.subr.mxu0 0.0
        %2664 = vmatpush1.msra.mxu0 0.0
        %2665 = vmatprep.subr.mxu0 0.0
        %2666 = vmatpush1.msra.mxu0 0.0
        %2667 = vmatprep.subr.mxu0 0.0
        %2668 = vmatpush1.msra.mxu0 0.0
        %2669 = vmatprep.subr.mxu0 0.0
        %2670 = vmatpush1.msra.mxu0 0.0
        %2671 = vmatprep.subr.mxu0 0.0
        %2672 = vmatpush1.msra.mxu0 0.0
        %2673 = vmatprep.subr.mxu0 0.0
        %2674 = vmatpush1.msra.mxu0 0.0
        %2675 = vmatprep.subr.mxu0 0.0
        %2676 = vmatpush1.msra.mxu0 0.0
        %2677 = vmatprep.subr.mxu0 0.0
        %2678 = vmatpush1.msra.mxu0 0.0
        %2679 = vmatprep.subr.mxu0 0.0
        %2680 = vmatpush1.msra.mxu0 0.0
        %2681 = vmatprep.subr.mxu0 0.0
        %2682 = vmatpush1.msra.mxu0 0.0
        %2683 = vmatprep.subr.mxu0 0.0
        %2684 = vmatpush1.msra.mxu0 0.0
        %2685 = vmatprep.subr.mxu0 0.0
        %2686 = vmatpush1.msra.mxu0 0.0
        %2687 = vmatprep.subr.mxu0 0.0
        %2688 = vmatpush1.msra.mxu0 0.0
        %2689 = vmatprep.subr.mxu0 0.0
        %2690 = vmatpush1.msra.mxu0 0.0
        %2691 = vmatprep.subr.mxu0 0.0
        %2692 = vmatpush1.msra.mxu0 0.0
        %2693 = vmatprep.subr.mxu0 0.0
        %2694 = vmatpush1.msra.mxu0 0.0
        %2695 = vmatprep.subr.mxu0 0.0
        %2696 = vmatpush1.msra.mxu0 0.0
        %2697 = vmatprep.subr.mxu0 0.0
        %2698 = vmatpush1.msra.mxu0 0.0
        %2699 = vmatprep.subr.mxu0 0.0
        %2700 = vmatpush1.msra.mxu0 0.0
        %2701 = vmatprep.subr.mxu0 0.0
        %2702 = vmatpush1.msra.mxu0 0.0
        %2703 = vmatprep.mubr.f32.mxu0 0.0
        %2704 = vmatmul.mubr.f32.gmra.mrb[0].mxu0 %v2631
        %v2705 = vpop.f32.mrb[0].mxu0
        %v2706 = vadd.f32 0.0, %v2705
        %v2707 = vpop.f32.mrb[0].mxu0
        %v2708 = vadd.f32 0.0, %v2707
        %2709 = vdwg.mxu0
        %2710 = vmatprep.subr.mxu0 0.0
        %2711 = vmatpush1.msra.mxu0 %v2637
        %2712 = vmatprep.subr.mxu0 0.0
        %2713 = vmatpush1.msra.mxu0 0.0
        %2714 = vmatprep.subr.mxu0 0.0
        %2715 = vmatpush1.msra.mxu0 0.0
        %2716 = vmatprep.subr.mxu0 0.0
        %2717 = vmatpush1.msra.mxu0 0.0
        %2718 = vmatprep.subr.mxu0 0.0
        %2719 = vmatpush1.msra.mxu0 0.0
        %2720 = vmatprep.subr.mxu0 0.0
        %2721 = vmatpush1.msra.mxu0 0.0
        %2722 = vmatprep.subr.mxu0 0.0
        %2723 = vmatpush1.msra.mxu0 0.0
        %2724 = vmatprep.subr.mxu0 0.0
        %2725 = vmatpush1.msra.mxu0 0.0
        %2726 = vmatprep.subr.mxu0 0.0
        %2727 = vmatpush1.msra.mxu0 0.0
        %2728 = vmatprep.subr.mxu0 0.0
        %2729 = vmatpush1.msra.mxu0 0.0
        %2730 = vmatprep.subr.mxu0 0.0
        %2731 = vmatpush1.msra.mxu0 0.0
        %2732 = vmatprep.subr.mxu0 0.0
        %2733 = vmatpush1.msra.mxu0 0.0
        %2734 = vmatprep.subr.mxu0 0.0
        %2735 = vmatpush1.msra.mxu0 0.0
        %2736 = vmatprep.subr.mxu0 0.0
        %2737 = vmatpush1.msra.mxu0 0.0
        %2738 = vmatprep.subr.mxu0 0.0
        %2739 = vmatpush1.msra.mxu0 0.0
        %2740 = vmatprep.subr.mxu0 0.0
        %2741 = vmatpush1.msra.mxu0 0.0
        %2742 = vmatprep.subr.mxu0 0.0
        %2743 = vmatpush1.msra.mxu0 0.0
        %2744 = vmatprep.subr.mxu0 0.0
        %2745 = vmatpush1.msra.mxu0 0.0
        %2746 = vmatprep.subr.mxu0 0.0
        %2747 = vmatpush1.msra.mxu0 0.0
        %2748 = vmatprep.subr.mxu0 0.0
        %2749 = vmatpush1.msra.mxu0 0.0
        %2750 = vmatprep.subr.mxu0 0.0
        %2751 = vmatpush1.msra.mxu0 0.0
        %2752 = vmatprep.subr.mxu0 0.0
        %2753 = vmatpush1.msra.mxu0 0.0
        %2754 = vmatprep.subr.mxu0 0.0
        %2755 = vmatpush1.msra.mxu0 0.0
        %2756 = vmatprep.subr.mxu0 0.0
        %2757 = vmatpush1.msra.mxu0 0.0
        %2758 = vmatprep.subr.mxu0 0.0
        %2759 = vmatpush1.msra.mxu0 0.0
        %2760 = vmatprep.subr.mxu0 0.0
        %2761 = vmatpush1.msra.mxu0 0.0
        %2762 = vmatprep.subr.mxu0 0.0
        %2763 = vmatpush1.msra.mxu0 0.0
        %2764 = vmatprep.subr.mxu0 0.0
        %2765 = vmatpush1.msra.mxu0 0.0
        %2766 = vmatprep.subr.mxu0 0.0
        %2767 = vmatpush1.msra.mxu0 0.0
        %2768 = vmatprep.subr.mxu0 0.0
        %2769 = vmatpush1.msra.mxu0 0.0
        %2770 = vmatprep.subr.mxu0 0.0
        %2771 = vmatpush1.msra.mxu0 0.0
        %2772 = vmatprep.subr.mxu0 0.0
        %2773 = vmatpush1.msra.mxu0 0.0
        %2774 = vmatprep.mubr.f32.mxu0 0.0
        %2775 = vmatmul.mubr.f32.gmra.mrb[0].mxu0 %v2631
        %v2776 = vpop.f32.mrb[0].mxu0
        %v2777 = vadd.f32 0.0, %v2776
        %v2778 = vpop.f32.mrb[0].mxu0
        %2779 = vdwg.mxu0
        %v2780 = vadd.f32 %v2537, %v2706
        %v2781 = vadd.f32 %v2539, %v2708
        %v2782 = vadd.f32 %v2608, %v2777
        %v2783 = vld [vmem:[%s208] sm:$0xff]
        %v2784 = vld [vmem:[%s208 + $0x8] sm:$0xff]
        %s2785 = scalar_lea.vmem %s212, 60
        %v2786 = vld [vmem:[%s2785] sm:$0xf]
        %v2789 = vcombine.high %v2783, %v2783
        %v2790 = vcombine.high %v2784, %v2784
        %2791 = vrot.lane.b32.xlu0 %v2783, 90
        %v2792 = vpop.permute.xlu0 %2791
        %2793 = vrot.lane.b32.xlu0 %v2789, 90
        %v2794 = vpop.permute.xlu0 %2793
        %2795 = vrot.lane.b32.xlu0 %v2784, 90
        %v2796 = vpop.permute.xlu0 %2795
        %2797 = vrot.lane.b32.xlu0 %v2790, 90
        %v2798 = vpop.permute.xlu0 %2797
        %vm2799 = vcmask 736256
        %v2800 = vsel %vm2799, %v2792, %v2794
        %v2801 = vsel %vm2799, %v2794, %v2796
        %v2802 = vsel %vm2799, %v2796, %v2798
        %v2804 = vsel %vm240, %v2786, 0
        %v2806 = vsel %vm244, %v2800, 0
        %v2808 = vsel %vm244, %v2801, 0
        %v2810 = vsel %vm244, %v2802, 0
        %2812 = vmatprep.subr.mxu0 %v2808
        %2813 = vmatpush1.msra.mxu0 %v2806
        %2814 = vmatprep.subr.mxu0 0.0
        %2815 = vmatpush1.msra.mxu0 0.0
        %2816 = vmatprep.subr.mxu0 0.0
        %2817 = vmatpush1.msra.mxu0 0.0
        %2818 = vmatprep.subr.mxu0 0.0
        %2819 = vmatpush1.msra.mxu0 0.0
        %2820 = vmatprep.subr.mxu0 0.0
        %2821 = vmatpush1.msra.mxu0 0.0
        %2822 = vmatprep.subr.mxu0 0.0
        %2823 = vmatpush1.msra.mxu0 0.0
        %2824 = vmatprep.subr.mxu0 0.0
        %2825 = vmatpush1.msra.mxu0 0.0
        %2826 = vmatprep.subr.mxu0 0.0
        %2827 = vmatpush1.msra.mxu0 0.0
        %2828 = vmatprep.subr.mxu0 0.0
        %2829 = vmatpush1.msra.mxu0 0.0
        %2830 = vmatprep.subr.mxu0 0.0
        %2831 = vmatpush1.msra.mxu0 0.0
        %2832 = vmatprep.subr.mxu0 0.0
        %2833 = vmatpush1.msra.mxu0 0.0
        %2834 = vmatprep.subr.mxu0 0.0
        %2835 = vmatpush1.msra.mxu0 0.0
        %2836 = vmatprep.subr.mxu0 0.0
        %2837 = vmatpush1.msra.mxu0 0.0
        %2838 = vmatprep.subr.mxu0 0.0
        %2839 = vmatpush1.msra.mxu0 0.0
        %2840 = vmatprep.subr.mxu0 0.0
        %2841 = vmatpush1.msra.mxu0 0.0
        %2842 = vmatprep.subr.mxu0 0.0
        %2843 = vmatpush1.msra.mxu0 0.0
        %2844 = vmatprep.subr.mxu0 0.0
        %2845 = vmatpush1.msra.mxu0 0.0
        %2846 = vmatprep.subr.mxu0 0.0
        %2847 = vmatpush1.msra.mxu0 0.0
        %2848 = vmatprep.subr.mxu0 0.0
        %2849 = vmatpush1.msra.mxu0 0.0
        %2850 = vmatprep.subr.mxu0 0.0
        %2851 = vmatpush1.msra.mxu0 0.0
        %2852 = vmatprep.subr.mxu0 0.0
        %2853 = vmatpush1.msra.mxu0 0.0
        %2854 = vmatprep.subr.mxu0 0.0
        %2855 = vmatpush1.msra.mxu0 0.0
        %2856 = vmatprep.subr.mxu0 0.0
        %2857 = vmatpush1.msra.mxu0 0.0
        %2858 = vmatprep.subr.mxu0 0.0
        %2859 = vmatpush1.msra.mxu0 0.0
        %2860 = vmatprep.subr.mxu0 0.0
        %2861 = vmatpush1.msra.mxu0 0.0
        %2862 = vmatprep.subr.mxu0 0.0
        %2863 = vmatpush1.msra.mxu0 0.0
        %2864 = vmatprep.subr.mxu0 0.0
        %2865 = vmatpush1.msra.mxu0 0.0
        %2866 = vmatprep.subr.mxu0 0.0
        %2867 = vmatpush1.msra.mxu0 0.0
        %2868 = vmatprep.subr.mxu0 0.0
        %2869 = vmatpush1.msra.mxu0 0.0
        %2870 = vmatprep.subr.mxu0 0.0
        %2871 = vmatpush1.msra.mxu0 0.0
        %2872 = vmatprep.subr.mxu0 0.0
        %2873 = vmatpush1.msra.mxu0 0.0
        %2874 = vmatprep.subr.mxu0 0.0
        %2875 = vmatpush1.msra.mxu0 0.0
        %2876 = vmatprep.mubr.f32.mxu0 0.0
        %2877 = vmatmul.mubr.f32.gmra.mrb[0].mxu0 %v2804
        %v2878 = vpop.f32.mrb[0].mxu0
        %v2879 = vadd.f32 0.0, %v2878
        %v2880 = vpop.f32.mrb[0].mxu0
        %v2881 = vadd.f32 0.0, %v2880
        %2882 = vdwg.mxu0
        %2883 = vmatprep.subr.mxu0 0.0
        %2884 = vmatpush1.msra.mxu0 %v2810
        %2885 = vmatprep.subr.mxu0 0.0
        %2886 = vmatpush1.msra.mxu0 0.0
        %2887 = vmatprep.subr.mxu0 0.0
        %2888 = vmatpush1.msra.mxu0 0.0
        %2889 = vmatprep.subr.mxu0 0.0
        %2890 = vmatpush1.msra.mxu0 0.0
        %2891 = vmatprep.subr.mxu0 0.0
        %2892 = vmatpush1.msra.mxu0 0.0
        %2893 = vmatprep.subr.mxu0 0.0
        %2894 = vmatpush1.msra.mxu0 0.0
        %2895 = vmatprep.subr.mxu0 0.0
        %2896 = vmatpush1.msra.mxu0 0.0
        %2897 = vmatprep.subr.mxu0 0.0
        %2898 = vmatpush1.msra.mxu0 0.0
        %2899 = vmatprep.subr.mxu0 0.0
        %2900 = vmatpush1.msra.mxu0 0.0
        %2901 = vmatprep.subr.mxu0 0.0
        %2902 = vmatpush1.msra.mxu0 0.0
        %2903 = vmatprep.subr.mxu0 0.0
        %2904 = vmatpush1.msra.mxu0 0.0
        %2905 = vmatprep.subr.mxu0 0.0
        %2906 = vmatpush1.msra.mxu0 0.0
        %2907 = vmatprep.subr.mxu0 0.0
        %2908 = vmatpush1.msra.mxu0 0.0
        %2909 = vmatprep.subr.mxu0 0.0
        %2910 = vmatpush1.msra.mxu0 0.0
        %2911 = vmatprep.subr.mxu0 0.0
        %2912 = vmatpush1.msra.mxu0 0.0
        %2913 = vmatprep.subr.mxu0 0.0
        %2914 = vmatpush1.msra.mxu0 0.0
        %2915 = vmatprep.subr.mxu0 0.0
        %2916 = vmatpush1.msra.mxu0 0.0
        %2917 = vmatprep.subr.mxu0 0.0
        %2918 = vmatpush1.msra.mxu0 0.0
        %2919 = vmatprep.subr.mxu0 0.0
        %2920 = vmatpush1.msra.mxu0 0.0
        %2921 = vmatprep.subr.mxu0 0.0
        %2922 = vmatpush1.msra.mxu0 0.0
        %2923 = vmatprep.subr.mxu0 0.0
        %2924 = vmatpush1.msra.mxu0 0.0
        %2925 = vmatprep.subr.mxu0 0.0
        %2926 = vmatpush1.msra.mxu0 0.0
        %2927 = vmatprep.subr.mxu0 0.0
        %2928 = vmatpush1.msra.mxu0 0.0
        %2929 = vmatprep.subr.mxu0 0.0
        %2930 = vmatpush1.msra.mxu0 0.0
        %2931 = vmatprep.subr.mxu0 0.0
        %2932 = vmatpush1.msra.mxu0 0.0
        %2933 = vmatprep.subr.mxu0 0.0
        %2934 = vmatpush1.msra.mxu0 0.0
        %2935 = vmatprep.subr.mxu0 0.0
        %2936 = vmatpush1.msra.mxu0 0.0
        %2937 = vmatprep.subr.mxu0 0.0
        %2938 = vmatpush1.msra.mxu0 0.0
        %2939 = vmatprep.subr.mxu0 0.0
        %2940 = vmatpush1.msra.mxu0 0.0
        %2941 = vmatprep.subr.mxu0 0.0
        %2942 = vmatpush1.msra.mxu0 0.0
        %2943 = vmatprep.subr.mxu0 0.0
        %2944 = vmatpush1.msra.mxu0 0.0
        %2945 = vmatprep.subr.mxu0 0.0
        %2946 = vmatpush1.msra.mxu0 0.0
        %2947 = vmatprep.mubr.f32.mxu0 0.0
        %2948 = vmatmul.mubr.f32.gmra.mrb[0].mxu0 %v2804
        %v2949 = vpop.f32.mrb[0].mxu0
        %v2950 = vadd.f32 0.0, %v2949
        %v2951 = vpop.f32.mrb[0].mxu0
        %2952 = vdwg.mxu0
        %v2953 = vadd.f32 %v2780, %v2879
        %v2954 = vadd.f32 %v2781, %v2881
        %v2955 = vadd.f32 %v2782, %v2950
        %v2956 = vadd.f32 %v2953, %v892
        %v2957 = vadd.f32 %v2954, %v892
        %v2958 = vadd.f32 %v2955, %v892
        %v2961 = vcombine.low %v2956, %v2957
        %s2963 = scalar_lea.vmem %s203, 36 [#allocation2]
        %2964 = vst [vmem:[%s2963] sm:$0xff] %v2961
        %2965 = vst [vmem:[%s2963 + $0x8] sm:$0xf] %v2958
        %s2966 = sand.u32 %s117, 1
        %s2967 = scalar_lea.sflag [#allocation3], %s2966
        %s2968 = sand.u32 %s117, 1
        %s2969 = smul.addr %s2968, 48
        %s2970 = scalar_lea.vmem [#allocation2], %s2969
        // Predicated region
        $region33: #{tpu_custom_call.1} parent=31 // pred_check
          %p2971 = pneg %p127
        $region34: #{tpu_custom_call.1} parent=31 // pred_check_branch
          %2973 = sbr.rel (%p2971) target = $region36
        $region35: #{tpu_custom_call.1} parent=31 // pred_region
          %s2975 = ssub.s32 768, 768
          %2976 = vsyncadd %s2967, %s2975
          %s2977 = smul.addr %s22, 3
          %s2978 = smul.addr %s21, 12
          %s2979 = sadd.s32 %s2977, %s2978
          %s2980 = smul.addr %s2979, 64
          %s2981 = scalar_lea.hbm %s3, %s2980
          %s2982 = sshll.u32 %s2970, 4
          %s2983 = int_to_ptr.vmem [resolvable:$true] %s2982
          %2988 = dma.vmem_to_hbm [thread:$0]  %s2983, 768, %s2981, %s2967, 192, 192, 12
        $region36: #{tpu_custom_call.1} parent=31 // pred_fallthru
          _
      $region32: #{tpu_custom_call.1} parent=5 // pred_fallthru
        _
      %p2989 = scmp.le.s32.totalorder 2, %s12
      // Predicated region
      $region37: #{tpu_custom_call.1} parent=5 // pred_check
        %p2990 = pneg %p2989
      $region38: #{tpu_custom_call.1} parent=5 // pred_check_branch
        %2992 = sbr.rel (%p2990) target = $region40
      $region39: #{tpu_custom_call.1} parent=5 // pred_region
        %s2993 = ssub.s32 %s12, 2
        // Predicated region
        $region41: #{tpu_custom_call.1} parent=39 // pred_check
          %p2994 = pneg %p133
        $region42: #{tpu_custom_call.1} parent=39 // pred_check_branch
          %2996 = sbr.rel (%p2994) target = $region44
        $region43: #{tpu_custom_call.1} parent=39 // pred_region
          %s2997 = sand.u32 %s118, 1
          %s2998 = scalar_lea.sflag [#allocation3], %s2997
          %s2999 = sand.u32 %s118, 1
          %s3000 = smul.addr %s2999, 48
          %s3001 = scalar_lea.vmem [#allocation2], %s3000
          %3002 = dma.done %s2998, 768
        $region44: #{tpu_custom_call.1} parent=39 // pred_fallthru
          _
      $region40: #{tpu_custom_call.1} parent=5 // pred_fallthru
        _
    $region6: #{tpu_custom_call.1} parent=1 // loop_footer
      %s16 = sadd.s32 1, %s12
    $region7: #{tpu_custom_call.1} parent=1 // loop_footer_branch
      %11 = sbr.rel target = $region3
    $region8: #{tpu_custom_call.1} parent=1 // loop_exit
      _
    %3003 = vsyncpa [#allocation3], 1
    %s3004 = scalar_lea.sflag [#allocation3], 1
    %3005 = vsyncpa %s3004, 1

</llo_original>
